<compile_context>
chip_gen: v7x
topology: tpu7x:2x2x1
jax: 0.10.0
libtpu: 0.0.40
codegen_flags: <defaults>
</compile_context>

<pallas_src>
import functools

import jax
import jax.numpy as jnp
from jax.experimental import pallas as pl
from jax.experimental.pallas import tpu as pltpu


def _conv_stats_kernel(x_ref, w_ref, y_ref, psum_ref, psq_ref,
                       *, KH, KW, TOH, OW, Cin, CP, sh, sw):
    """Implicit-GEMM conv for one (sample, output-height tile):
    accumulate KH*KW tap matmuls in f32, emit bf16 y and per-tile BN partial sums."""
    t = pl.program_id(1)
    oh0 = t * TOH                                      # first output row of this tile

    acc = jnp.zeros((TOH * OW, CP), jnp.float32)
    for i in range(KH):
        for j in range(KW):
            if sh == 1 and sw == 1:
                win = x_ref[pl.ds(oh0 + i, TOH), pl.ds(j, OW), :]          # (TOH, OW, Cin)
            else:
                # TODO(synk): stride>1 path (strided pl.ds windows) is not exercised below.
                win = x_ref[pl.ds(oh0 * sh + i, TOH, stride=sh),
                            pl.ds(j, OW, stride=sw), :]
            # layout-preserving collapse (OW is a multiple of the sublane tile)
            lhs = win.reshape(TOH * OW, Cin)
            acc += jnp.dot(lhs, w_ref[i * KW + j],
                           preferred_element_type=jnp.float32)

    y_ref[...] = acc.astype(y_ref.dtype)               # bf16 intermediate

    s = jnp.sum(acc, axis=0, keepdims=True)            # (1, CP) f32 partial sum
    q = jnp.sum(acc * acc, axis=0, keepdims=True)      # (1, CP) f32 partial sum of squares
    psum_ref[...] = jnp.broadcast_to(s, (8, CP))       # replicate over 8 sublanes (layout-safe)
    psq_ref[...] = jnp.broadcast_to(q, (8, CP))


def _bn_relu_nchw_kernel(y_ref, scale_ref, shift_ref, o_ref):
    """BN (pre-folded scale/shift) + ReLU, with the NHWC->NCHW transpose folded in."""
    y = y_ref[...].astype(jnp.float32)                               # (TS, CP)
    z = jnp.maximum(y * scale_ref[...] + shift_ref[...], 0.0)
    o_ref[...] = z.T                                                 # (CP, TS): channel-major


def conv_bn_relu(x_nchw, weight, bias, gamma, beta, *, stride, padding, eps=1e-5):
    del bias  # train-mode BN subtracts the batch mean -> the conv bias cancels exactly.

    N, Cin, H, W = x_nchw.shape
    Cout, Cin_w, KH, KW = weight.shape
    assert Cin == Cin_w
    sh = sw = int(stride)
    ph = pw = int(padding)
    OH = (H + 2 * ph - KH) // sh + 1
    OW = (W + 2 * pw - KW) // sw + 1
    S = OH * OW
    M = N * S
    CP = max(128, -(-Cout // 128) * 128)               # pad channels to a lane-dense width

    # ---- cheap glue: one pass over the raw input (NO KH*KW im2col duplication) ----
    x = jnp.transpose(x_nchw, (0, 2, 3, 1)).astype(jnp.bfloat16)     # NHWC, bf16 operands
    xp = jnp.pad(x, ((0, 0), (ph, ph), (pw, pw), (0, 0)))
    Hp, Wp = H + 2 * ph, W + 2 * pw

    # (Cout, Cin, KH, KW) -> (KH*KW, Cin, CP) bf16, zero-padded channels
    w2 = jnp.transpose(weight, (2, 3, 1, 0)).reshape(KH * KW, Cin, Cout)
    w2 = jnp.pad(w2, ((0, 0), (0, 0), (0, CP - Cout))).astype(jnp.bfloat16)

    # output-height tile: target >= 512 output rows per grid step (amortize ~0.35us/step),
    # keep (TOH*OW) a multiple of 128 so y / out blocks stay lane-dense and (8,128)-legal.
    toh = max(1, min(OH, 512 // max(OW, 1)))
    while OH % toh != 0:
        toh -= 1
    if (toh * OW) % 128 != 0:
        toh = OH                                       # fall back: one tile per sample
    TS = toh * OW
    num_t = OH // toh
    # VMEM budget note (v7x has 64 MiB): resident per step = padded sample (Hp*Wp*Cin bf16,
    # double-buffered) + weights + TS*CP bf16 y block + TS*CP f32 accumulator — tiny here.

    kernel1 = functools.partial(_conv_stats_kernel, KH=KH, KW=KW, TOH=toh,
                                OW=OW, Cin=Cin, CP=CP, sh=sh, sw=sw)

    # ---- kernel 1: implicit-GEMM conv + per-tile BN statistics ----
    y, psum, psq = pl.pallas_call(
        kernel1,
        out_shape=(
            jax.ShapeDtypeStruct((N, S, CP), jnp.bfloat16),
            jax.ShapeDtypeStruct((N, num_t, 8, CP), jnp.float32),
            jax.ShapeDtypeStruct((N, num_t, 8, CP), jnp.float32),
        ),
        grid_spec=pltpu.PrefetchScalarGridSpec(
            num_scalar_prefetch=0,
            grid=(N, num_t),
            in_specs=[
                pl.BlockSpec((None, Hp, Wp, Cin), lambda n, t: (n, 0, 0, 0)),
                pl.BlockSpec((KH * KW, Cin, CP), lambda n, t: (0, 0, 0)),
            ],
            out_specs=(
                pl.BlockSpec((None, TS, CP), lambda n, t: (n, t, 0)),
                pl.BlockSpec((None, None, 8, CP), lambda n, t: (n, t, 0, 0)),
                pl.BlockSpec((None, None, 8, CP), lambda n, t: (n, t, 0, 0)),
            ),
        ),
        compiler_params=pltpu.CompilerParams(
            dimension_semantics=("parallel", "parallel")),
    )(xp, w2)

    # ---- tiny per-channel BN math (CP scalars) stays in plain JAX ----
    ysum = jnp.sum(psum[:, :, 0, :], axis=(0, 1))                    # (CP,)
    ysq = jnp.sum(psq[:, :, 0, :], axis=(0, 1))
    mean = ysum / M
    var = jnp.maximum(ysq / M - mean * mean, 0.0)      # clamp: cancellation can go negative
    inv = jax.lax.rsqrt(var + eps)
    gamma_p = jnp.pad(gamma.astype(jnp.float32), (0, CP - Cout))
    beta_p = jnp.pad(beta.astype(jnp.float32), (0, CP - Cout))
    scale_v = gamma_p * inv
    shift_v = beta_p - mean * scale_v
    scale = scale_v.reshape(1, CP)
    shift = shift_v.reshape(1, CP)

    # ---- kernel 2: BN + ReLU + fold the NCHW layout conversion into the streaming pass ----
    out_p = pl.pallas_call(
        _bn_relu_nchw_kernel,
        out_shape=jax.ShapeDtypeStruct((N, CP, S), jnp.float32),
        grid_spec=pltpu.PrefetchScalarGridSpec(
            num_scalar_prefetch=0,
            grid=(N, num_t),
            in_specs=[
                pl.BlockSpec((None, TS, CP), lambda n, t: (n, t, 0)),
                pl.BlockSpec((1, CP), lambda n, t: (0, 0)),
                pl.BlockSpec((1, CP), lambda n, t: (0, 0)),
            ],
            out_specs=pl.BlockSpec((None, CP, TS), lambda n, t: (n, 0, t)),
        ),
        compiler_params=pltpu.CompilerParams(
            dimension_semantics=("parallel", "parallel")),
    )(y, scale, shift)

    # reshape is free (metadata); the channel slice just drops the lane padding.
    return out_p.reshape(N, CP, OH, OW)[:, :Cout]


if __name__ == "__main__":
    # ConvBnRelu(in_channels=4, out_channels=8, kernel_size=3, padding=1, stride=1,
    #            coordconv=False) -- training-mode BN (batch statistics)
    N, Cin, H, W = 2, 4, 16, 16
    Cout, KH, KW = 8, 3, 3
    stride, padding = 1, 1

    key = jax.random.PRNGKey(0)
    kx, kw, kb = jax.random.split(key, 3)
    x = jax.random.normal(kx, (N, Cin, H, W), dtype=jnp.float32)
    weight = jax.random.normal(kw, (Cout, Cin, KH, KW), dtype=jnp.float32) * 0.1
    bias = jax.random.normal(kb, (Cout,), dtype=jnp.float32) * 0.1
    gamma = jnp.ones((Cout,), dtype=jnp.float32)   # BatchNorm2d default weight init
    beta = jnp.zeros((Cout,), dtype=jnp.float32)   # BatchNorm2d default bias init

    out = conv_bn_relu(x, weight, bias, gamma, beta, stride=stride, padding=padding)
    out = jax.block_until_ready(out)

    # reference in plain JAX (mirrors the PyTorch forward in train mode); conv inputs are
    # cast to bf16 like the kernel so the comparison isolates kernel correctness.
    y_ref = jax.lax.conv_general_dilated(
        x.astype(jnp.bfloat16), weight.astype(jnp.bfloat16),
        (stride, stride), ((padding, padding), (padding, padding)),
        dimension_numbers=("NCHW", "OIHW", "NCHW"),
        preferred_element_type=jnp.float32,
    ) + bias.reshape(1, -1, 1, 1)
    m = y_ref.mean(axis=(0, 2, 3), keepdims=True)
    v = y_ref.var(axis=(0, 2, 3), keepdims=True)
    ref = jnp.maximum(
        (y_ref - m) / jnp.sqrt(v + 1e-5) * gamma.reshape(1, -1, 1, 1) + beta.reshape(1, -1, 1, 1),
        0.0,
    )
    assert out.shape == (N, Cout, H, W)
    # tolerance covers the bf16 rounding of the y intermediate (~0.2% relative)
    assert jnp.allclose(out, ref, atol=1e-2, rtol=1e-2), float(jnp.max(jnp.abs(out - ref)))
    print("KERNEL_OK")
</pallas_src>

<mosaic_0001>
module attributes {stable_mosaic.version = 11 : i64} {
  func.func @_conv_stats_kernel(%arg0: i32, %arg1: i32, %arg2: memref<1x18x18x4xbf16, #tpu.memory_space<vmem>>, %arg3: memref<9x4x128xbf16, #tpu.memory_space<vmem>>, %arg4: memref<1x256x128xbf16, #tpu.memory_space<vmem>>, %arg5: memref<1x1x8x128xf32, #tpu.memory_space<vmem>>, %arg6: memref<1x1x8x128xf32, #tpu.memory_space<vmem>>) attributes {dimension_semantics = [#tpu.dimension_semantics<parallel>, #tpu.dimension_semantics<parallel>], iteration_bounds = array<i64: 2, 1>, scalar_prefetch = 0 : i64, scratch_operands = 0 : i64, tpu.core_type = #tpu.core_type<tc>, window_params = [{transform_indices = @transform_0, window_bounds = array<i64: 1, 18, 18, 4>}, {pipeline_mode = #tpu.pipeline_mode<synchronous>, transform_indices = @transform_1, window_bounds = array<i64: 9, 4, 128>}, {transform_indices = @transform_2, window_bounds = array<i64: 1, 256, 128>}, {transform_indices = @transform_3, window_bounds = array<i64: 1, 1, 8, 128>}, {transform_indices = @transform_4, window_bounds = array<i64: 1, 1, 8, 128>}]} {
    %c16_i32 = arith.constant 16 : i32
    %0 = arith.muli %arg1, %c16_i32 : i32
    %cst = arith.constant 0.000000e+00 : f32
    %1 = vector.broadcast %cst : f32 to vector<256x128xf32>
    %c0_i32 = arith.constant 0 : i32
    %2 = arith.addi %0, %c0_i32 : i32
    %c0 = arith.constant 0 : index
    %3 = arith.index_cast %2 : i32 to index
    %c0_0 = arith.constant 0 : index
    %c0_1 = arith.constant 0 : index
    %4 = vector.load %arg2[%c0, %3, %c0_0, %c0_1] : memref<1x18x18x4xbf16, #tpu.memory_space<vmem>>, vector<1x16x16x4xbf16>
    %5 = vector.shape_cast %4 : vector<1x16x16x4xbf16> to vector<16x16x4xbf16>
    %6 = vector.shape_cast %5 : vector<16x16x4xbf16> to vector<256x4xbf16>
    %c0_2 = arith.constant 0 : index
    %c0_3 = arith.constant 0 : index
    %c0_4 = arith.constant 0 : index
    %7 = vector.load %arg3[%c0_2, %c0_3, %c0_4] : memref<9x4x128xbf16, #tpu.memory_space<vmem>>, vector<1x4x128xbf16>
    %8 = vector.shape_cast %7 : vector<1x4x128xbf16> to vector<4x128xbf16>
    %cst_5 = arith.constant dense<0.000000e+00> : vector<256x128xf32>
    %9 = tpu.matmul %6, %8, %cst_5 {dimension_numbers = #tpu.dot_dimension_numbers<[1], [0], [0], [1], [0, 0, 1, 1], [], []>} : vector<256x4xbf16>, vector<4x128xbf16>, vector<256x128xf32> -> vector<256x128xf32>
    %10 = arith.addf %1, %9 : vector<256x128xf32>
    %c0_i32_6 = arith.constant 0 : i32
    %11 = arith.addi %0, %c0_i32_6 : i32
    %c0_7 = arith.constant 0 : index
    %12 = arith.index_cast %11 : i32 to index
    %c1 = arith.constant 1 : index
    %c0_8 = arith.constant 0 : index
    %13 = vector.load %arg2[%c0_7, %12, %c1, %c0_8] : memref<1x18x18x4xbf16, #tpu.memory_space<vmem>>, vector<1x16x16x4xbf16>
    %14 = vector.shape_cast %13 : vector<1x16x16x4xbf16> to vector<16x16x4xbf16>
    %15 = vector.shape_cast %14 : vector<16x16x4xbf16> to vector<256x4xbf16>
    %c1_9 = arith.constant 1 : index
    %c0_10 = arith.constant 0 : index
    %c0_11 = arith.constant 0 : index
    %16 = vector.load %arg3[%c1_9, %c0_10, %c0_11] : memref<9x4x128xbf16, #tpu.memory_space<vmem>>, vector<1x4x128xbf16>
    %17 = vector.shape_cast %16 : vector<1x4x128xbf16> to vector<4x128xbf16>
    %cst_12 = arith.constant dense<0.000000e+00> : vector<256x128xf32>
    %18 = tpu.matmul %15, %17, %cst_12 {dimension_numbers = #tpu.dot_dimension_numbers<[1], [0], [0], [1], [0, 0, 1, 1], [], []>} : vector<256x4xbf16>, vector<4x128xbf16>, vector<256x128xf32> -> vector<256x128xf32>
    %19 = arith.addf %10, %18 : vector<256x128xf32>
    %c0_i32_13 = arith.constant 0 : i32
    %20 = arith.addi %0, %c0_i32_13 : i32
    %c0_14 = arith.constant 0 : index
    %21 = arith.index_cast %20 : i32 to index
    %c2 = arith.constant 2 : index
    %c0_15 = arith.constant 0 : index
    %22 = vector.load %arg2[%c0_14, %21, %c2, %c0_15] : memref<1x18x18x4xbf16, #tpu.memory_space<vmem>>, vector<1x16x16x4xbf16>
    %23 = vector.shape_cast %22 : vector<1x16x16x4xbf16> to vector<16x16x4xbf16>
    %24 = vector.shape_cast %23 : vector<16x16x4xbf16> to vector<256x4xbf16>
    %c2_16 = arith.constant 2 : index
    %c0_17 = arith.constant 0 : index
    %c0_18 = arith.constant 0 : index
    %25 = vector.load %arg3[%c2_16, %c0_17, %c0_18] : memref<9x4x128xbf16, #tpu.memory_space<vmem>>, vector<1x4x128xbf16>
    %26 = vector.shape_cast %25 : vector<1x4x128xbf16> to vector<4x128xbf16>
    %cst_19 = arith.constant dense<0.000000e+00> : vector<256x128xf32>
    %27 = tpu.matmul %24, %26, %cst_19 {dimension_numbers = #tpu.dot_dimension_numbers<[1], [0], [0], [1], [0, 0, 1, 1], [], []>} : vector<256x4xbf16>, vector<4x128xbf16>, vector<256x128xf32> -> vector<256x128xf32>
    %28 = arith.addf %19, %27 : vector<256x128xf32>
    %c1_i32 = arith.constant 1 : i32
    %29 = arith.addi %0, %c1_i32 : i32
    %c0_20 = arith.constant 0 : index
    %30 = arith.index_cast %29 : i32 to index
    %c0_21 = arith.constant 0 : index
    %c0_22 = arith.constant 0 : index
    %31 = vector.load %arg2[%c0_20, %30, %c0_21, %c0_22] : memref<1x18x18x4xbf16, #tpu.memory_space<vmem>>, vector<1x16x16x4xbf16>
    %32 = vector.shape_cast %31 : vector<1x16x16x4xbf16> to vector<16x16x4xbf16>
    %33 = vector.shape_cast %32 : vector<16x16x4xbf16> to vector<256x4xbf16>
    %c3 = arith.constant 3 : index
    %c0_23 = arith.constant 0 : index
    %c0_24 = arith.constant 0 : index
    %34 = vector.load %arg3[%c3, %c0_23, %c0_24] : memref<9x4x128xbf16, #tpu.memory_space<vmem>>, vector<1x4x128xbf16>
    %35 = vector.shape_cast %34 : vector<1x4x128xbf16> to vector<4x128xbf16>
    %cst_25 = arith.constant dense<0.000000e+00> : vector<256x128xf32>
    %36 = tpu.matmul %33, %35, %cst_25 {dimension_numbers = #tpu.dot_dimension_numbers<[1], [0], [0], [1], [0, 0, 1, 1], [], []>} : vector<256x4xbf16>, vector<4x128xbf16>, vector<256x128xf32> -> vector<256x128xf32>
    %37 = arith.addf %28, %36 : vector<256x128xf32>
    %c1_i32_26 = arith.constant 1 : i32
    %38 = arith.addi %0, %c1_i32_26 : i32
    %c0_27 = arith.constant 0 : index
    %39 = arith.index_cast %38 : i32 to index
    %c1_28 = arith.constant 1 : index
    %c0_29 = arith.constant 0 : index
    %40 = vector.load %arg2[%c0_27, %39, %c1_28, %c0_29] : memref<1x18x18x4xbf16, #tpu.memory_space<vmem>>, vector<1x16x16x4xbf16>
    %41 = vector.shape_cast %40 : vector<1x16x16x4xbf16> to vector<16x16x4xbf16>
    %42 = vector.shape_cast %41 : vector<16x16x4xbf16> to vector<256x4xbf16>
    %c4 = arith.constant 4 : index
    %c0_30 = arith.constant 0 : index
    %c0_31 = arith.constant 0 : index
    %43 = vector.load %arg3[%c4, %c0_30, %c0_31] : memref<9x4x128xbf16, #tpu.memory_space<vmem>>, vector<1x4x128xbf16>
    %44 = vector.shape_cast %43 : vector<1x4x128xbf16> to vector<4x128xbf16>
    %cst_32 = arith.constant dense<0.000000e+00> : vector<256x128xf32>
    %45 = tpu.matmul %42, %44, %cst_32 {dimension_numbers = #tpu.dot_dimension_numbers<[1], [0], [0], [1], [0, 0, 1, 1], [], []>} : vector<256x4xbf16>, vector<4x128xbf16>, vector<256x128xf32> -> vector<256x128xf32>
    %46 = arith.addf %37, %45 : vector<256x128xf32>
    %c1_i32_33 = arith.constant 1 : i32
    %47 = arith.addi %0, %c1_i32_33 : i32
    %c0_34 = arith.constant 0 : index
    %48 = arith.index_cast %47 : i32 to index
    %c2_35 = arith.constant 2 : index
    %c0_36 = arith.constant 0 : index
    %49 = vector.load %arg2[%c0_34, %48, %c2_35, %c0_36] : memref<1x18x18x4xbf16, #tpu.memory_space<vmem>>, vector<1x16x16x4xbf16>
    %50 = vector.shape_cast %49 : vector<1x16x16x4xbf16> to vector<16x16x4xbf16>
    %51 = vector.shape_cast %50 : vector<16x16x4xbf16> to vector<256x4xbf16>
    %c5 = arith.constant 5 : index
    %c0_37 = arith.constant 0 : index
    %c0_38 = arith.constant 0 : index
    %52 = vector.load %arg3[%c5, %c0_37, %c0_38] : memref<9x4x128xbf16, #tpu.memory_space<vmem>>, vector<1x4x128xbf16>
    %53 = vector.shape_cast %52 : vector<1x4x128xbf16> to vector<4x128xbf16>
    %cst_39 = arith.constant dense<0.000000e+00> : vector<256x128xf32>
    %54 = tpu.matmul %51, %53, %cst_39 {dimension_numbers = #tpu.dot_dimension_numbers<[1], [0], [0], [1], [0, 0, 1, 1], [], []>} : vector<256x4xbf16>, vector<4x128xbf16>, vector<256x128xf32> -> vector<256x128xf32>
    %55 = arith.addf %46, %54 : vector<256x128xf32>
    %c2_i32 = arith.constant 2 : i32
    %56 = arith.addi %0, %c2_i32 : i32
    %c0_40 = arith.constant 0 : index
    %57 = arith.index_cast %56 : i32 to index
    %c0_41 = arith.constant 0 : index
    %c0_42 = arith.constant 0 : index
    %58 = vector.load %arg2[%c0_40, %57, %c0_41, %c0_42] : memref<1x18x18x4xbf16, #tpu.memory_space<vmem>>, vector<1x16x16x4xbf16>
    %59 = vector.shape_cast %58 : vector<1x16x16x4xbf16> to vector<16x16x4xbf16>
    %60 = vector.shape_cast %59 : vector<16x16x4xbf16> to vector<256x4xbf16>
    %c6 = arith.constant 6 : index
    %c0_43 = arith.constant 0 : index
    %c0_44 = arith.constant 0 : index
    %61 = vector.load %arg3[%c6, %c0_43, %c0_44] : memref<9x4x128xbf16, #tpu.memory_space<vmem>>, vector<1x4x128xbf16>
    %62 = vector.shape_cast %61 : vector<1x4x128xbf16> to vector<4x128xbf16>
    %cst_45 = arith.constant dense<0.000000e+00> : vector<256x128xf32>
    %63 = tpu.matmul %60, %62, %cst_45 {dimension_numbers = #tpu.dot_dimension_numbers<[1], [0], [0], [1], [0, 0, 1, 1], [], []>} : vector<256x4xbf16>, vector<4x128xbf16>, vector<256x128xf32> -> vector<256x128xf32>
    %64 = arith.addf %55, %63 : vector<256x128xf32>
    %c2_i32_46 = arith.constant 2 : i32
    %65 = arith.addi %0, %c2_i32_46 : i32
    %c0_47 = arith.constant 0 : index
    %66 = arith.index_cast %65 : i32 to index
    %c1_48 = arith.constant 1 : index
    %c0_49 = arith.constant 0 : index
    %67 = vector.load %arg2[%c0_47, %66, %c1_48, %c0_49] : memref<1x18x18x4xbf16, #tpu.memory_space<vmem>>, vector<1x16x16x4xbf16>
    %68 = vector.shape_cast %67 : vector<1x16x16x4xbf16> to vector<16x16x4xbf16>
    %69 = vector.shape_cast %68 : vector<16x16x4xbf16> to vector<256x4xbf16>
    %c7 = arith.constant 7 : index
    %c0_50 = arith.constant 0 : index
    %c0_51 = arith.constant 0 : index
    %70 = vector.load %arg3[%c7, %c0_50, %c0_51] : memref<9x4x128xbf16, #tpu.memory_space<vmem>>, vector<1x4x128xbf16>
    %71 = vector.shape_cast %70 : vector<1x4x128xbf16> to vector<4x128xbf16>
    %cst_52 = arith.constant dense<0.000000e+00> : vector<256x128xf32>
    %72 = tpu.matmul %69, %71, %cst_52 {dimension_numbers = #tpu.dot_dimension_numbers<[1], [0], [0], [1], [0, 0, 1, 1], [], []>} : vector<256x4xbf16>, vector<4x128xbf16>, vector<256x128xf32> -> vector<256x128xf32>
    %73 = arith.addf %64, %72 : vector<256x128xf32>
    %c2_i32_53 = arith.constant 2 : i32
    %74 = arith.addi %0, %c2_i32_53 : i32
    %c0_54 = arith.constant 0 : index
    %75 = arith.index_cast %74 : i32 to index
    %c2_55 = arith.constant 2 : index
    %c0_56 = arith.constant 0 : index
    %76 = vector.load %arg2[%c0_54, %75, %c2_55, %c0_56] : memref<1x18x18x4xbf16, #tpu.memory_space<vmem>>, vector<1x16x16x4xbf16>
    %77 = vector.shape_cast %76 : vector<1x16x16x4xbf16> to vector<16x16x4xbf16>
    %78 = vector.shape_cast %77 : vector<16x16x4xbf16> to vector<256x4xbf16>
    %c8 = arith.constant 8 : index
    %c0_57 = arith.constant 0 : index
    %c0_58 = arith.constant 0 : index
    %79 = vector.load %arg3[%c8, %c0_57, %c0_58] : memref<9x4x128xbf16, #tpu.memory_space<vmem>>, vector<1x4x128xbf16>
    %80 = vector.shape_cast %79 : vector<1x4x128xbf16> to vector<4x128xbf16>
    %cst_59 = arith.constant dense<0.000000e+00> : vector<256x128xf32>
    %81 = tpu.matmul %78, %80, %cst_59 {dimension_numbers = #tpu.dot_dimension_numbers<[1], [0], [0], [1], [0, 0, 1, 1], [], []>} : vector<256x4xbf16>, vector<4x128xbf16>, vector<256x128xf32> -> vector<256x128xf32>
    %82 = arith.addf %73, %81 : vector<256x128xf32>
    %83 = arith.truncf %82 : vector<256x128xf32> to vector<256x128xbf16>
    %c0_60 = arith.constant 0 : index
    %c0_61 = arith.constant 0 : index
    %c0_62 = arith.constant 0 : index
    %84 = vector.load %arg4[%c0_60, %c0_61, %c0_62] : memref<1x256x128xbf16, #tpu.memory_space<vmem>>, vector<1x256x128xbf16>
    %85 = vector.shape_cast %84 : vector<1x256x128xbf16> to vector<256x128xbf16>
    %86 = vector.shape_cast %83 : vector<256x128xbf16> to vector<1x256x128xbf16>
    tpu.vector_store %arg4[%c0_60, %c0_61, %c0_62], %86 {strides = array<i32>} : memref<1x256x128xbf16, #tpu.memory_space<vmem>>, vector<1x256x128xbf16>,
    %cst_63 = arith.constant dense<0.000000e+00> : vector<128xf32>
    %87 = vector.multi_reduction <add>, %82, %cst_63 [0] : vector<256x128xf32> to vector<128xf32>
    %88 = vector.shape_cast %87 : vector<128xf32> to vector<1x128xf32>
    %89 = arith.mulf %82, %82 : vector<256x128xf32>
    %cst_64 = arith.constant dense<0.000000e+00> : vector<128xf32>
    %90 = vector.multi_reduction <add>, %89, %cst_64 [0] : vector<256x128xf32> to vector<128xf32>
    %91 = vector.shape_cast %90 : vector<128xf32> to vector<1x128xf32>
    %92 = vector.shape_cast %88 : vector<1x128xf32> to vector<1x128xf32>
    %93 = vector.broadcast %92 : vector<1x128xf32> to vector<8x128xf32>
    %c0_65 = arith.constant 0 : index
    %c0_66 = arith.constant 0 : index
    %c0_67 = arith.constant 0 : index
    %c0_68 = arith.constant 0 : index
    %94 = vector.load %arg5[%c0_65, %c0_66, %c0_67, %c0_68] : memref<1x1x8x128xf32, #tpu.memory_space<vmem>>, vector<1x1x8x128xf32>
    %95 = vector.shape_cast %94 : vector<1x1x8x128xf32> to vector<8x128xf32>
    %96 = vector.shape_cast %93 : vector<8x128xf32> to vector<1x1x8x128xf32>
    tpu.vector_store %arg5[%c0_65, %c0_66, %c0_67, %c0_68], %96 {strides = array<i32>} : memref<1x1x8x128xf32, #tpu.memory_space<vmem>>, vector<1x1x8x128xf32>,
    %97 = vector.shape_cast %91 : vector<1x128xf32> to vector<1x128xf32>
    %98 = vector.broadcast %97 : vector<1x128xf32> to vector<8x128xf32>
    %c0_69 = arith.constant 0 : index
    %c0_70 = arith.constant 0 : index
    %c0_71 = arith.constant 0 : index
    %c0_72 = arith.constant 0 : index
    %99 = vector.load %arg6[%c0_69, %c0_70, %c0_71, %c0_72] : memref<1x1x8x128xf32, #tpu.memory_space<vmem>>, vector<1x1x8x128xf32>
    %100 = vector.shape_cast %99 : vector<1x1x8x128xf32> to vector<8x128xf32>
    %101 = vector.shape_cast %98 : vector<8x128xf32> to vector<1x1x8x128xf32>
    tpu.vector_store %arg6[%c0_69, %c0_70, %c0_71, %c0_72], %101 {strides = array<i32>} : memref<1x1x8x128xf32, #tpu.memory_space<vmem>>, vector<1x1x8x128xf32>,
    return
  }
  func.func @transform_0(%arg0: i32, %arg1: i32) -> (i32, i32, i32, i32) {
    %c0_i32 = arith.constant 0 : i32
    %c0_i32_0 = arith.constant 0 : i32
    %c0_i32_1 = arith.constant 0 : i32
    %c0_i32_2 = arith.constant 0 : i32
    return %arg0, %c0_i32, %c0_i32_0, %c0_i32_1 : i32, i32, i32, i32
  }
  func.func @transform_1(%arg0: i32, %arg1: i32) -> (i32, i32, i32) {
    %c0_i32 = arith.constant 0 : i32
    %c0_i32_0 = arith.constant 0 : i32
    %c0_i32_1 = arith.constant 0 : i32
    %c0_i32_2 = arith.constant 0 : i32
    return %c0_i32, %c0_i32_0, %c0_i32_1 : i32, i32, i32
  }
  func.func @transform_2(%arg0: i32, %arg1: i32) -> (i32, i32, i32) {
    %c0_i32 = arith.constant 0 : i32
    %c0_i32_0 = arith.constant 0 : i32
    return %arg0, %arg1, %c0_i32 : i32, i32, i32
  }
  func.func @transform_3(%arg0: i32, %arg1: i32) -> (i32, i32, i32, i32) {
    %c0_i32 = arith.constant 0 : i32
    %c0_i32_0 = arith.constant 0 : i32
    %c0_i32_1 = arith.constant 0 : i32
    return %arg0, %arg1, %c0_i32, %c0_i32_0 : i32, i32, i32, i32
  }
  func.func @transform_4(%arg0: i32, %arg1: i32) -> (i32, i32, i32, i32) {
    %c0_i32 = arith.constant 0 : i32
    %c0_i32_0 = arith.constant 0 : i32
    %c0_i32_1 = arith.constant 0 : i32
    return %arg0, %arg1, %c0_i32, %c0_i32_0 : i32, i32, i32, i32
  }
}

</mosaic_0001>

<llo_original>
// kernel: tpu_custom_call.1
$region0: #{tpu_custom_call.1}
  #allocation0 [shape = 'u32[]', space=smem, size = 0x4, offset = 0x4, fixed_abs, tag = 'smem constant byte address 0x4 - core index']
  #allocation1 [shape = 'u32[144,128]{1,0:T(1,128)}', space=vmem, size = 0x12000, scoped, tag = 'internal scratch']
  %s0 = inlined_call_operand.vmem [shape: bf16[2,18,18,4], index: 0, kind: input, shape index: {}]
  %s1 = inlined_call_operand.vmem [shape: bf16[9,4,128], index: 1, kind: input, shape index: {}]
  %s2 = inlined_call_operand.hbm [shape: bf16[2,256,128], index: 2, kind: output, shape index: {0}]
  %s3 = inlined_call_operand.hbm [shape: f32[2,1,8,128], index: 3, kind: output, shape index: {1}]
  %s4 = inlined_call_operand.hbm [shape: f32[2,1,8,128], index: 4, kind: output, shape index: {2}]
  %5 = xla_tuple %s2, %s3, %s4
  %s6 = sld [smem:[#allocation0]]
  $region57: #{tpu_custom_call.1} parent=0
    _
  %s8 = ssub.s32 1, %s6
  %s9 = scalar_select 0, %s8, %s6
  $region1: #{tpu_custom_call.1} parent=0
    #allocation2 [shape = 'u8[131072]{0}', space=vmem, size = 0x20000, scoped, tag = 'output window, operand 0']
    #allocation3 [shape = 's32[2]{0}', space=sflag, size = 0x8, scoped, tag = 'scoped memory for tpu_custom_call.1']
    #allocation4 [shape = 'u8[8192]{0}', space=vmem, size = 0x2000, scoped, tag = 'output window, operand 1']
    #allocation5 [shape = 's32[2]{0}', space=sflag, size = 0x8, scoped, tag = 'scoped memory for tpu_custom_call.1']
    #allocation6 [shape = 'u8[8192]{0}', space=vmem, size = 0x2000, scoped, tag = 'output window, operand 2']
    %10 = vsyncpa [#allocation3], 0
    %s11 = scalar_lea.sflag [#allocation3], 1
    %12 = vsyncpa %s11, 0
    %13 = vsyncpa [#allocation5], 0
    %s14 = scalar_lea.sflag [#allocation5], 1
    %15 = vsyncpa %s14, 0
    loop: start=0, step=1, limit=4
    $region2: #{tpu_custom_call.1} parent=1 // loop_pre_header
      _
    $region3: #{tpu_custom_call.1} parent=1 // loop_header
      %s17 = sphi 0, %s21
      %p18 = scmp.ge.s32.totalorder %s17, 4
      %s24 = sphi 0, %s36
      %s25 = sphi 0, %s32
      %s26 = sphi 0, %s24
      %s27 = sphi 0, %s25
      %s28 = sphi 0, %s26
      %s29 = sphi 0, %s27
      %s39 = sphi 0, %s41
      %s42 = sphi 0, %s39
      %s43 = sphi 0, %s42
      %s59 = sphi 0, %s43
      %s63 = sphi 0, %s63
      %s65 = sphi 0, %s63
      %s66 = sphi 0, %s65
      %s80 = sphi 0, %s66
      %s88 = sphi 0, %s90
      %s91 = sphi 0, %s88
      %s92 = sphi 0, %s91
      %s108 = sphi 0, %s92
      %s116 = sphi 0, %s118
      %s119 = sphi 0, %s116
      %s120 = sphi 0, %s119
      %s136 = sphi 0, %s120
      %s144 = sphi 0, %s146
      %s147 = sphi 0, %s144
      %s148 = sphi 0, %s147
      %s164 = sphi 0, %s148
    $region4: #{tpu_custom_call.1} parent=1 // loop_header_branch
      %20 = sbr.rel (%p18) target = $region8
    $region5: #{tpu_custom_call.1} parent=1 // loop_body
      %s22 = ssub.s32 %s17, 1
      %s23 = ssub.s32 %s17, 2
      %s30 = sadd.s32 1, %s25
      %p31 = scmp.ge.s32.totalorder %s30, 1
      %s32 = scalar_select %p31, 0, %s30
      %s33 = sadd.s32 1, %s24
      %s34 = scalar_select %p31, %s33, %s24
      %p35 = scmp.ge.s32.totalorder %s34, 2
      %s36 = scalar_select %p35, 0, %s34
      %s37 = ssub.s32 %s24, %s36
      %p38 = scmp.eq.s32.totalorder %s37, 0
      %s40 = sadd.s32 %s39, 1
      %s41 = scalar_select %p38, %s39, %s40
      %p44 = pneg %p38
      %p45 = scmp.eq.s32.totalorder %s17, 1
      %p46 = por %p44, %p45
      %p47 = scmp.ne.s32.totalorder %s39, %s42
      %p48 = scmp.eq.s32.totalorder %s17, 0
      %p49 = por %p47, %p48
      %p50 = scmp.ne.s32.totalorder %s39, %s42
      %p51 = scmp.eq.s32.totalorder %s22, 1
      %p52 = por %p50, %p51
      %p53 = scmp.ne.s32.totalorder %s42, %s43
      %p54 = scmp.eq.s32.totalorder %s22, 0
      %p55 = por %p53, %p54
      %p56 = scmp.ne.s32.totalorder %s42, %s43
      %p57 = scmp.eq.s32.totalorder %s23, 1
      %p58 = por %p56, %p57
      %p60 = scmp.ne.s32.totalorder %s43, %s59
      %p61 = scmp.eq.s32.totalorder %s23, 0
      %p62 = por %p60, %p61
      %s64 = sadd.s32 %s63, 1
      %p67 = scmp.eq.s32.totalorder %s17, 1
      %p68 = scmp.ne.s32.totalorder %s63, %s65
      %p69 = scmp.eq.s32.totalorder %s17, 0
      %p70 = por %p68, %p69
      %p71 = scmp.ne.s32.totalorder %s63, %s65
      %p72 = scmp.eq.s32.totalorder %s22, 1
      %p73 = por %p71, %p72
      %p74 = scmp.ne.s32.totalorder %s65, %s66
      %p75 = scmp.eq.s32.totalorder %s22, 0
      %p76 = por %p74, %p75
      %p77 = scmp.ne.s32.totalorder %s65, %s66
      %p78 = scmp.eq.s32.totalorder %s23, 1
      %p79 = por %p77, %p78
      %p81 = scmp.ne.s32.totalorder %s66, %s80
      %p82 = scmp.eq.s32.totalorder %s23, 0
      %p83 = por %p81, %p82
      %s84 = ssub.s32 %s24, %s36
      %s85 = ssub.s32 %s25, %s32
      %s86 = sor.u32 %s84, %s85
      %p87 = scmp.eq.s32.totalorder %s86, 0
      %s89 = sadd.s32 %s88, 1
      %s90 = scalar_select %p87, %s88, %s89
      %p93 = pneg %p87
      %p94 = scmp.eq.s32.totalorder %s17, 1
      %p95 = por %p93, %p94
      %p96 = scmp.ne.s32.totalorder %s88, %s91
      %p97 = scmp.eq.s32.totalorder %s17, 0
      %p98 = por %p96, %p97
      %p99 = scmp.ne.s32.totalorder %s88, %s91
      %p100 = scmp.eq.s32.totalorder %s22, 1
      %p101 = por %p99, %p100
      %p102 = scmp.ne.s32.totalorder %s91, %s92
      %p103 = scmp.eq.s32.totalorder %s22, 0
      %p104 = por %p102, %p103
      %p105 = scmp.ne.s32.totalorder %s91, %s92
      %p106 = scmp.eq.s32.totalorder %s23, 1
      %p107 = por %p105, %p106
      %p109 = scmp.ne.s32.totalorder %s92, %s108
      %p110 = scmp.eq.s32.totalorder %s23, 0
      %p111 = por %p109, %p110
      %s112 = ssub.s32 %s24, %s36
      %s113 = ssub.s32 %s25, %s32
      %s114 = sor.u32 %s112, %s113
      %p115 = scmp.eq.s32.totalorder %s114, 0
      %s117 = sadd.s32 %s116, 1
      %s118 = scalar_select %p115, %s116, %s117
      %p121 = pneg %p115
      %p122 = scmp.eq.s32.totalorder %s17, 1
      %p123 = por %p121, %p122
      %p124 = scmp.ne.s32.totalorder %s116, %s119
      %p125 = scmp.eq.s32.totalorder %s17, 0
      %p126 = por %p124, %p125
      %p127 = scmp.ne.s32.totalorder %s116, %s119
      %p128 = scmp.eq.s32.totalorder %s22, 1
      %p129 = por %p127, %p128
      %p130 = scmp.ne.s32.totalorder %s119, %s120
      %p131 = scmp.eq.s32.totalorder %s22, 0
      %p132 = por %p130, %p131
      %p133 = scmp.ne.s32.totalorder %s119, %s120
      %p134 = scmp.eq.s32.totalorder %s23, 1
      %p135 = por %p133, %p134
      %p137 = scmp.ne.s32.totalorder %s120, %s136
      %p138 = scmp.eq.s32.totalorder %s23, 0
      %p139 = por %p137, %p138
      %s140 = ssub.s32 %s24, %s36
      %s141 = ssub.s32 %s25, %s32
      %s142 = sor.u32 %s140, %s141
      %p143 = scmp.eq.s32.totalorder %s142, 0
      %s145 = sadd.s32 %s144, 1
      %s146 = scalar_select %p143, %s144, %s145
      %p149 = pneg %p143
      %p150 = scmp.eq.s32.totalorder %s17, 1
      %p151 = por %p149, %p150
      %p152 = scmp.ne.s32.totalorder %s144, %s147
      %p153 = scmp.eq.s32.totalorder %s17, 0
      %p154 = por %p152, %p153
      %p155 = scmp.ne.s32.totalorder %s144, %s147
      %p156 = scmp.eq.s32.totalorder %s22, 1
      %p157 = por %p155, %p156
      %p158 = scmp.ne.s32.totalorder %s147, %s148
      %p159 = scmp.eq.s32.totalorder %s22, 0
      %p160 = por %p158, %p159
      %p161 = scmp.ne.s32.totalorder %s147, %s148
      %p162 = scmp.eq.s32.totalorder %s23, 1
      %p163 = por %p161, %p162
      %p165 = scmp.ne.s32.totalorder %s148, %s164
      %p166 = scmp.eq.s32.totalorder %s23, 0
      %p167 = por %p165, %p166
      %p168 = scmp.le.s32.totalorder 1, %s17
      %p169 = scmp.lt.s32.totalorder %s17, 3
      %p170 = pnand %p168, %p169
      %p171 = pneg %p170
      // Predicated region
      $region9: #{tpu_custom_call.1} parent=5 // pred_check
        _
      $region10: #{tpu_custom_call.1} parent=5 // pred_check_branch
        %173 = sbr.rel (%p170) target = $region12
      $region11: #{tpu_custom_call.1} parent=5 // pred_region
        %s174 = ssub.s32 %s17, 1
        // Predicated region
        $region13: #{tpu_custom_call.1} parent=11 // pred_check
          %p175 = pneg %p76
        $region14: #{tpu_custom_call.1} parent=11 // pred_check_branch
          %177 = sbr.rel (%p175) target = $region16
        $region15: #{tpu_custom_call.1} parent=11 // pred_region
          _
        $region16: #{tpu_custom_call.1} parent=11 // pred_fallthru
          _
      $region12: #{tpu_custom_call.1} parent=5 // pred_fallthru
        _
      %p178 = scmp.lt.s32.totalorder %s17, 2
      // Predicated region
      $region17: #{tpu_custom_call.1} parent=5 // pred_check
        %p179 = pneg %p178
      $region18: #{tpu_custom_call.1} parent=5 // pred_check_branch
        %181 = sbr.rel (%p179) target = $region20
      $region19: #{tpu_custom_call.1} parent=5 // pred_region
        // Predicated region
        $region21: #{tpu_custom_call.1} parent=19 // pred_check
          %p182 = pneg %p49
        $region22: #{tpu_custom_call.1} parent=19 // pred_check_branch
          %184 = sbr.rel (%p182) target = $region24
        $region23: #{tpu_custom_call.1} parent=19 // pred_region
          %p185 = scmp.lt.s32.totalorder %s24, 1
          %s186 = scalar_select %p185, %s24, 1
          %s187 = smul.addr %s186, 54
          %s188 = smul.addr %s187, 4
          %s189 = scalar_lea.vmem %s0, %s188
        $region24: #{tpu_custom_call.1} parent=19 // pred_fallthru
          _
      $region20: #{tpu_custom_call.1} parent=5 // pred_fallthru
        _
      %p190 = scmp.le.s32.totalorder 1, %s17
      %p191 = scmp.lt.s32.totalorder %s17, 3
      %p192 = pnand %p190, %p191
      %p193 = pneg %p192
      // Predicated region
      $region25: #{tpu_custom_call.1} parent=5 // pred_check
        _
      $region26: #{tpu_custom_call.1} parent=5 // pred_check_branch
        %195 = sbr.rel (%p192) target = $region28
      $region27: #{tpu_custom_call.1} parent=5 // pred_region
        %s196 = ssub.s32 %s17, 1
        %p197 = scmp.lt.s32.totalorder %s26, 1
        %s198 = scalar_select %p197, %s26, 1
        %s199 = smul.addr %s198, 54
        %s200 = smul.addr %s199, 4
        %s201 = scalar_lea.vmem %s0, %s200
        %p202 = pneg %p55
        %p203 = pneg %p52
        %p204 = pneg %p76
        %p205 = pneg %p73
        %p206 = pneg %p104
        %p207 = pneg %p101
        %s208 = sand.u32 %s91, 1
        %s209 = scalar_lea.sflag [#allocation3], %s208
        %s210 = sand.u32 %s91, 1
        %s211 = smul.addr %s210, 128
        %s212 = scalar_lea.vmem [#allocation2], %s211
        %p213 = pneg %p132
        %p214 = pneg %p129
        %s215 = sand.u32 %s22, 1
        %s216 = scalar_lea.sflag [#allocation5], %s215
        %s217 = sand.u32 %s119, 1
        %s218 = smul.addr %s217, 8
        %s219 = scalar_lea.vmem [#allocation4], %s218
        %p220 = pneg %p160
        %p221 = pneg %p157
        %s222 = sand.u32 %s22, 1
        %s223 = scalar_lea.sflag [#allocation5], %s222
        %s224 = sand.u32 %s147, 1
        %s225 = smul.addr %s224, 8
        %s226 = scalar_lea.vmem [#allocation6], %s225
        %p227 = scmp.lt.s32.totalorder %s26, 1
        %s228 = scalar_select %p227, %s26, 1
        %s229 = smul.addr %s228, 54
        %s230 = smul.addr %s229, 4
        %s231 = scalar_lea.vmem %s0, %s230
        %s232 = smul.u32 32, %s27
        %s234 = smul.u32 %s27, 16
        %s235 = smul.u32 %s234, 3
        %s236 = smul.addr %s235, 4
        %s237 = scalar_lea.vmem %s231, %s236
        %v238 = vld [vmem:[%s237] sm:$0xf]
        %v239 = vld [vmem:[%s237 + $0x4] sm:$0xf]
        %v240 = vld [vmem:[%s237 + $0xc] sm:$0xf]
        %v241 = vld [vmem:[%s237 + $0x10] sm:$0xf]
        %v242 = vld [vmem:[%s237 + $0x18] sm:$0xf]
        %v243 = vld [vmem:[%s237 + $0x1c] sm:$0xf]
        %v244 = vld [vmem:[%s237 + $0x24] sm:$0xf]
        %v245 = vld [vmem:[%s237 + $0x28] sm:$0xf]
        %v246 = vld [vmem:[%s237 + $0x30] sm:$0xf]
        %v247 = vld [vmem:[%s237 + $0x34] sm:$0xf]
        %v248 = vld [vmem:[%s237 + $0x3c] sm:$0xf]
        %v249 = vld [vmem:[%s237 + $0x40] sm:$0xf]
        %v250 = vld [vmem:[%s237 + $0x48] sm:$0xf]
        %v251 = vld [vmem:[%s237 + $0x4c] sm:$0xf]
        %v252 = vld [vmem:[%s237 + $0x54] sm:$0xf]
        %v253 = vld [vmem:[%s237 + $0x58] sm:$0xf]
        %v254 = vld [vmem:[%s237 + $0x60] sm:$0xf]
        %v255 = vld [vmem:[%s237 + $0x64] sm:$0xf]
        %v256 = vld [vmem:[%s237 + $0x6c] sm:$0xf]
        %v257 = vld [vmem:[%s237 + $0x70] sm:$0xf]
        %v258 = vld [vmem:[%s237 + $0x78] sm:$0xf]
        %v259 = vld [vmem:[%s237 + $0x7c] sm:$0xf]
        %v260 = vld [vmem:[%s237 + $0x84] sm:$0xf]
        %v261 = vld [vmem:[%s237 + $0x88] sm:$0xf]
        %v262 = vld [vmem:[%s237 + $0x90] sm:$0xf]
        %v263 = vld [vmem:[%s237 + $0x94] sm:$0xf]
        %v264 = vld [vmem:[%s237 + $0x9c] sm:$0xf]
        %v265 = vld [vmem:[%s237 + $0xa0] sm:$0xf]
        %v266 = vld [vmem:[%s237 + $0xa8] sm:$0xf]
        %v267 = vld [vmem:[%s237 + $0xac] sm:$0xf]
        %v268 = vld [vmem:[%s237 + $0xb4] sm:$0xf]
        %v269 = vld [vmem:[%s237 + $0xb8] sm:$0xf]
        %v270 = vld [vmem:[%s1] sm:$0x3]
        %v271 = vld [vmem:[%s237 + $0x8] sm:$0x1]
        %v272 = vld [vmem:[%s237 + $0x14] sm:$0x1]
        %v273 = vld [vmem:[%s237 + $0x20] sm:$0x1]
        %v274 = vld [vmem:[%s237 + $0x2c] sm:$0x1]
        %v275 = vld [vmem:[%s237 + $0x38] sm:$0x1]
        %v276 = vld [vmem:[%s237 + $0x44] sm:$0x1]
        %v277 = vld [vmem:[%s237 + $0x50] sm:$0x1]
        %v278 = vld [vmem:[%s237 + $0x5c] sm:$0x1]
        %v279 = vld [vmem:[%s237 + $0x68] sm:$0x1]
        %v280 = vld [vmem:[%s237 + $0x74] sm:$0x1]
        %v281 = vld [vmem:[%s237 + $0x80] sm:$0x1]
        %v282 = vld [vmem:[%s237 + $0x8c] sm:$0x1]
        %v283 = vld [vmem:[%s237 + $0x98] sm:$0x1]
        %v284 = vld [vmem:[%s237 + $0xa4] sm:$0x1]
        %v285 = vld [vmem:[%s237 + $0xb0] sm:$0x1]
        %v286 = vld [vmem:[%s237 + $0xbc] sm:$0x1]
        %vm287 = vsmask.f32 3328
        %vm288 = vsmask.f32 7440
        %vm289 = vmor %vm287, %vm288
        %v291 = vshrl.u32 %v238, 16
        %v293 = vrot.slane %v291, 4
        %v294 = vshll.u32 %v238, 16
        %v296 = vrot.slane %v294, 5
        %v297 = vor.u32 %v293, %v296
        %v298 = vrot.slane %v297, 4
        %v300 = vshll.u32 %v239, 16
        %v302 = vrot.slane %v300, 5
        %v303 = vsel %vm289, %v298, %v302
        %v304 = vshrl.u32 %v239, 16
        %v306 = vrot.slane %v304, 4
        %v307 = vor.u32 %v306, %v302
        %v308 = vrot.slane %v307, 4
        %v310 = vshll.u32 %v271, 16
        %v312 = vrot.slane %v310, 5
        %v313 = vsel %vm289, %v308, %v312
        %v315 = vshrl.u32 %v240, 16
        %v317 = vrot.slane %v315, 4
        %v318 = vshll.u32 %v240, 16
        %v320 = vrot.slane %v318, 5
        %v321 = vor.u32 %v317, %v320
        %v322 = vrot.slane %v321, 4
        %v324 = vshll.u32 %v241, 16
        %v326 = vrot.slane %v324, 5
        %v327 = vsel %vm289, %v322, %v326
        %v328 = vshrl.u32 %v241, 16
        %v330 = vrot.slane %v328, 4
        %v331 = vor.u32 %v330, %v326
        %v332 = vrot.slane %v331, 4
        %v334 = vshll.u32 %v272, 16
        %v336 = vrot.slane %v334, 5
        %v337 = vsel %vm289, %v332, %v336
        %v339 = vshrl.u32 %v242, 16
        %v341 = vrot.slane %v339, 4
        %v342 = vshll.u32 %v242, 16
        %v344 = vrot.slane %v342, 5
        %v345 = vor.u32 %v341, %v344
        %v346 = vrot.slane %v345, 4
        %v348 = vshll.u32 %v243, 16
        %v350 = vrot.slane %v348, 5
        %v351 = vsel %vm289, %v346, %v350
        %v352 = vshrl.u32 %v243, 16
        %v354 = vrot.slane %v352, 4
        %v355 = vor.u32 %v354, %v350
        %v356 = vrot.slane %v355, 4
        %v358 = vshll.u32 %v273, 16
        %v360 = vrot.slane %v358, 5
        %v361 = vsel %vm289, %v356, %v360
        %v363 = vshrl.u32 %v244, 16
        %v365 = vrot.slane %v363, 4
        %v366 = vshll.u32 %v244, 16
        %v368 = vrot.slane %v366, 5
        %v369 = vor.u32 %v365, %v368
        %v370 = vrot.slane %v369, 4
        %v372 = vshll.u32 %v245, 16
        %v374 = vrot.slane %v372, 5
        %v375 = vsel %vm289, %v370, %v374
        %v376 = vshrl.u32 %v245, 16
        %v378 = vrot.slane %v376, 4
        %v379 = vor.u32 %v378, %v374
        %v380 = vrot.slane %v379, 4
        %v382 = vshll.u32 %v274, 16
        %v384 = vrot.slane %v382, 5
        %v385 = vsel %vm289, %v380, %v384
        %v387 = vshrl.u32 %v246, 16
        %v389 = vrot.slane %v387, 4
        %v390 = vshll.u32 %v246, 16
        %v392 = vrot.slane %v390, 5
        %v393 = vor.u32 %v389, %v392
        %v394 = vrot.slane %v393, 4
        %v396 = vshll.u32 %v247, 16
        %v398 = vrot.slane %v396, 5
        %v399 = vsel %vm289, %v394, %v398
        %v400 = vshrl.u32 %v247, 16
        %v402 = vrot.slane %v400, 4
        %v403 = vor.u32 %v402, %v398
        %v404 = vrot.slane %v403, 4
        %v406 = vshll.u32 %v275, 16
        %v408 = vrot.slane %v406, 5
        %v409 = vsel %vm289, %v404, %v408
        %v411 = vshrl.u32 %v248, 16
        %v413 = vrot.slane %v411, 4
        %v414 = vshll.u32 %v248, 16
        %v416 = vrot.slane %v414, 5
        %v417 = vor.u32 %v413, %v416
        %v418 = vrot.slane %v417, 4
        %v420 = vshll.u32 %v249, 16
        %v422 = vrot.slane %v420, 5
        %v423 = vsel %vm289, %v418, %v422
        %v424 = vshrl.u32 %v249, 16
        %v426 = vrot.slane %v424, 4
        %v427 = vor.u32 %v426, %v422
        %v428 = vrot.slane %v427, 4
        %v430 = vshll.u32 %v276, 16
        %v432 = vrot.slane %v430, 5
        %v433 = vsel %vm289, %v428, %v432
        %v435 = vshrl.u32 %v250, 16
        %v437 = vrot.slane %v435, 4
        %v438 = vshll.u32 %v250, 16
        %v440 = vrot.slane %v438, 5
        %v441 = vor.u32 %v437, %v440
        %v442 = vrot.slane %v441, 4
        %v444 = vshll.u32 %v251, 16
        %v446 = vrot.slane %v444, 5
        %v447 = vsel %vm289, %v442, %v446
        %v448 = vshrl.u32 %v251, 16
        %v450 = vrot.slane %v448, 4
        %v451 = vor.u32 %v450, %v446
        %v452 = vrot.slane %v451, 4
        %v454 = vshll.u32 %v277, 16
        %v456 = vrot.slane %v454, 5
        %v457 = vsel %vm289, %v452, %v456
        %v459 = vshrl.u32 %v252, 16
        %v461 = vrot.slane %v459, 4
        %v462 = vshll.u32 %v252, 16
        %v464 = vrot.slane %v462, 5
        %v465 = vor.u32 %v461, %v464
        %v466 = vrot.slane %v465, 4
        %v468 = vshll.u32 %v253, 16
        %v470 = vrot.slane %v468, 5
        %v471 = vsel %vm289, %v466, %v470
        %v472 = vshrl.u32 %v253, 16
        %v474 = vrot.slane %v472, 4
        %v475 = vor.u32 %v474, %v470
        %v476 = vrot.slane %v475, 4
        %v478 = vshll.u32 %v278, 16
        %v480 = vrot.slane %v478, 5
        %v481 = vsel %vm289, %v476, %v480
        %v483 = vshrl.u32 %v254, 16
        %v485 = vrot.slane %v483, 4
        %v486 = vshll.u32 %v254, 16
        %v488 = vrot.slane %v486, 5
        %v489 = vor.u32 %v485, %v488
        %v490 = vrot.slane %v489, 4
        %v492 = vshll.u32 %v255, 16
        %v494 = vrot.slane %v492, 5
        %v495 = vsel %vm289, %v490, %v494
        %v496 = vshrl.u32 %v255, 16
        %v498 = vrot.slane %v496, 4
        %v499 = vor.u32 %v498, %v494
        %v500 = vrot.slane %v499, 4
        %v502 = vshll.u32 %v279, 16
        %v504 = vrot.slane %v502, 5
        %v505 = vsel %vm289, %v500, %v504
        %v507 = vshrl.u32 %v256, 16
        %v509 = vrot.slane %v507, 4
        %v510 = vshll.u32 %v256, 16
        %v512 = vrot.slane %v510, 5
        %v513 = vor.u32 %v509, %v512
        %v514 = vrot.slane %v513, 4
        %v516 = vshll.u32 %v257, 16
        %v518 = vrot.slane %v516, 5
        %v519 = vsel %vm289, %v514, %v518
        %v520 = vshrl.u32 %v257, 16
        %v522 = vrot.slane %v520, 4
        %v523 = vor.u32 %v522, %v518
        %v524 = vrot.slane %v523, 4
        %v526 = vshll.u32 %v280, 16
        %v528 = vrot.slane %v526, 5
        %v529 = vsel %vm289, %v524, %v528
        %v531 = vshrl.u32 %v258, 16
        %v533 = vrot.slane %v531, 4
        %v534 = vshll.u32 %v258, 16
        %v536 = vrot.slane %v534, 5
        %v537 = vor.u32 %v533, %v536
        %v538 = vrot.slane %v537, 4
        %v540 = vshll.u32 %v259, 16
        %v542 = vrot.slane %v540, 5
        %v543 = vsel %vm289, %v538, %v542
        %v544 = vshrl.u32 %v259, 16
        %v546 = vrot.slane %v544, 4
        %v547 = vor.u32 %v546, %v542
        %v548 = vrot.slane %v547, 4
        %v550 = vshll.u32 %v281, 16
        %v552 = vrot.slane %v550, 5
        %v553 = vsel %vm289, %v548, %v552
        %v555 = vshrl.u32 %v260, 16
        %v557 = vrot.slane %v555, 4
        %v558 = vshll.u32 %v260, 16
        %v560 = vrot.slane %v558, 5
        %v561 = vor.u32 %v557, %v560
        %v562 = vrot.slane %v561, 4
        %v564 = vshll.u32 %v261, 16
        %v566 = vrot.slane %v564, 5
        %v567 = vsel %vm289, %v562, %v566
        %v568 = vshrl.u32 %v261, 16
        %v570 = vrot.slane %v568, 4
        %v571 = vor.u32 %v570, %v566
        %v572 = vrot.slane %v571, 4
        %v574 = vshll.u32 %v282, 16
        %v576 = vrot.slane %v574, 5
        %v577 = vsel %vm289, %v572, %v576
        %v579 = vshrl.u32 %v262, 16
        %v581 = vrot.slane %v579, 4
        %v582 = vshll.u32 %v262, 16
        %v584 = vrot.slane %v582, 5
        %v585 = vor.u32 %v581, %v584
        %v586 = vrot.slane %v585, 4
        %v588 = vshll.u32 %v263, 16
        %v590 = vrot.slane %v588, 5
        %v591 = vsel %vm289, %v586, %v590
        %v592 = vshrl.u32 %v263, 16
        %v594 = vrot.slane %v592, 4
        %v595 = vor.u32 %v594, %v590
        %v596 = vrot.slane %v595, 4
        %v598 = vshll.u32 %v283, 16
        %v600 = vrot.slane %v598, 5
        %v601 = vsel %vm289, %v596, %v600
        %v603 = vshrl.u32 %v264, 16
        %v605 = vrot.slane %v603, 4
        %v606 = vshll.u32 %v264, 16
        %v608 = vrot.slane %v606, 5
        %v609 = vor.u32 %v605, %v608
        %v610 = vrot.slane %v609, 4
        %v612 = vshll.u32 %v265, 16
        %v614 = vrot.slane %v612, 5
        %v615 = vsel %vm289, %v610, %v614
        %v616 = vshrl.u32 %v265, 16
        %v618 = vrot.slane %v616, 4
        %v619 = vor.u32 %v618, %v614
        %v620 = vrot.slane %v619, 4
        %v622 = vshll.u32 %v284, 16
        %v624 = vrot.slane %v622, 5
        %v625 = vsel %vm289, %v620, %v624
        %v627 = vshrl.u32 %v266, 16
        %v629 = vrot.slane %v627, 4
        %v630 = vshll.u32 %v266, 16
        %v632 = vrot.slane %v630, 5
        %v633 = vor.u32 %v629, %v632
        %v634 = vrot.slane %v633, 4
        %v636 = vshll.u32 %v267, 16
        %v638 = vrot.slane %v636, 5
        %v639 = vsel %vm289, %v634, %v638
        %v640 = vshrl.u32 %v267, 16
        %v642 = vrot.slane %v640, 4
        %v643 = vor.u32 %v642, %v638
        %v644 = vrot.slane %v643, 4
        %v646 = vshll.u32 %v285, 16
        %v648 = vrot.slane %v646, 5
        %v649 = vsel %vm289, %v644, %v648
        %v651 = vshrl.u32 %v268, 16
        %v653 = vrot.slane %v651, 4
        %v654 = vshll.u32 %v268, 16
        %v656 = vrot.slane %v654, 5
        %v657 = vor.u32 %v653, %v656
        %v658 = vrot.slane %v657, 4
        %v660 = vshll.u32 %v269, 16
        %v662 = vrot.slane %v660, 5
        %v663 = vsel %vm289, %v658, %v662
        %v664 = vshrl.u32 %v269, 16
        %v666 = vrot.slane %v664, 4
        %v667 = vor.u32 %v666, %v662
        %v668 = vrot.slane %v667, 4
        %v670 = vshll.u32 %v286, 16
        %v672 = vrot.slane %v670, 5
        %v673 = vsel %vm289, %v668, %v672
        %s674 = scalar_lea.vmem %s1, 2
        %v675 = vld [vmem:[%s674] sm:$0x3]
        %v676 = vunpack.c.l.b16 %v303
        %v677 = vunpack.c.l.b16 %v313
        %v678 = vunpack.c.l.b16 %v327
        %v679 = vunpack.c.l.b16 %v337
        %v680 = vunpack.c.l.b16 %v351
        %v681 = vunpack.c.l.b16 %v361
        %v682 = vunpack.c.l.b16 %v375
        %v683 = vunpack.c.l.b16 %v385
        %v684 = vunpack.c.l.b16 %v399
        %v685 = vunpack.c.l.b16 %v409
        %v686 = vunpack.c.l.b16 %v423
        %v687 = vunpack.c.l.b16 %v433
        %v688 = vunpack.c.l.b16 %v447
        %v689 = vunpack.c.l.b16 %v457
        %v690 = vunpack.c.l.b16 %v471
        %v691 = vunpack.c.l.b16 %v481
        %v692 = vunpack.c.l.b16 %v495
        %v693 = vunpack.c.l.b16 %v505
        %v694 = vunpack.c.l.b16 %v519
        %v695 = vunpack.c.l.b16 %v529
        %v696 = vunpack.c.l.b16 %v543
        %v697 = vunpack.c.l.b16 %v553
        %v698 = vunpack.c.l.b16 %v567
        %v699 = vunpack.c.l.b16 %v577
        %v700 = vunpack.c.l.b16 %v591
        %v701 = vunpack.c.l.b16 %v601
        %v702 = vunpack.c.l.b16 %v615
        %v703 = vunpack.c.l.b16 %v625
        %v704 = vunpack.c.l.b16 %v639
        %v705 = vunpack.c.l.b16 %v649
        %v706 = vunpack.c.l.b16 %v663
        %v707 = vunpack.c.l.b16 %v673
        %v708 = vpack.c.b16 %v677, %v676
        %v709 = vpack.c.b16 %v679, %v678
        %v710 = vpack.c.b16 %v681, %v680
        %v711 = vpack.c.b16 %v683, %v682
        %v712 = vpack.c.b16 %v685, %v684
        %v713 = vpack.c.b16 %v687, %v686
        %v714 = vpack.c.b16 %v689, %v688
        %v715 = vpack.c.b16 %v691, %v690
        %v716 = vpack.c.b16 %v693, %v692
        %v717 = vpack.c.b16 %v695, %v694
        %v718 = vpack.c.b16 %v697, %v696
        %v719 = vpack.c.b16 %v699, %v698
        %v720 = vpack.c.b16 %v701, %v700
        %v721 = vpack.c.b16 %v703, %v702
        %v722 = vpack.c.b16 %v705, %v704
        %v723 = vpack.c.b16 %v707, %v706
        %vm724 = vcmask 31744
        %v726 = vsel %vm724, %v708, 0
        %v729 = vsel %vm724, %v709, 0
        %v732 = vsel %vm724, %v710, 0
        %v735 = vsel %vm724, %v711, 0
        %v738 = vsel %vm724, %v712, 0
        %v741 = vsel %vm724, %v713, 0
        %v744 = vsel %vm724, %v714, 0
        %v747 = vsel %vm724, %v715, 0
        %v750 = vsel %vm724, %v716, 0
        %v753 = vsel %vm724, %v717, 0
        %v756 = vsel %vm724, %v718, 0
        %v759 = vsel %vm724, %v719, 0
        %v762 = vsel %vm724, %v720, 0
        %v765 = vsel %vm724, %v721, 0
        %v768 = vsel %vm724, %v722, 0
        %v771 = vsel %vm724, %v723, 0
        %vm773 = vcmask 1041408
        %v775 = vsel %vm773, %v675, 0
        %777 = vmatprep.subr.bf16.mxu0 0
        %778 = vmatpush1.bf16.msra.mxu0 %v775
        %779 = vmatprep.subr.bf16.mxu0 0
        %780 = vmatpush1.bf16.msra.mxu0 0
        %781 = vmatprep.subr.bf16.mxu0 0
        %782 = vmatpush1.bf16.msra.mxu0 0
        %783 = vmatprep.subr.bf16.mxu0 0
        %784 = vmatpush1.bf16.msra.mxu0 0
        %785 = vmatprep.subr.bf16.mxu0 0
        %786 = vmatpush1.bf16.msra.mxu0 0
        %787 = vmatprep.subr.bf16.mxu0 0
        %788 = vmatpush1.bf16.msra.mxu0 0
        %789 = vmatprep.subr.bf16.mxu0 0
        %790 = vmatpush1.bf16.msra.mxu0 0
        %791 = vmatprep.subr.bf16.mxu0 0
        %792 = vmatpush1.bf16.msra.mxu0 0
        %793 = vmatprep.subr.bf16.mxu0 0
        %794 = vmatpush1.bf16.msra.mxu0 0
        %795 = vmatprep.subr.bf16.mxu0 0
        %796 = vmatpush1.bf16.msra.mxu0 0
        %797 = vmatprep.subr.bf16.mxu0 0
        %798 = vmatpush1.bf16.msra.mxu0 0
        %799 = vmatprep.subr.bf16.mxu0 0
        %800 = vmatpush1.bf16.msra.mxu0 0
        %801 = vmatprep.subr.bf16.mxu0 0
        %802 = vmatpush1.bf16.msra.mxu0 0
        %803 = vmatprep.subr.bf16.mxu0 0
        %804 = vmatpush1.bf16.msra.mxu0 0
        %805 = vmatprep.subr.bf16.mxu0 0
        %806 = vmatpush1.bf16.msra.mxu0 0
        %807 = vmatprep.subr.bf16.mxu0 0
        %808 = vmatpush1.bf16.msra.mxu0 0
        %809 = vmatprep.mubr.bf16.mxu0 0
        %810 = vmatmul.mubr.bf16.gmra.mrb[0].mxu0 %v726
        %v811 = vpop.f32.mrb[0].mxu0
        %v812 = vadd.f32 0.0, %v811
        %v813 = vpop.f32.mrb[0].mxu0
        %v814 = vpop.f32.mrb[0].mxu0
        %v815 = vadd.f32 0.0, %v814
        %v816 = vpop.f32.mrb[0].mxu0
        %817 = vmatprep.mubr.bf16.mxu0 0
        %818 = vmatmul.mubr.bf16.gmra.mrb[0].mxu0 %v729
        %v819 = vpop.f32.mrb[0].mxu0
        %v820 = vadd.f32 0.0, %v819
        %v821 = vpop.f32.mrb[0].mxu0
        %v822 = vpop.f32.mrb[0].mxu0
        %v823 = vadd.f32 0.0, %v822
        %v824 = vpop.f32.mrb[0].mxu0
        %825 = vmatprep.mubr.bf16.mxu0 0
        %826 = vmatmul.mubr.bf16.gmra.mrb[0].mxu0 %v732
        %v827 = vpop.f32.mrb[0].mxu0
        %v828 = vadd.f32 0.0, %v827
        %v829 = vpop.f32.mrb[0].mxu0
        %v830 = vpop.f32.mrb[0].mxu0
        %v831 = vadd.f32 0.0, %v830
        %v832 = vpop.f32.mrb[0].mxu0
        %833 = vmatprep.mubr.bf16.mxu0 0
        %834 = vmatmul.mubr.bf16.gmra.mrb[0].mxu0 %v735
        %v835 = vpop.f32.mrb[0].mxu0
        %v836 = vadd.f32 0.0, %v835
        %v837 = vpop.f32.mrb[0].mxu0
        %v838 = vpop.f32.mrb[0].mxu0
        %v839 = vadd.f32 0.0, %v838
        %v840 = vpop.f32.mrb[0].mxu0
        %841 = vmatprep.mubr.bf16.mxu0 0
        %842 = vmatmul.mubr.bf16.gmra.mrb[0].mxu0 %v738
        %v843 = vpop.f32.mrb[0].mxu0
        %v844 = vadd.f32 0.0, %v843
        %v845 = vpop.f32.mrb[0].mxu0
        %v846 = vpop.f32.mrb[0].mxu0
        %v847 = vadd.f32 0.0, %v846
        %v848 = vpop.f32.mrb[0].mxu0
        %849 = vmatprep.mubr.bf16.mxu0 0
        %850 = vmatmul.mubr.bf16.gmra.mrb[0].mxu0 %v741
        %v851 = vpop.f32.mrb[0].mxu0
        %v852 = vadd.f32 0.0, %v851
        %v853 = vpop.f32.mrb[0].mxu0
        %v854 = vpop.f32.mrb[0].mxu0
        %v855 = vadd.f32 0.0, %v854
        %v856 = vpop.f32.mrb[0].mxu0
        %857 = vmatprep.mubr.bf16.mxu0 0
        %858 = vmatmul.mubr.bf16.gmra.mrb[0].mxu0 %v744
        %v859 = vpop.f32.mrb[0].mxu0
        %v860 = vadd.f32 0.0, %v859
        %v861 = vpop.f32.mrb[0].mxu0
        %v862 = vpop.f32.mrb[0].mxu0
        %v863 = vadd.f32 0.0, %v862
        %v864 = vpop.f32.mrb[0].mxu0
        %865 = vmatprep.mubr.bf16.mxu0 0
        %866 = vmatmul.mubr.bf16.gmra.mrb[0].mxu0 %v747
        %v867 = vpop.f32.mrb[0].mxu0
        %v868 = vadd.f32 0.0, %v867
        %v869 = vpop.f32.mrb[0].mxu0
        %v870 = vpop.f32.mrb[0].mxu0
        %v871 = vadd.f32 0.0, %v870
        %v872 = vpop.f32.mrb[0].mxu0
        %873 = vmatprep.mubr.bf16.mxu0 0
        %874 = vmatmul.mubr.bf16.gmra.mrb[0].mxu0 %v750
        %v875 = vpop.f32.mrb[0].mxu0
        %v876 = vadd.f32 0.0, %v875
        %v877 = vpop.f32.mrb[0].mxu0
        %v878 = vpop.f32.mrb[0].mxu0
        %v879 = vadd.f32 0.0, %v878
        %v880 = vpop.f32.mrb[0].mxu0
        %881 = vmatprep.mubr.bf16.mxu0 0
        %882 = vmatmul.mubr.bf16.gmra.mrb[0].mxu0 %v753
        %v883 = vpop.f32.mrb[0].mxu0
        %v884 = vadd.f32 0.0, %v883
        %v885 = vpop.f32.mrb[0].mxu0
        %v886 = vpop.f32.mrb[0].mxu0
        %v887 = vadd.f32 0.0, %v886
        %v888 = vpop.f32.mrb[0].mxu0
        %889 = vmatprep.mubr.bf16.mxu0 0
        %890 = vmatmul.mubr.bf16.gmra.mrb[0].mxu0 %v756
        %v891 = vpop.f32.mrb[0].mxu0
        %v892 = vadd.f32 0.0, %v891
        %v893 = vpop.f32.mrb[0].mxu0
        %v894 = vpop.f32.mrb[0].mxu0
        %v895 = vadd.f32 0.0, %v894
        %v896 = vpop.f32.mrb[0].mxu0
        %897 = vmatprep.mubr.bf16.mxu0 0
        %898 = vmatmul.mubr.bf16.gmra.mrb[0].mxu0 %v759
        %v899 = vpop.f32.mrb[0].mxu0
        %v900 = vadd.f32 0.0, %v899
        %v901 = vpop.f32.mrb[0].mxu0
        %v902 = vpop.f32.mrb[0].mxu0
        %v903 = vadd.f32 0.0, %v902
        %v904 = vpop.f32.mrb[0].mxu0
        %905 = vmatprep.mubr.bf16.mxu0 0
        %906 = vmatmul.mubr.bf16.gmra.mrb[0].mxu0 %v762
        %v907 = vpop.f32.mrb[0].mxu0
        %v908 = vadd.f32 0.0, %v907
        %v909 = vpop.f32.mrb[0].mxu0
        %v910 = vpop.f32.mrb[0].mxu0
        %v911 = vadd.f32 0.0, %v910
        %v912 = vpop.f32.mrb[0].mxu0
        %913 = vmatprep.mubr.bf16.mxu0 0
        %914 = vmatmul.mubr.bf16.gmra.mrb[0].mxu0 %v765
        %v915 = vpop.f32.mrb[0].mxu0
        %v916 = vadd.f32 0.0, %v915
        %v917 = vpop.f32.mrb[0].mxu0
        %v918 = vpop.f32.mrb[0].mxu0
        %v919 = vadd.f32 0.0, %v918
        %v920 = vpop.f32.mrb[0].mxu0
        %921 = vmatprep.mubr.bf16.mxu0 0
        %922 = vmatmul.mubr.bf16.gmra.mrb[0].mxu0 %v768
        %v923 = vpop.f32.mrb[0].mxu0
        %v924 = vadd.f32 0.0, %v923
        %v925 = vpop.f32.mrb[0].mxu0
        %v926 = vpop.f32.mrb[0].mxu0
        %v927 = vadd.f32 0.0, %v926
        %v928 = vpop.f32.mrb[0].mxu0
        %929 = vmatprep.mubr.bf16.mxu0 0
        %930 = vmatmul.mubr.bf16.gmra.mrb[0].mxu0 %v771
        %v931 = vpop.f32.mrb[0].mxu0
        %v932 = vadd.f32 0.0, %v931
        %v933 = vpop.f32.mrb[0].mxu0
        %v934 = vpop.f32.mrb[0].mxu0
        %v935 = vadd.f32 0.0, %v934
        %v936 = vpop.f32.mrb[0].mxu0
        %937 = vdwg.mxu0
        %v970 = vunpack.c.l.b16 %v238
        %v971 = vunpack.c.l.b16 %v239
        %v972 = vunpack.c.l.b16 %v240
        %v973 = vunpack.c.l.b16 %v241
        %v974 = vunpack.c.l.b16 %v242
        %v975 = vunpack.c.l.b16 %v243
        %v976 = vunpack.c.l.b16 %v244
        %v977 = vunpack.c.l.b16 %v245
        %v978 = vunpack.c.l.b16 %v246
        %v979 = vunpack.c.l.b16 %v247
        %v980 = vunpack.c.l.b16 %v248
        %v981 = vunpack.c.l.b16 %v249
        %v982 = vunpack.c.l.b16 %v250
        %v983 = vunpack.c.l.b16 %v251
        %v984 = vunpack.c.l.b16 %v252
        %v985 = vunpack.c.l.b16 %v253
        %v986 = vunpack.c.l.b16 %v254
        %v987 = vunpack.c.l.b16 %v255
        %v988 = vunpack.c.l.b16 %v256
        %v989 = vunpack.c.l.b16 %v257
        %v990 = vunpack.c.l.b16 %v258
        %v991 = vunpack.c.l.b16 %v259
        %v992 = vunpack.c.l.b16 %v260
        %v993 = vunpack.c.l.b16 %v261
        %v994 = vunpack.c.l.b16 %v262
        %v995 = vunpack.c.l.b16 %v263
        %v996 = vunpack.c.l.b16 %v264
        %v997 = vunpack.c.l.b16 %v265
        %v998 = vunpack.c.l.b16 %v266
        %v999 = vunpack.c.l.b16 %v267
        %v1000 = vunpack.c.l.b16 %v268
        %v1001 = vunpack.c.l.b16 %v269
        %v1002 = vpack.c.b16 %v971, %v970
        %v1003 = vpack.c.b16 %v973, %v972
        %v1004 = vpack.c.b16 %v975, %v974
        %v1005 = vpack.c.b16 %v977, %v976
        %v1006 = vpack.c.b16 %v979, %v978
        %v1007 = vpack.c.b16 %v981, %v980
        %v1008 = vpack.c.b16 %v983, %v982
        %v1009 = vpack.c.b16 %v985, %v984
        %v1010 = vpack.c.b16 %v987, %v986
        %v1011 = vpack.c.b16 %v989, %v988
        %v1012 = vpack.c.b16 %v991, %v990
        %v1013 = vpack.c.b16 %v993, %v992
        %v1014 = vpack.c.b16 %v995, %v994
        %v1015 = vpack.c.b16 %v997, %v996
        %v1016 = vpack.c.b16 %v999, %v998
        %v1017 = vpack.c.b16 %v1001, %v1000
        %v1019 = vsel %vm724, %v1002, 0
        %v1022 = vsel %vm724, %v1003, 0
        %v1025 = vsel %vm724, %v1004, 0
        %v1028 = vsel %vm724, %v1005, 0
        %v1031 = vsel %vm724, %v1006, 0
        %v1034 = vsel %vm724, %v1007, 0
        %v1037 = vsel %vm724, %v1008, 0
        %v1040 = vsel %vm724, %v1009, 0
        %v1043 = vsel %vm724, %v1010, 0
        %v1046 = vsel %vm724, %v1011, 0
        %v1049 = vsel %vm724, %v1012, 0
        %v1052 = vsel %vm724, %v1013, 0
        %v1055 = vsel %vm724, %v1014, 0
        %v1058 = vsel %vm724, %v1015, 0
        %v1061 = vsel %vm724, %v1016, 0
        %v1064 = vsel %vm724, %v1017, 0
        %v1067 = vsel %vm773, %v270, 0
        %1069 = vmatprep.subr.bf16.mxu0 0
        %1070 = vmatpush1.bf16.msra.mxu0 %v1067
        %1071 = vmatprep.subr.bf16.mxu0 0
        %1072 = vmatpush1.bf16.msra.mxu0 0
        %1073 = vmatprep.subr.bf16.mxu0 0
        %1074 = vmatpush1.bf16.msra.mxu0 0
        %1075 = vmatprep.subr.bf16.mxu0 0
        %1076 = vmatpush1.bf16.msra.mxu0 0
        %1077 = vmatprep.subr.bf16.mxu0 0
        %1078 = vmatpush1.bf16.msra.mxu0 0
        %1079 = vmatprep.subr.bf16.mxu0 0
        %1080 = vmatpush1.bf16.msra.mxu0 0
        %1081 = vmatprep.subr.bf16.mxu0 0
        %1082 = vmatpush1.bf16.msra.mxu0 0
        %1083 = vmatprep.subr.bf16.mxu0 0
        %1084 = vmatpush1.bf16.msra.mxu0 0
        %1085 = vmatprep.subr.bf16.mxu0 0
        %1086 = vmatpush1.bf16.msra.mxu0 0
        %1087 = vmatprep.subr.bf16.mxu0 0
        %1088 = vmatpush1.bf16.msra.mxu0 0
        %1089 = vmatprep.subr.bf16.mxu0 0
        %1090 = vmatpush1.bf16.msra.mxu0 0
        %1091 = vmatprep.subr.bf16.mxu0 0
        %1092 = vmatpush1.bf16.msra.mxu0 0
        %1093 = vmatprep.subr.bf16.mxu0 0
        %1094 = vmatpush1.bf16.msra.mxu0 0
        %1095 = vmatprep.subr.bf16.mxu0 0
        %1096 = vmatpush1.bf16.msra.mxu0 0
        %1097 = vmatprep.subr.bf16.mxu0 0
        %1098 = vmatpush1.bf16.msra.mxu0 0
        %1099 = vmatprep.subr.bf16.mxu0 0
        %1100 = vmatpush1.bf16.msra.mxu0 0
        %1101 = vmatprep.mubr.bf16.mxu0 0
        %1102 = vmatmul.mubr.bf16.gmra.mrb[0].mxu0 %v1019
        %v1103 = vpop.f32.mrb[0].mxu0
        %v1104 = vadd.f32 %v812, %v1103
        %v1105 = vpop.f32.mrb[0].mxu0
        %v1106 = vpop.f32.mrb[0].mxu0
        %v1107 = vadd.f32 %v815, %v1106
        %v1108 = vpop.f32.mrb[0].mxu0
        %1109 = vmatprep.mubr.bf16.mxu0 0
        %1110 = vmatmul.mubr.bf16.gmra.mrb[0].mxu0 %v1022
        %v1111 = vpop.f32.mrb[0].mxu0
        %v1112 = vadd.f32 %v820, %v1111
        %v1113 = vpop.f32.mrb[0].mxu0
        %v1114 = vpop.f32.mrb[0].mxu0
        %v1115 = vadd.f32 %v823, %v1114
        %v1116 = vpop.f32.mrb[0].mxu0
        %1117 = vmatprep.mubr.bf16.mxu0 0
        %1118 = vmatmul.mubr.bf16.gmra.mrb[0].mxu0 %v1025
        %v1119 = vpop.f32.mrb[0].mxu0
        %v1120 = vadd.f32 %v828, %v1119
        %v1121 = vpop.f32.mrb[0].mxu0
        %v1122 = vpop.f32.mrb[0].mxu0
        %v1123 = vadd.f32 %v831, %v1122
        %v1124 = vpop.f32.mrb[0].mxu0
        %1125 = vmatprep.mubr.bf16.mxu0 0
        %1126 = vmatmul.mubr.bf16.gmra.mrb[0].mxu0 %v1028
        %v1127 = vpop.f32.mrb[0].mxu0
        %v1128 = vadd.f32 %v836, %v1127
        %v1129 = vpop.f32.mrb[0].mxu0
        %v1130 = vpop.f32.mrb[0].mxu0
        %v1131 = vadd.f32 %v839, %v1130
        %v1132 = vpop.f32.mrb[0].mxu0
        %1133 = vmatprep.mubr.bf16.mxu0 0
        %1134 = vmatmul.mubr.bf16.gmra.mrb[0].mxu0 %v1031
        %v1135 = vpop.f32.mrb[0].mxu0
        %v1136 = vadd.f32 %v844, %v1135
        %v1137 = vpop.f32.mrb[0].mxu0
        %v1138 = vpop.f32.mrb[0].mxu0
        %v1139 = vadd.f32 %v847, %v1138
        %v1140 = vpop.f32.mrb[0].mxu0
        %1141 = vmatprep.mubr.bf16.mxu0 0
        %1142 = vmatmul.mubr.bf16.gmra.mrb[0].mxu0 %v1034
        %v1143 = vpop.f32.mrb[0].mxu0
        %v1144 = vadd.f32 %v852, %v1143
        %v1145 = vpop.f32.mrb[0].mxu0
        %v1146 = vpop.f32.mrb[0].mxu0
        %v1147 = vadd.f32 %v855, %v1146
        %v1148 = vpop.f32.mrb[0].mxu0
        %1149 = vmatprep.mubr.bf16.mxu0 0
        %1150 = vmatmul.mubr.bf16.gmra.mrb[0].mxu0 %v1037
        %v1151 = vpop.f32.mrb[0].mxu0
        %v1152 = vadd.f32 %v860, %v1151
        %v1153 = vpop.f32.mrb[0].mxu0
        %v1154 = vpop.f32.mrb[0].mxu0
        %v1155 = vadd.f32 %v863, %v1154
        %v1156 = vpop.f32.mrb[0].mxu0
        %1157 = vmatprep.mubr.bf16.mxu0 0
        %1158 = vmatmul.mubr.bf16.gmra.mrb[0].mxu0 %v1040
        %v1159 = vpop.f32.mrb[0].mxu0
        %v1160 = vadd.f32 %v868, %v1159
        %v1161 = vpop.f32.mrb[0].mxu0
        %v1162 = vpop.f32.mrb[0].mxu0
        %v1163 = vadd.f32 %v871, %v1162
        %v1164 = vpop.f32.mrb[0].mxu0
        %1165 = vmatprep.mubr.bf16.mxu0 0
        %1166 = vmatmul.mubr.bf16.gmra.mrb[0].mxu0 %v1043
        %v1167 = vpop.f32.mrb[0].mxu0
        %v1168 = vadd.f32 %v876, %v1167
        %v1169 = vpop.f32.mrb[0].mxu0
        %v1170 = vpop.f32.mrb[0].mxu0
        %v1171 = vadd.f32 %v879, %v1170
        %v1172 = vpop.f32.mrb[0].mxu0
        %1173 = vmatprep.mubr.bf16.mxu0 0
        %1174 = vmatmul.mubr.bf16.gmra.mrb[0].mxu0 %v1046
        %v1175 = vpop.f32.mrb[0].mxu0
        %v1176 = vadd.f32 %v884, %v1175
        %v1177 = vpop.f32.mrb[0].mxu0
        %v1178 = vpop.f32.mrb[0].mxu0
        %v1179 = vadd.f32 %v887, %v1178
        %v1180 = vpop.f32.mrb[0].mxu0
        %1181 = vmatprep.mubr.bf16.mxu0 0
        %1182 = vmatmul.mubr.bf16.gmra.mrb[0].mxu0 %v1049
        %v1183 = vpop.f32.mrb[0].mxu0
        %v1184 = vadd.f32 %v892, %v1183
        %v1185 = vpop.f32.mrb[0].mxu0
        %v1186 = vpop.f32.mrb[0].mxu0
        %v1187 = vadd.f32 %v895, %v1186
        %v1188 = vpop.f32.mrb[0].mxu0
        %1189 = vmatprep.mubr.bf16.mxu0 0
        %1190 = vmatmul.mubr.bf16.gmra.mrb[0].mxu0 %v1052
        %v1191 = vpop.f32.mrb[0].mxu0
        %v1192 = vadd.f32 %v900, %v1191
        %v1193 = vpop.f32.mrb[0].mxu0
        %v1194 = vpop.f32.mrb[0].mxu0
        %v1195 = vadd.f32 %v903, %v1194
        %v1196 = vpop.f32.mrb[0].mxu0
        %1197 = vmatprep.mubr.bf16.mxu0 0
        %1198 = vmatmul.mubr.bf16.gmra.mrb[0].mxu0 %v1055
        %v1199 = vpop.f32.mrb[0].mxu0
        %v1200 = vadd.f32 %v908, %v1199
        %v1201 = vpop.f32.mrb[0].mxu0
        %v1202 = vpop.f32.mrb[0].mxu0
        %v1203 = vadd.f32 %v911, %v1202
        %v1204 = vpop.f32.mrb[0].mxu0
        %1205 = vmatprep.mubr.bf16.mxu0 0
        %1206 = vmatmul.mubr.bf16.gmra.mrb[0].mxu0 %v1058
        %v1207 = vpop.f32.mrb[0].mxu0
        %v1208 = vadd.f32 %v916, %v1207
        %v1209 = vpop.f32.mrb[0].mxu0
        %v1210 = vpop.f32.mrb[0].mxu0
        %v1211 = vadd.f32 %v919, %v1210
        %v1212 = vpop.f32.mrb[0].mxu0
        %1213 = vmatprep.mubr.bf16.mxu0 0
        %1214 = vmatmul.mubr.bf16.gmra.mrb[0].mxu0 %v1061
        %v1215 = vpop.f32.mrb[0].mxu0
        %v1216 = vadd.f32 %v924, %v1215
        %v1217 = vpop.f32.mrb[0].mxu0
        %v1218 = vpop.f32.mrb[0].mxu0
        %v1219 = vadd.f32 %v927, %v1218
        %v1220 = vpop.f32.mrb[0].mxu0
        %1221 = vmatprep.mubr.bf16.mxu0 0
        %1222 = vmatmul.mubr.bf16.gmra.mrb[0].mxu0 %v1064
        %v1223 = vpop.f32.mrb[0].mxu0
        %v1224 = vadd.f32 %v932, %v1223
        %v1225 = vpop.f32.mrb[0].mxu0
        %v1226 = vpop.f32.mrb[0].mxu0
        %v1227 = vadd.f32 %v935, %v1226
        %v1228 = vpop.f32.mrb[0].mxu0
        %1229 = vdwg.mxu0
        %v1230 = vld [vmem:[%s237] sm:$0xe]
        %v1231 = vld [vmem:[%s237 + $0xc] sm:$0xe]
        %v1232 = vld [vmem:[%s237 + $0x18] sm:$0xe]
        %v1233 = vld [vmem:[%s237 + $0x24] sm:$0xe]
        %v1234 = vld [vmem:[%s237 + $0x30] sm:$0xe]
        %v1235 = vld [vmem:[%s237 + $0x3c] sm:$0xe]
        %v1236 = vld [vmem:[%s237 + $0x48] sm:$0xe]
        %v1237 = vld [vmem:[%s237 + $0x54] sm:$0xe]
        %v1238 = vld [vmem:[%s237 + $0x60] sm:$0xe]
        %v1239 = vld [vmem:[%s237 + $0x6c] sm:$0xe]
        %v1240 = vld [vmem:[%s237 + $0x78] sm:$0xe]
        %v1241 = vld [vmem:[%s237 + $0x84] sm:$0xe]
        %v1242 = vld [vmem:[%s237 + $0x90] sm:$0xe]
        %v1243 = vld [vmem:[%s237 + $0x9c] sm:$0xe]
        %v1244 = vld [vmem:[%s237 + $0xa8] sm:$0xe]
        %v1245 = vld [vmem:[%s237 + $0xb4] sm:$0xe]
        %vm1278 = vcmask 1042432
        %vm1279 = vcmask 1046532
        %vm1280 = vmor %vm1278, %vm1279
        %v1281 = vrot.slane %v1230, 5
        %v1282 = vrot.slane %v1281, 4
        %v1283 = vrot.slane %v239, 5
        %v1284 = vsel %vm1280, %v1282, %v1283
        %v1285 = vrot.slane %v1283, 4
        %v1286 = vrot.slane %v271, 5
        %v1287 = vsel %vm1280, %v1285, %v1286
        %v1288 = vrot.slane %v1231, 5
        %v1289 = vrot.slane %v1288, 4
        %v1290 = vrot.slane %v241, 5
        %v1291 = vsel %vm1280, %v1289, %v1290
        %v1292 = vrot.slane %v1290, 4
        %v1293 = vrot.slane %v272, 5
        %v1294 = vsel %vm1280, %v1292, %v1293
        %v1295 = vrot.slane %v1232, 5
        %v1296 = vrot.slane %v1295, 4
        %v1297 = vrot.slane %v243, 5
        %v1298 = vsel %vm1280, %v1296, %v1297
        %v1299 = vrot.slane %v1297, 4
        %v1300 = vrot.slane %v273, 5
        %v1301 = vsel %vm1280, %v1299, %v1300
        %v1302 = vrot.slane %v1233, 5
        %v1303 = vrot.slane %v1302, 4
        %v1304 = vrot.slane %v245, 5
        %v1305 = vsel %vm1280, %v1303, %v1304
        %v1306 = vrot.slane %v1304, 4
        %v1307 = vrot.slane %v274, 5
        %v1308 = vsel %vm1280, %v1306, %v1307
        %v1309 = vrot.slane %v1234, 5
        %v1310 = vrot.slane %v1309, 4
        %v1311 = vrot.slane %v247, 5
        %v1312 = vsel %vm1280, %v1310, %v1311
        %v1313 = vrot.slane %v1311, 4
        %v1314 = vrot.slane %v275, 5
        %v1315 = vsel %vm1280, %v1313, %v1314
        %v1316 = vrot.slane %v1235, 5
        %v1317 = vrot.slane %v1316, 4
        %v1318 = vrot.slane %v249, 5
        %v1319 = vsel %vm1280, %v1317, %v1318
        %v1320 = vrot.slane %v1318, 4
        %v1321 = vrot.slane %v276, 5
        %v1322 = vsel %vm1280, %v1320, %v1321
        %v1323 = vrot.slane %v1236, 5
        %v1324 = vrot.slane %v1323, 4
        %v1325 = vrot.slane %v251, 5
        %v1326 = vsel %vm1280, %v1324, %v1325
        %v1327 = vrot.slane %v1325, 4
        %v1328 = vrot.slane %v277, 5
        %v1329 = vsel %vm1280, %v1327, %v1328
        %v1330 = vrot.slane %v1237, 5
        %v1331 = vrot.slane %v1330, 4
        %v1332 = vrot.slane %v253, 5
        %v1333 = vsel %vm1280, %v1331, %v1332
        %v1334 = vrot.slane %v1332, 4
        %v1335 = vrot.slane %v278, 5
        %v1336 = vsel %vm1280, %v1334, %v1335
        %v1337 = vrot.slane %v1238, 5
        %v1338 = vrot.slane %v1337, 4
        %v1339 = vrot.slane %v255, 5
        %v1340 = vsel %vm1280, %v1338, %v1339
        %v1341 = vrot.slane %v1339, 4
        %v1342 = vrot.slane %v279, 5
        %v1343 = vsel %vm1280, %v1341, %v1342
        %v1344 = vrot.slane %v1239, 5
        %v1345 = vrot.slane %v1344, 4
        %v1346 = vrot.slane %v257, 5
        %v1347 = vsel %vm1280, %v1345, %v1346
        %v1348 = vrot.slane %v1346, 4
        %v1349 = vrot.slane %v280, 5
        %v1350 = vsel %vm1280, %v1348, %v1349
        %v1351 = vrot.slane %v1240, 5
        %v1352 = vrot.slane %v1351, 4
        %v1353 = vrot.slane %v259, 5
        %v1354 = vsel %vm1280, %v1352, %v1353
        %v1355 = vrot.slane %v1353, 4
        %v1356 = vrot.slane %v281, 5
        %v1357 = vsel %vm1280, %v1355, %v1356
        %v1358 = vrot.slane %v1241, 5
        %v1359 = vrot.slane %v1358, 4
        %v1360 = vrot.slane %v261, 5
        %v1361 = vsel %vm1280, %v1359, %v1360
        %v1362 = vrot.slane %v1360, 4
        %v1363 = vrot.slane %v282, 5
        %v1364 = vsel %vm1280, %v1362, %v1363
        %v1365 = vrot.slane %v1242, 5
        %v1366 = vrot.slane %v1365, 4
        %v1367 = vrot.slane %v263, 5
        %v1368 = vsel %vm1280, %v1366, %v1367
        %v1369 = vrot.slane %v1367, 4
        %v1370 = vrot.slane %v283, 5
        %v1371 = vsel %vm1280, %v1369, %v1370
        %v1372 = vrot.slane %v1243, 5
        %v1373 = vrot.slane %v1372, 4
        %v1374 = vrot.slane %v265, 5
        %v1375 = vsel %vm1280, %v1373, %v1374
        %v1376 = vrot.slane %v1374, 4
        %v1377 = vrot.slane %v284, 5
        %v1378 = vsel %vm1280, %v1376, %v1377
        %v1379 = vrot.slane %v1244, 5
        %v1380 = vrot.slane %v1379, 4
        %v1381 = vrot.slane %v267, 5
        %v1382 = vsel %vm1280, %v1380, %v1381
        %v1383 = vrot.slane %v1381, 4
        %v1384 = vrot.slane %v285, 5
        %v1385 = vsel %vm1280, %v1383, %v1384
        %v1386 = vrot.slane %v1245, 5
        %v1387 = vrot.slane %v1386, 4
        %v1388 = vrot.slane %v269, 5
        %v1389 = vsel %vm1280, %v1387, %v1388
        %v1390 = vrot.slane %v1388, 4
        %v1391 = vrot.slane %v286, 5
        %v1392 = vsel %vm1280, %v1390, %v1391
        %s1393 = scalar_lea.vmem %s1, 4
        %v1394 = vld [vmem:[%s1393] sm:$0x3]
        %v1395 = vunpack.c.l.b16 %v1284
        %v1396 = vunpack.c.l.b16 %v1287
        %v1397 = vunpack.c.l.b16 %v1291
        %v1398 = vunpack.c.l.b16 %v1294
        %v1399 = vunpack.c.l.b16 %v1298
        %v1400 = vunpack.c.l.b16 %v1301
        %v1401 = vunpack.c.l.b16 %v1305
        %v1402 = vunpack.c.l.b16 %v1308
        %v1403 = vunpack.c.l.b16 %v1312
        %v1404 = vunpack.c.l.b16 %v1315
        %v1405 = vunpack.c.l.b16 %v1319
        %v1406 = vunpack.c.l.b16 %v1322
        %v1407 = vunpack.c.l.b16 %v1326
        %v1408 = vunpack.c.l.b16 %v1329
        %v1409 = vunpack.c.l.b16 %v1333
        %v1410 = vunpack.c.l.b16 %v1336
        %v1411 = vunpack.c.l.b16 %v1340
        %v1412 = vunpack.c.l.b16 %v1343
        %v1413 = vunpack.c.l.b16 %v1347
        %v1414 = vunpack.c.l.b16 %v1350
        %v1415 = vunpack.c.l.b16 %v1354
        %v1416 = vunpack.c.l.b16 %v1357
        %v1417 = vunpack.c.l.b16 %v1361
        %v1418 = vunpack.c.l.b16 %v1364
        %v1419 = vunpack.c.l.b16 %v1368
        %v1420 = vunpack.c.l.b16 %v1371
        %v1421 = vunpack.c.l.b16 %v1375
        %v1422 = vunpack.c.l.b16 %v1378
        %v1423 = vunpack.c.l.b16 %v1382
        %v1424 = vunpack.c.l.b16 %v1385
        %v1425 = vunpack.c.l.b16 %v1389
        %v1426 = vunpack.c.l.b16 %v1392
        %v1427 = vpack.c.b16 %v1396, %v1395
        %v1428 = vpack.c.b16 %v1398, %v1397
        %v1429 = vpack.c.b16 %v1400, %v1399
        %v1430 = vpack.c.b16 %v1402, %v1401
        %v1431 = vpack.c.b16 %v1404, %v1403
        %v1432 = vpack.c.b16 %v1406, %v1405
        %v1433 = vpack.c.b16 %v1408, %v1407
        %v1434 = vpack.c.b16 %v1410, %v1409
        %v1435 = vpack.c.b16 %v1412, %v1411
        %v1436 = vpack.c.b16 %v1414, %v1413
        %v1437 = vpack.c.b16 %v1416, %v1415
        %v1438 = vpack.c.b16 %v1418, %v1417
        %v1439 = vpack.c.b16 %v1420, %v1419
        %v1440 = vpack.c.b16 %v1422, %v1421
        %v1441 = vpack.c.b16 %v1424, %v1423
        %v1442 = vpack.c.b16 %v1426, %v1425
        %v1444 = vsel %vm724, %v1427, 0
        %v1447 = vsel %vm724, %v1428, 0
        %v1450 = vsel %vm724, %v1429, 0
        %v1453 = vsel %vm724, %v1430, 0
        %v1456 = vsel %vm724, %v1431, 0
        %v1459 = vsel %vm724, %v1432, 0
        %v1462 = vsel %vm724, %v1433, 0
        %v1465 = vsel %vm724, %v1434, 0
        %v1468 = vsel %vm724, %v1435, 0
        %v1471 = vsel %vm724, %v1436, 0
        %v1474 = vsel %vm724, %v1437, 0
        %v1477 = vsel %vm724, %v1438, 0
        %v1480 = vsel %vm724, %v1439, 0
        %v1483 = vsel %vm724, %v1440, 0
        %v1486 = vsel %vm724, %v1441, 0
        %v1489 = vsel %vm724, %v1442, 0
        %v1492 = vsel %vm773, %v1394, 0
        %1494 = vmatprep.subr.bf16.mxu0 0
        %1495 = vmatpush1.bf16.msra.mxu0 %v1492
        %1496 = vmatprep.subr.bf16.mxu0 0
        %1497 = vmatpush1.bf16.msra.mxu0 0
        %1498 = vmatprep.subr.bf16.mxu0 0
        %1499 = vmatpush1.bf16.msra.mxu0 0
        %1500 = vmatprep.subr.bf16.mxu0 0
        %1501 = vmatpush1.bf16.msra.mxu0 0
        %1502 = vmatprep.subr.bf16.mxu0 0
        %1503 = vmatpush1.bf16.msra.mxu0 0
        %1504 = vmatprep.subr.bf16.mxu0 0
        %1505 = vmatpush1.bf16.msra.mxu0 0
        %1506 = vmatprep.subr.bf16.mxu0 0
        %1507 = vmatpush1.bf16.msra.mxu0 0
        %1508 = vmatprep.subr.bf16.mxu0 0
        %1509 = vmatpush1.bf16.msra.mxu0 0
        %1510 = vmatprep.subr.bf16.mxu0 0
        %1511 = vmatpush1.bf16.msra.mxu0 0
        %1512 = vmatprep.subr.bf16.mxu0 0
        %1513 = vmatpush1.bf16.msra.mxu0 0
        %1514 = vmatprep.subr.bf16.mxu0 0
        %1515 = vmatpush1.bf16.msra.mxu0 0
        %1516 = vmatprep.subr.bf16.mxu0 0
        %1517 = vmatpush1.bf16.msra.mxu0 0
        %1518 = vmatprep.subr.bf16.mxu0 0
        %1519 = vmatpush1.bf16.msra.mxu0 0
        %1520 = vmatprep.subr.bf16.mxu0 0
        %1521 = vmatpush1.bf16.msra.mxu0 0
        %1522 = vmatprep.subr.bf16.mxu0 0
        %1523 = vmatpush1.bf16.msra.mxu0 0
        %1524 = vmatprep.subr.bf16.mxu0 0
        %1525 = vmatpush1.bf16.msra.mxu0 0
        %1526 = vmatprep.mubr.bf16.mxu0 0
        %1527 = vmatmul.mubr.bf16.gmra.mrb[0].mxu0 %v1444
        %v1528 = vpop.f32.mrb[0].mxu0
        %v1529 = vadd.f32 0.0, %v1528
        %v1530 = vpop.f32.mrb[0].mxu0
        %v1531 = vpop.f32.mrb[0].mxu0
        %v1532 = vadd.f32 0.0, %v1531
        %v1533 = vpop.f32.mrb[0].mxu0
        %1534 = vmatprep.mubr.bf16.mxu0 0
        %1535 = vmatmul.mubr.bf16.gmra.mrb[0].mxu0 %v1447
        %v1536 = vpop.f32.mrb[0].mxu0
        %v1537 = vadd.f32 0.0, %v1536
        %v1538 = vpop.f32.mrb[0].mxu0
        %v1539 = vpop.f32.mrb[0].mxu0
        %v1540 = vadd.f32 0.0, %v1539
        %v1541 = vpop.f32.mrb[0].mxu0
        %1542 = vmatprep.mubr.bf16.mxu0 0
        %1543 = vmatmul.mubr.bf16.gmra.mrb[0].mxu0 %v1450
        %v1544 = vpop.f32.mrb[0].mxu0
        %v1545 = vadd.f32 0.0, %v1544
        %v1546 = vpop.f32.mrb[0].mxu0
        %v1547 = vpop.f32.mrb[0].mxu0
        %v1548 = vadd.f32 0.0, %v1547
        %v1549 = vpop.f32.mrb[0].mxu0
        %1550 = vmatprep.mubr.bf16.mxu0 0
        %1551 = vmatmul.mubr.bf16.gmra.mrb[0].mxu0 %v1453
        %v1552 = vpop.f32.mrb[0].mxu0
        %v1553 = vadd.f32 0.0, %v1552
        %v1554 = vpop.f32.mrb[0].mxu0
        %v1555 = vpop.f32.mrb[0].mxu0
        %v1556 = vadd.f32 0.0, %v1555
        %v1557 = vpop.f32.mrb[0].mxu0
        %1558 = vmatprep.mubr.bf16.mxu0 0
        %1559 = vmatmul.mubr.bf16.gmra.mrb[0].mxu0 %v1456
        %v1560 = vpop.f32.mrb[0].mxu0
        %v1561 = vadd.f32 0.0, %v1560
        %v1562 = vpop.f32.mrb[0].mxu0
        %v1563 = vpop.f32.mrb[0].mxu0
        %v1564 = vadd.f32 0.0, %v1563
        %v1565 = vpop.f32.mrb[0].mxu0
        %1566 = vmatprep.mubr.bf16.mxu0 0
        %1567 = vmatmul.mubr.bf16.gmra.mrb[0].mxu0 %v1459
        %v1568 = vpop.f32.mrb[0].mxu0
        %v1569 = vadd.f32 0.0, %v1568
        %v1570 = vpop.f32.mrb[0].mxu0
        %v1571 = vpop.f32.mrb[0].mxu0
        %v1572 = vadd.f32 0.0, %v1571
        %v1573 = vpop.f32.mrb[0].mxu0
        %1574 = vmatprep.mubr.bf16.mxu0 0
        %1575 = vmatmul.mubr.bf16.gmra.mrb[0].mxu0 %v1462
        %v1576 = vpop.f32.mrb[0].mxu0
        %v1577 = vadd.f32 0.0, %v1576
        %v1578 = vpop.f32.mrb[0].mxu0
        %v1579 = vpop.f32.mrb[0].mxu0
        %v1580 = vadd.f32 0.0, %v1579
        %v1581 = vpop.f32.mrb[0].mxu0
        %1582 = vmatprep.mubr.bf16.mxu0 0
        %1583 = vmatmul.mubr.bf16.gmra.mrb[0].mxu0 %v1465
        %v1584 = vpop.f32.mrb[0].mxu0
        %v1585 = vadd.f32 0.0, %v1584
        %v1586 = vpop.f32.mrb[0].mxu0
        %v1587 = vpop.f32.mrb[0].mxu0
        %v1588 = vadd.f32 0.0, %v1587
        %v1589 = vpop.f32.mrb[0].mxu0
        %1590 = vmatprep.mubr.bf16.mxu0 0
        %1591 = vmatmul.mubr.bf16.gmra.mrb[0].mxu0 %v1468
        %v1592 = vpop.f32.mrb[0].mxu0
        %v1593 = vadd.f32 0.0, %v1592
        %v1594 = vpop.f32.mrb[0].mxu0
        %v1595 = vpop.f32.mrb[0].mxu0
        %v1596 = vadd.f32 0.0, %v1595
        %v1597 = vpop.f32.mrb[0].mxu0
        %1598 = vmatprep.mubr.bf16.mxu0 0
        %1599 = vmatmul.mubr.bf16.gmra.mrb[0].mxu0 %v1471
        %v1600 = vpop.f32.mrb[0].mxu0
        %v1601 = vadd.f32 0.0, %v1600
        %v1602 = vpop.f32.mrb[0].mxu0
        %v1603 = vpop.f32.mrb[0].mxu0
        %v1604 = vadd.f32 0.0, %v1603
        %v1605 = vpop.f32.mrb[0].mxu0
        %1606 = vmatprep.mubr.bf16.mxu0 0
        %1607 = vmatmul.mubr.bf16.gmra.mrb[0].mxu0 %v1474
        %v1608 = vpop.f32.mrb[0].mxu0
        %v1609 = vadd.f32 0.0, %v1608
        %v1610 = vpop.f32.mrb[0].mxu0
        %v1611 = vpop.f32.mrb[0].mxu0
        %v1612 = vadd.f32 0.0, %v1611
        %v1613 = vpop.f32.mrb[0].mxu0
        %1614 = vmatprep.mubr.bf16.mxu0 0
        %1615 = vmatmul.mubr.bf16.gmra.mrb[0].mxu0 %v1477
        %v1616 = vpop.f32.mrb[0].mxu0
        %v1617 = vadd.f32 0.0, %v1616
        %v1618 = vpop.f32.mrb[0].mxu0
        %v1619 = vpop.f32.mrb[0].mxu0
        %v1620 = vadd.f32 0.0, %v1619
        %v1621 = vpop.f32.mrb[0].mxu0
        %1622 = vmatprep.mubr.bf16.mxu0 0
        %1623 = vmatmul.mubr.bf16.gmra.mrb[0].mxu0 %v1480
        %v1624 = vpop.f32.mrb[0].mxu0
        %v1625 = vadd.f32 0.0, %v1624
        %v1626 = vpop.f32.mrb[0].mxu0
        %v1627 = vpop.f32.mrb[0].mxu0
        %v1628 = vadd.f32 0.0, %v1627
        %v1629 = vpop.f32.mrb[0].mxu0
        %1630 = vmatprep.mubr.bf16.mxu0 0
        %1631 = vmatmul.mubr.bf16.gmra.mrb[0].mxu0 %v1483
        %v1632 = vpop.f32.mrb[0].mxu0
        %v1633 = vadd.f32 0.0, %v1632
        %v1634 = vpop.f32.mrb[0].mxu0
        %v1635 = vpop.f32.mrb[0].mxu0
        %v1636 = vadd.f32 0.0, %v1635
        %v1637 = vpop.f32.mrb[0].mxu0
        %1638 = vmatprep.mubr.bf16.mxu0 0
        %1639 = vmatmul.mubr.bf16.gmra.mrb[0].mxu0 %v1486
        %v1640 = vpop.f32.mrb[0].mxu0
        %v1641 = vadd.f32 0.0, %v1640
        %v1642 = vpop.f32.mrb[0].mxu0
        %v1643 = vpop.f32.mrb[0].mxu0
        %v1644 = vadd.f32 0.0, %v1643
        %v1645 = vpop.f32.mrb[0].mxu0
        %1646 = vmatprep.mubr.bf16.mxu0 0
        %1647 = vmatmul.mubr.bf16.gmra.mrb[0].mxu0 %v1489
        %v1648 = vpop.f32.mrb[0].mxu0
        %v1649 = vadd.f32 0.0, %v1648
        %v1650 = vpop.f32.mrb[0].mxu0
        %v1651 = vpop.f32.mrb[0].mxu0
        %v1652 = vadd.f32 0.0, %v1651
        %v1653 = vpop.f32.mrb[0].mxu0
        %1654 = vdwg.mxu0
        %v1655 = vadd.f32 %v1104, %v1529
        %v1656 = vadd.f32 %v1107, %v1532
        %v1657 = vadd.f32 %v1112, %v1537
        %v1658 = vadd.f32 %v1115, %v1540
        %v1659 = vadd.f32 %v1120, %v1545
        %v1660 = vadd.f32 %v1123, %v1548
        %v1661 = vadd.f32 %v1128, %v1553
        %v1662 = vadd.f32 %v1131, %v1556
        %v1663 = vadd.f32 %v1136, %v1561
        %v1664 = vadd.f32 %v1139, %v1564
        %v1665 = vadd.f32 %v1144, %v1569
        %v1666 = vadd.f32 %v1147, %v1572
        %v1667 = vadd.f32 %v1152, %v1577
        %v1668 = vadd.f32 %v1155, %v1580
        %v1669 = vadd.f32 %v1160, %v1585
        %v1670 = vadd.f32 %v1163, %v1588
        %v1671 = vadd.f32 %v1168, %v1593
        %v1672 = vadd.f32 %v1171, %v1596
        %v1673 = vadd.f32 %v1176, %v1601
        %v1674 = vadd.f32 %v1179, %v1604
        %v1675 = vadd.f32 %v1184, %v1609
        %v1676 = vadd.f32 %v1187, %v1612
        %v1677 = vadd.f32 %v1192, %v1617
        %v1678 = vadd.f32 %v1195, %v1620
        %v1679 = vadd.f32 %v1200, %v1625
        %v1680 = vadd.f32 %v1203, %v1628
        %v1681 = vadd.f32 %v1208, %v1633
        %v1682 = vadd.f32 %v1211, %v1636
        %v1683 = vadd.f32 %v1216, %v1641
        %v1684 = vadd.f32 %v1219, %v1644
        %v1685 = vadd.f32 %v1224, %v1649
        %v1686 = vadd.f32 %v1227, %v1652
        %s1687 = sadd.s32 %s234, 1
        %s1688 = smul.u32 %s1687, 3
        %s1689 = smul.addr %s1688, 4
        %s1690 = scalar_lea.vmem %s231, %s1689
        %v1691 = vld [vmem:[%s1690] sm:$0xf]
        %v1692 = vld [vmem:[%s1690 + $0x4] sm:$0xf]
        %v1693 = vld [vmem:[%s1690 + $0xc] sm:$0xf]
        %v1694 = vld [vmem:[%s1690 + $0x10] sm:$0xf]
        %v1695 = vld [vmem:[%s1690 + $0x18] sm:$0xf]
        %v1696 = vld [vmem:[%s1690 + $0x1c] sm:$0xf]
        %v1697 = vld [vmem:[%s1690 + $0x24] sm:$0xf]
        %v1698 = vld [vmem:[%s1690 + $0x28] sm:$0xf]
        %v1699 = vld [vmem:[%s1690 + $0x30] sm:$0xf]
        %v1700 = vld [vmem:[%s1690 + $0x34] sm:$0xf]
        %v1701 = vld [vmem:[%s1690 + $0x3c] sm:$0xf]
        %v1702 = vld [vmem:[%s1690 + $0x40] sm:$0xf]
        %v1703 = vld [vmem:[%s1690 + $0x48] sm:$0xf]
        %v1704 = vld [vmem:[%s1690 + $0x4c] sm:$0xf]
        %v1705 = vld [vmem:[%s1690 + $0x54] sm:$0xf]
        %v1706 = vld [vmem:[%s1690 + $0x58] sm:$0xf]
        %v1707 = vld [vmem:[%s1690 + $0x60] sm:$0xf]
        %v1708 = vld [vmem:[%s1690 + $0x64] sm:$0xf]
        %v1709 = vld [vmem:[%s1690 + $0x6c] sm:$0xf]
        %v1710 = vld [vmem:[%s1690 + $0x70] sm:$0xf]
        %v1711 = vld [vmem:[%s1690 + $0x78] sm:$0xf]
        %v1712 = vld [vmem:[%s1690 + $0x7c] sm:$0xf]
        %v1713 = vld [vmem:[%s1690 + $0x84] sm:$0xf]
        %v1714 = vld [vmem:[%s1690 + $0x88] sm:$0xf]
        %v1715 = vld [vmem:[%s1690 + $0x90] sm:$0xf]
        %v1716 = vld [vmem:[%s1690 + $0x94] sm:$0xf]
        %v1717 = vld [vmem:[%s1690 + $0x9c] sm:$0xf]
        %v1718 = vld [vmem:[%s1690 + $0xa0] sm:$0xf]
        %v1719 = vld [vmem:[%s1690 + $0xa8] sm:$0xf]
        %v1720 = vld [vmem:[%s1690 + $0xac] sm:$0xf]
        %v1721 = vld [vmem:[%s1690 + $0xb4] sm:$0xf]
        %v1722 = vld [vmem:[%s1690 + $0xb8] sm:$0xf]
        %s1723 = scalar_lea.vmem %s1, 6
        %v1724 = vld [vmem:[%s1723] sm:$0x3]
        %v1757 = vunpack.c.l.b16 %v1691
        %v1758 = vunpack.c.l.b16 %v1692
        %v1759 = vunpack.c.l.b16 %v1693
        %v1760 = vunpack.c.l.b16 %v1694
        %v1761 = vunpack.c.l.b16 %v1695
        %v1762 = vunpack.c.l.b16 %v1696
        %v1763 = vunpack.c.l.b16 %v1697
        %v1764 = vunpack.c.l.b16 %v1698
        %v1765 = vunpack.c.l.b16 %v1699
        %v1766 = vunpack.c.l.b16 %v1700
        %v1767 = vunpack.c.l.b16 %v1701
        %v1768 = vunpack.c.l.b16 %v1702
        %v1769 = vunpack.c.l.b16 %v1703
        %v1770 = vunpack.c.l.b16 %v1704
        %v1771 = vunpack.c.l.b16 %v1705
        %v1772 = vunpack.c.l.b16 %v1706
        %v1773 = vunpack.c.l.b16 %v1707
        %v1774 = vunpack.c.l.b16 %v1708
        %v1775 = vunpack.c.l.b16 %v1709
        %v1776 = vunpack.c.l.b16 %v1710
        %v1777 = vunpack.c.l.b16 %v1711
        %v1778 = vunpack.c.l.b16 %v1712
        %v1779 = vunpack.c.l.b16 %v1713
        %v1780 = vunpack.c.l.b16 %v1714
        %v1781 = vunpack.c.l.b16 %v1715
        %v1782 = vunpack.c.l.b16 %v1716
        %v1783 = vunpack.c.l.b16 %v1717
        %v1784 = vunpack.c.l.b16 %v1718
        %v1785 = vunpack.c.l.b16 %v1719
        %v1786 = vunpack.c.l.b16 %v1720
        %v1787 = vunpack.c.l.b16 %v1721
        %v1788 = vunpack.c.l.b16 %v1722
        %v1789 = vpack.c.b16 %v1758, %v1757
        %v1790 = vpack.c.b16 %v1760, %v1759
        %v1791 = vpack.c.b16 %v1762, %v1761
        %v1792 = vpack.c.b16 %v1764, %v1763
        %v1793 = vpack.c.b16 %v1766, %v1765
        %v1794 = vpack.c.b16 %v1768, %v1767
        %v1795 = vpack.c.b16 %v1770, %v1769
        %v1796 = vpack.c.b16 %v1772, %v1771
        %v1797 = vpack.c.b16 %v1774, %v1773
        %v1798 = vpack.c.b16 %v1776, %v1775
        %v1799 = vpack.c.b16 %v1778, %v1777
        %v1800 = vpack.c.b16 %v1780, %v1779
        %v1801 = vpack.c.b16 %v1782, %v1781
        %v1802 = vpack.c.b16 %v1784, %v1783
        %v1803 = vpack.c.b16 %v1786, %v1785
        %v1804 = vpack.c.b16 %v1788, %v1787
        %v1806 = vsel %vm724, %v1789, 0
        %v1809 = vsel %vm724, %v1790, 0
        %v1812 = vsel %vm724, %v1791, 0
        %v1815 = vsel %vm724, %v1792, 0
        %v1818 = vsel %vm724, %v1793, 0
        %v1821 = vsel %vm724, %v1794, 0
        %v1824 = vsel %vm724, %v1795, 0
        %v1827 = vsel %vm724, %v1796, 0
        %v1830 = vsel %vm724, %v1797, 0
        %v1833 = vsel %vm724, %v1798, 0
        %v1836 = vsel %vm724, %v1799, 0
        %v1839 = vsel %vm724, %v1800, 0
        %v1842 = vsel %vm724, %v1801, 0
        %v1845 = vsel %vm724, %v1802, 0
        %v1848 = vsel %vm724, %v1803, 0
        %v1851 = vsel %vm724, %v1804, 0
        %v1854 = vsel %vm773, %v1724, 0
        %1856 = vmatprep.subr.bf16.mxu0 0
        %1857 = vmatpush1.bf16.msra.mxu0 %v1854
        %1858 = vmatprep.subr.bf16.mxu0 0
        %1859 = vmatpush1.bf16.msra.mxu0 0
        %1860 = vmatprep.subr.bf16.mxu0 0
        %1861 = vmatpush1.bf16.msra.mxu0 0
        %1862 = vmatprep.subr.bf16.mxu0 0
        %1863 = vmatpush1.bf16.msra.mxu0 0
        %1864 = vmatprep.subr.bf16.mxu0 0
        %1865 = vmatpush1.bf16.msra.mxu0 0
        %1866 = vmatprep.subr.bf16.mxu0 0
        %1867 = vmatpush1.bf16.msra.mxu0 0
        %1868 = vmatprep.subr.bf16.mxu0 0
        %1869 = vmatpush1.bf16.msra.mxu0 0
        %1870 = vmatprep.subr.bf16.mxu0 0
        %1871 = vmatpush1.bf16.msra.mxu0 0
        %1872 = vmatprep.subr.bf16.mxu0 0
        %1873 = vmatpush1.bf16.msra.mxu0 0
        %1874 = vmatprep.subr.bf16.mxu0 0
        %1875 = vmatpush1.bf16.msra.mxu0 0
        %1876 = vmatprep.subr.bf16.mxu0 0
        %1877 = vmatpush1.bf16.msra.mxu0 0
        %1878 = vmatprep.subr.bf16.mxu0 0
        %1879 = vmatpush1.bf16.msra.mxu0 0
        %1880 = vmatprep.subr.bf16.mxu0 0
        %1881 = vmatpush1.bf16.msra.mxu0 0
        %1882 = vmatprep.subr.bf16.mxu0 0
        %1883 = vmatpush1.bf16.msra.mxu0 0
        %1884 = vmatprep.subr.bf16.mxu0 0
        %1885 = vmatpush1.bf16.msra.mxu0 0
        %1886 = vmatprep.subr.bf16.mxu0 0
        %1887 = vmatpush1.bf16.msra.mxu0 0
        %1888 = vmatprep.mubr.bf16.mxu0 0
        %1889 = vmatmul.mubr.bf16.gmra.mrb[0].mxu0 %v1806
        %v1890 = vpop.f32.mrb[0].mxu0
        %v1891 = vadd.f32 0.0, %v1890
        %v1892 = vpop.f32.mrb[0].mxu0
        %v1893 = vpop.f32.mrb[0].mxu0
        %v1894 = vadd.f32 0.0, %v1893
        %v1895 = vpop.f32.mrb[0].mxu0
        %1896 = vmatprep.mubr.bf16.mxu0 0
        %1897 = vmatmul.mubr.bf16.gmra.mrb[0].mxu0 %v1809
        %v1898 = vpop.f32.mrb[0].mxu0
        %v1899 = vadd.f32 0.0, %v1898
        %v1900 = vpop.f32.mrb[0].mxu0
        %v1901 = vpop.f32.mrb[0].mxu0
        %v1902 = vadd.f32 0.0, %v1901
        %v1903 = vpop.f32.mrb[0].mxu0
        %1904 = vmatprep.mubr.bf16.mxu0 0
        %1905 = vmatmul.mubr.bf16.gmra.mrb[0].mxu0 %v1812
        %v1906 = vpop.f32.mrb[0].mxu0
        %v1907 = vadd.f32 0.0, %v1906
        %v1908 = vpop.f32.mrb[0].mxu0
        %v1909 = vpop.f32.mrb[0].mxu0
        %v1910 = vadd.f32 0.0, %v1909
        %v1911 = vpop.f32.mrb[0].mxu0
        %1912 = vmatprep.mubr.bf16.mxu0 0
        %1913 = vmatmul.mubr.bf16.gmra.mrb[0].mxu0 %v1815
        %v1914 = vpop.f32.mrb[0].mxu0
        %v1915 = vadd.f32 0.0, %v1914
        %v1916 = vpop.f32.mrb[0].mxu0
        %v1917 = vpop.f32.mrb[0].mxu0
        %v1918 = vadd.f32 0.0, %v1917
        %v1919 = vpop.f32.mrb[0].mxu0
        %1920 = vmatprep.mubr.bf16.mxu0 0
        %1921 = vmatmul.mubr.bf16.gmra.mrb[0].mxu0 %v1818
        %v1922 = vpop.f32.mrb[0].mxu0
        %v1923 = vadd.f32 0.0, %v1922
        %v1924 = vpop.f32.mrb[0].mxu0
        %v1925 = vpop.f32.mrb[0].mxu0
        %v1926 = vadd.f32 0.0, %v1925
        %v1927 = vpop.f32.mrb[0].mxu0
        %1928 = vmatprep.mubr.bf16.mxu0 0
        %1929 = vmatmul.mubr.bf16.gmra.mrb[0].mxu0 %v1821
        %v1930 = vpop.f32.mrb[0].mxu0
        %v1931 = vadd.f32 0.0, %v1930
        %v1932 = vpop.f32.mrb[0].mxu0
        %v1933 = vpop.f32.mrb[0].mxu0
        %v1934 = vadd.f32 0.0, %v1933
        %v1935 = vpop.f32.mrb[0].mxu0
        %1936 = vmatprep.mubr.bf16.mxu0 0
        %1937 = vmatmul.mubr.bf16.gmra.mrb[0].mxu0 %v1824
        %v1938 = vpop.f32.mrb[0].mxu0
        %v1939 = vadd.f32 0.0, %v1938
        %v1940 = vpop.f32.mrb[0].mxu0
        %v1941 = vpop.f32.mrb[0].mxu0
        %v1942 = vadd.f32 0.0, %v1941
        %v1943 = vpop.f32.mrb[0].mxu0
        %1944 = vmatprep.mubr.bf16.mxu0 0
        %1945 = vmatmul.mubr.bf16.gmra.mrb[0].mxu0 %v1827
        %v1946 = vpop.f32.mrb[0].mxu0
        %v1947 = vadd.f32 0.0, %v1946
        %v1948 = vpop.f32.mrb[0].mxu0
        %v1949 = vpop.f32.mrb[0].mxu0
        %v1950 = vadd.f32 0.0, %v1949
        %v1951 = vpop.f32.mrb[0].mxu0
        %1952 = vmatprep.mubr.bf16.mxu0 0
        %1953 = vmatmul.mubr.bf16.gmra.mrb[0].mxu0 %v1830
        %v1954 = vpop.f32.mrb[0].mxu0
        %v1955 = vadd.f32 0.0, %v1954
        %v1956 = vpop.f32.mrb[0].mxu0
        %v1957 = vpop.f32.mrb[0].mxu0
        %v1958 = vadd.f32 0.0, %v1957
        %v1959 = vpop.f32.mrb[0].mxu0
        %1960 = vmatprep.mubr.bf16.mxu0 0
        %1961 = vmatmul.mubr.bf16.gmra.mrb[0].mxu0 %v1833
        %v1962 = vpop.f32.mrb[0].mxu0
        %v1963 = vadd.f32 0.0, %v1962
        %v1964 = vpop.f32.mrb[0].mxu0
        %v1965 = vpop.f32.mrb[0].mxu0
        %v1966 = vadd.f32 0.0, %v1965
        %v1967 = vpop.f32.mrb[0].mxu0
        %1968 = vmatprep.mubr.bf16.mxu0 0
        %1969 = vmatmul.mubr.bf16.gmra.mrb[0].mxu0 %v1836
        %v1970 = vpop.f32.mrb[0].mxu0
        %v1971 = vadd.f32 0.0, %v1970
        %v1972 = vpop.f32.mrb[0].mxu0
        %v1973 = vpop.f32.mrb[0].mxu0
        %v1974 = vadd.f32 0.0, %v1973
        %v1975 = vpop.f32.mrb[0].mxu0
        %1976 = vmatprep.mubr.bf16.mxu0 0
        %1977 = vmatmul.mubr.bf16.gmra.mrb[0].mxu0 %v1839
        %v1978 = vpop.f32.mrb[0].mxu0
        %v1979 = vadd.f32 0.0, %v1978
        %v1980 = vpop.f32.mrb[0].mxu0
        %v1981 = vpop.f32.mrb[0].mxu0
        %v1982 = vadd.f32 0.0, %v1981
        %v1983 = vpop.f32.mrb[0].mxu0
        %1984 = vmatprep.mubr.bf16.mxu0 0
        %1985 = vmatmul.mubr.bf16.gmra.mrb[0].mxu0 %v1842
        %v1986 = vpop.f32.mrb[0].mxu0
        %v1987 = vadd.f32 0.0, %v1986
        %v1988 = vpop.f32.mrb[0].mxu0
        %v1989 = vpop.f32.mrb[0].mxu0
        %v1990 = vadd.f32 0.0, %v1989
        %v1991 = vpop.f32.mrb[0].mxu0
        %1992 = vmatprep.mubr.bf16.mxu0 0
        %1993 = vmatmul.mubr.bf16.gmra.mrb[0].mxu0 %v1845
        %v1994 = vpop.f32.mrb[0].mxu0
        %v1995 = vadd.f32 0.0, %v1994
        %v1996 = vpop.f32.mrb[0].mxu0
        %v1997 = vpop.f32.mrb[0].mxu0
        %v1998 = vadd.f32 0.0, %v1997
        %v1999 = vpop.f32.mrb[0].mxu0
        %2000 = vmatprep.mubr.bf16.mxu0 0
        %2001 = vmatmul.mubr.bf16.gmra.mrb[0].mxu0 %v1848
        %v2002 = vpop.f32.mrb[0].mxu0
        %v2003 = vadd.f32 0.0, %v2002
        %v2004 = vpop.f32.mrb[0].mxu0
        %v2005 = vpop.f32.mrb[0].mxu0
        %v2006 = vadd.f32 0.0, %v2005
        %v2007 = vpop.f32.mrb[0].mxu0
        %2008 = vmatprep.mubr.bf16.mxu0 0
        %2009 = vmatmul.mubr.bf16.gmra.mrb[0].mxu0 %v1851
        %v2010 = vpop.f32.mrb[0].mxu0
        %v2011 = vadd.f32 0.0, %v2010
        %v2012 = vpop.f32.mrb[0].mxu0
        %v2013 = vpop.f32.mrb[0].mxu0
        %v2014 = vadd.f32 0.0, %v2013
        %v2015 = vpop.f32.mrb[0].mxu0
        %2016 = vdwg.mxu0
        %v2017 = vadd.f32 %v1655, %v1891
        %v2018 = vadd.f32 %v1656, %v1894
        %v2019 = vadd.f32 %v1657, %v1899
        %v2020 = vadd.f32 %v1658, %v1902
        %v2021 = vadd.f32 %v1659, %v1907
        %v2022 = vadd.f32 %v1660, %v1910
        %v2023 = vadd.f32 %v1661, %v1915
        %v2024 = vadd.f32 %v1662, %v1918
        %v2025 = vadd.f32 %v1663, %v1923
        %v2026 = vadd.f32 %v1664, %v1926
        %v2027 = vadd.f32 %v1665, %v1931
        %v2028 = vadd.f32 %v1666, %v1934
        %v2029 = vadd.f32 %v1667, %v1939
        %v2030 = vadd.f32 %v1668, %v1942
        %v2031 = vadd.f32 %v1669, %v1947
        %v2032 = vadd.f32 %v1670, %v1950
        %v2033 = vadd.f32 %v1671, %v1955
        %v2034 = vadd.f32 %v1672, %v1958
        %v2035 = vadd.f32 %v1673, %v1963
        %v2036 = vadd.f32 %v1674, %v1966
        %v2037 = vadd.f32 %v1675, %v1971
        %v2038 = vadd.f32 %v1676, %v1974
        %v2039 = vadd.f32 %v1677, %v1979
        %v2040 = vadd.f32 %v1678, %v1982
        %v2041 = vadd.f32 %v1679, %v1987
        %v2042 = vadd.f32 %v1680, %v1990
        %v2043 = vadd.f32 %v1681, %v1995
        %v2044 = vadd.f32 %v1682, %v1998
        %v2045 = vadd.f32 %v1683, %v2003
        %v2046 = vadd.f32 %v1684, %v2006
        %v2047 = vadd.f32 %v1685, %v2011
        %v2048 = vadd.f32 %v1686, %v2014
        %v2049 = vld [vmem:[%s1690] sm:$0xf]
        %v2050 = vld [vmem:[%s1690 + $0x4] sm:$0xf]
        %v2051 = vld [vmem:[%s1690 + $0x8] sm:$0x1]
        %v2052 = vld [vmem:[%s1690 + $0xc] sm:$0xf]
        %v2053 = vld [vmem:[%s1690 + $0x10] sm:$0xf]
        %v2054 = vld [vmem:[%s1690 + $0x14] sm:$0x1]
        %v2055 = vld [vmem:[%s1690 + $0x18] sm:$0xf]
        %v2056 = vld [vmem:[%s1690 + $0x1c] sm:$0xf]
        %v2057 = vld [vmem:[%s1690 + $0x20] sm:$0x1]
        %v2058 = vld [vmem:[%s1690 + $0x24] sm:$0xf]
        %v2059 = vld [vmem:[%s1690 + $0x28] sm:$0xf]
        %v2060 = vld [vmem:[%s1690 + $0x2c] sm:$0x1]
        %v2061 = vld [vmem:[%s1690 + $0x30] sm:$0xf]
        %v2062 = vld [vmem:[%s1690 + $0x34] sm:$0xf]
        %v2063 = vld [vmem:[%s1690 + $0x38] sm:$0x1]
        %v2064 = vld [vmem:[%s1690 + $0x3c] sm:$0xf]
        %v2065 = vld [vmem:[%s1690 + $0x40] sm:$0xf]
        %v2066 = vld [vmem:[%s1690 + $0x44] sm:$0x1]
        %v2067 = vld [vmem:[%s1690 + $0x48] sm:$0xf]
        %v2068 = vld [vmem:[%s1690 + $0x4c] sm:$0xf]
        %v2069 = vld [vmem:[%s1690 + $0x50] sm:$0x1]
        %v2070 = vld [vmem:[%s1690 + $0x54] sm:$0xf]
        %v2071 = vld [vmem:[%s1690 + $0x58] sm:$0xf]
        %v2072 = vld [vmem:[%s1690 + $0x5c] sm:$0x1]
        %v2073 = vld [vmem:[%s1690 + $0x60] sm:$0xf]
        %v2074 = vld [vmem:[%s1690 + $0x64] sm:$0xf]
        %v2075 = vld [vmem:[%s1690 + $0x68] sm:$0x1]
        %v2076 = vld [vmem:[%s1690 + $0x6c] sm:$0xf]
        %v2077 = vld [vmem:[%s1690 + $0x70] sm:$0xf]
        %v2078 = vld [vmem:[%s1690 + $0x74] sm:$0x1]
        %v2079 = vld [vmem:[%s1690 + $0x78] sm:$0xf]
        %v2080 = vld [vmem:[%s1690 + $0x7c] sm:$0xf]
        %v2081 = vld [vmem:[%s1690 + $0x80] sm:$0x1]
        %v2082 = vld [vmem:[%s1690 + $0x84] sm:$0xf]
        %v2083 = vld [vmem:[%s1690 + $0x88] sm:$0xf]
        %v2084 = vld [vmem:[%s1690 + $0x8c] sm:$0x1]
        %v2085 = vld [vmem:[%s1690 + $0x90] sm:$0xf]
        %v2086 = vld [vmem:[%s1690 + $0x94] sm:$0xf]
        %v2087 = vld [vmem:[%s1690 + $0x98] sm:$0x1]
        %v2088 = vld [vmem:[%s1690 + $0x9c] sm:$0xf]
        %v2089 = vld [vmem:[%s1690 + $0xa0] sm:$0xf]
        %v2090 = vld [vmem:[%s1690 + $0xa4] sm:$0x1]
        %v2091 = vld [vmem:[%s1690 + $0xa8] sm:$0xf]
        %v2092 = vld [vmem:[%s1690 + $0xac] sm:$0xf]
        %v2093 = vld [vmem:[%s1690 + $0xb0] sm:$0x1]
        %v2094 = vld [vmem:[%s1690 + $0xb4] sm:$0xf]
        %v2095 = vld [vmem:[%s1690 + $0xb8] sm:$0xf]
        %v2096 = vld [vmem:[%s1690 + $0xbc] sm:$0x1]
        %v2098 = vshrl.u32 %v2049, 16
        %v2100 = vrot.slane %v2098, 4
        %v2101 = vshll.u32 %v2049, 16
        %v2103 = vrot.slane %v2101, 5
        %v2104 = vor.u32 %v2100, %v2103
        %v2105 = vrot.slane %v2104, 4
        %v2107 = vshll.u32 %v2050, 16
        %v2109 = vrot.slane %v2107, 5
        %v2110 = vsel %vm289, %v2105, %v2109
        %v2111 = vshrl.u32 %v2050, 16
        %v2113 = vrot.slane %v2111, 4
        %v2114 = vor.u32 %v2113, %v2109
        %v2115 = vrot.slane %v2114, 4
        %v2117 = vshll.u32 %v2051, 16
        %v2119 = vrot.slane %v2117, 5
        %v2120 = vsel %vm289, %v2115, %v2119
        %v2122 = vshrl.u32 %v2052, 16
        %v2124 = vrot.slane %v2122, 4
        %v2125 = vshll.u32 %v2052, 16
        %v2127 = vrot.slane %v2125, 5
        %v2128 = vor.u32 %v2124, %v2127
        %v2129 = vrot.slane %v2128, 4
        %v2131 = vshll.u32 %v2053, 16
        %v2133 = vrot.slane %v2131, 5
        %v2134 = vsel %vm289, %v2129, %v2133
        %v2135 = vshrl.u32 %v2053, 16
        %v2137 = vrot.slane %v2135, 4
        %v2138 = vor.u32 %v2137, %v2133
        %v2139 = vrot.slane %v2138, 4
        %v2141 = vshll.u32 %v2054, 16
        %v2143 = vrot.slane %v2141, 5
        %v2144 = vsel %vm289, %v2139, %v2143
        %v2146 = vshrl.u32 %v2055, 16
        %v2148 = vrot.slane %v2146, 4
        %v2149 = vshll.u32 %v2055, 16
        %v2151 = vrot.slane %v2149, 5
        %v2152 = vor.u32 %v2148, %v2151
        %v2153 = vrot.slane %v2152, 4
        %v2155 = vshll.u32 %v2056, 16
        %v2157 = vrot.slane %v2155, 5
        %v2158 = vsel %vm289, %v2153, %v2157
        %v2159 = vshrl.u32 %v2056, 16
        %v2161 = vrot.slane %v2159, 4
        %v2162 = vor.u32 %v2161, %v2157
        %v2163 = vrot.slane %v2162, 4
        %v2165 = vshll.u32 %v2057, 16
        %v2167 = vrot.slane %v2165, 5
        %v2168 = vsel %vm289, %v2163, %v2167
        %v2170 = vshrl.u32 %v2058, 16
        %v2172 = vrot.slane %v2170, 4
        %v2173 = vshll.u32 %v2058, 16
        %v2175 = vrot.slane %v2173, 5
        %v2176 = vor.u32 %v2172, %v2175
        %v2177 = vrot.slane %v2176, 4
        %v2179 = vshll.u32 %v2059, 16
        %v2181 = vrot.slane %v2179, 5
        %v2182 = vsel %vm289, %v2177, %v2181
        %v2183 = vshrl.u32 %v2059, 16
        %v2185 = vrot.slane %v2183, 4
        %v2186 = vor.u32 %v2185, %v2181
        %v2187 = vrot.slane %v2186, 4
        %v2189 = vshll.u32 %v2060, 16
        %v2191 = vrot.slane %v2189, 5
        %v2192 = vsel %vm289, %v2187, %v2191
        %v2194 = vshrl.u32 %v2061, 16
        %v2196 = vrot.slane %v2194, 4
        %v2197 = vshll.u32 %v2061, 16
        %v2199 = vrot.slane %v2197, 5
        %v2200 = vor.u32 %v2196, %v2199
        %v2201 = vrot.slane %v2200, 4
        %v2203 = vshll.u32 %v2062, 16
        %v2205 = vrot.slane %v2203, 5
        %v2206 = vsel %vm289, %v2201, %v2205
        %v2207 = vshrl.u32 %v2062, 16
        %v2209 = vrot.slane %v2207, 4
        %v2210 = vor.u32 %v2209, %v2205
        %v2211 = vrot.slane %v2210, 4
        %v2213 = vshll.u32 %v2063, 16
        %v2215 = vrot.slane %v2213, 5
        %v2216 = vsel %vm289, %v2211, %v2215
        %v2218 = vshrl.u32 %v2064, 16
        %v2220 = vrot.slane %v2218, 4
        %v2221 = vshll.u32 %v2064, 16
        %v2223 = vrot.slane %v2221, 5
        %v2224 = vor.u32 %v2220, %v2223
        %v2225 = vrot.slane %v2224, 4
        %v2227 = vshll.u32 %v2065, 16
        %v2229 = vrot.slane %v2227, 5
        %v2230 = vsel %vm289, %v2225, %v2229
        %v2231 = vshrl.u32 %v2065, 16
        %v2233 = vrot.slane %v2231, 4
        %v2234 = vor.u32 %v2233, %v2229
        %v2235 = vrot.slane %v2234, 4
        %v2237 = vshll.u32 %v2066, 16
        %v2239 = vrot.slane %v2237, 5
        %v2240 = vsel %vm289, %v2235, %v2239
        %v2242 = vshrl.u32 %v2067, 16
        %v2244 = vrot.slane %v2242, 4
        %v2245 = vshll.u32 %v2067, 16
        %v2247 = vrot.slane %v2245, 5
        %v2248 = vor.u32 %v2244, %v2247
        %v2249 = vrot.slane %v2248, 4
        %v2251 = vshll.u32 %v2068, 16
        %v2253 = vrot.slane %v2251, 5
        %v2254 = vsel %vm289, %v2249, %v2253
        %v2255 = vshrl.u32 %v2068, 16
        %v2257 = vrot.slane %v2255, 4
        %v2258 = vor.u32 %v2257, %v2253
        %v2259 = vrot.slane %v2258, 4
        %v2261 = vshll.u32 %v2069, 16
        %v2263 = vrot.slane %v2261, 5
        %v2264 = vsel %vm289, %v2259, %v2263
        %v2266 = vshrl.u32 %v2070, 16
        %v2268 = vrot.slane %v2266, 4
        %v2269 = vshll.u32 %v2070, 16
        %v2271 = vrot.slane %v2269, 5
        %v2272 = vor.u32 %v2268, %v2271
        %v2273 = vrot.slane %v2272, 4
        %v2275 = vshll.u32 %v2071, 16
        %v2277 = vrot.slane %v2275, 5
        %v2278 = vsel %vm289, %v2273, %v2277
        %v2279 = vshrl.u32 %v2071, 16
        %v2281 = vrot.slane %v2279, 4
        %v2282 = vor.u32 %v2281, %v2277
        %v2283 = vrot.slane %v2282, 4
        %v2285 = vshll.u32 %v2072, 16
        %v2287 = vrot.slane %v2285, 5
        %v2288 = vsel %vm289, %v2283, %v2287
        %v2290 = vshrl.u32 %v2073, 16
        %v2292 = vrot.slane %v2290, 4
        %v2293 = vshll.u32 %v2073, 16
        %v2295 = vrot.slane %v2293, 5
        %v2296 = vor.u32 %v2292, %v2295
        %v2297 = vrot.slane %v2296, 4
        %v2299 = vshll.u32 %v2074, 16
        %v2301 = vrot.slane %v2299, 5
        %v2302 = vsel %vm289, %v2297, %v2301
        %v2303 = vshrl.u32 %v2074, 16
        %v2305 = vrot.slane %v2303, 4
        %v2306 = vor.u32 %v2305, %v2301
        %v2307 = vrot.slane %v2306, 4
        %v2309 = vshll.u32 %v2075, 16
        %v2311 = vrot.slane %v2309, 5
        %v2312 = vsel %vm289, %v2307, %v2311
        %v2314 = vshrl.u32 %v2076, 16
        %v2316 = vrot.slane %v2314, 4
        %v2317 = vshll.u32 %v2076, 16
        %v2319 = vrot.slane %v2317, 5
        %v2320 = vor.u32 %v2316, %v2319
        %v2321 = vrot.slane %v2320, 4
        %v2323 = vshll.u32 %v2077, 16
        %v2325 = vrot.slane %v2323, 5
        %v2326 = vsel %vm289, %v2321, %v2325
        %v2327 = vshrl.u32 %v2077, 16
        %v2329 = vrot.slane %v2327, 4
        %v2330 = vor.u32 %v2329, %v2325
        %v2331 = vrot.slane %v2330, 4
        %v2333 = vshll.u32 %v2078, 16
        %v2335 = vrot.slane %v2333, 5
        %v2336 = vsel %vm289, %v2331, %v2335
        %v2338 = vshrl.u32 %v2079, 16
        %v2340 = vrot.slane %v2338, 4
        %v2341 = vshll.u32 %v2079, 16
        %v2343 = vrot.slane %v2341, 5
        %v2344 = vor.u32 %v2340, %v2343
        %v2345 = vrot.slane %v2344, 4
        %v2347 = vshll.u32 %v2080, 16
        %v2349 = vrot.slane %v2347, 5
        %v2350 = vsel %vm289, %v2345, %v2349
        %v2351 = vshrl.u32 %v2080, 16
        %v2353 = vrot.slane %v2351, 4
        %v2354 = vor.u32 %v2353, %v2349
        %v2355 = vrot.slane %v2354, 4
        %v2357 = vshll.u32 %v2081, 16
        %v2359 = vrot.slane %v2357, 5
        %v2360 = vsel %vm289, %v2355, %v2359
        %v2362 = vshrl.u32 %v2082, 16
        %v2364 = vrot.slane %v2362, 4
        %v2365 = vshll.u32 %v2082, 16
        %v2367 = vrot.slane %v2365, 5
        %v2368 = vor.u32 %v2364, %v2367
        %v2369 = vrot.slane %v2368, 4
        %v2371 = vshll.u32 %v2083, 16
        %v2373 = vrot.slane %v2371, 5
        %v2374 = vsel %vm289, %v2369, %v2373
        %v2375 = vshrl.u32 %v2083, 16
        %v2377 = vrot.slane %v2375, 4
        %v2378 = vor.u32 %v2377, %v2373
        %v2379 = vrot.slane %v2378, 4
        %v2381 = vshll.u32 %v2084, 16
        %v2383 = vrot.slane %v2381, 5
        %v2384 = vsel %vm289, %v2379, %v2383
        %v2386 = vshrl.u32 %v2085, 16
        %v2388 = vrot.slane %v2386, 4
        %v2389 = vshll.u32 %v2085, 16
        %v2391 = vrot.slane %v2389, 5
        %v2392 = vor.u32 %v2388, %v2391
        %v2393 = vrot.slane %v2392, 4
        %v2395 = vshll.u32 %v2086, 16
        %v2397 = vrot.slane %v2395, 5
        %v2398 = vsel %vm289, %v2393, %v2397
        %v2399 = vshrl.u32 %v2086, 16
        %v2401 = vrot.slane %v2399, 4
        %v2402 = vor.u32 %v2401, %v2397
        %v2403 = vrot.slane %v2402, 4
        %v2405 = vshll.u32 %v2087, 16
        %v2407 = vrot.slane %v2405, 5
        %v2408 = vsel %vm289, %v2403, %v2407
        %v2410 = vshrl.u32 %v2088, 16
        %v2412 = vrot.slane %v2410, 4
        %v2413 = vshll.u32 %v2088, 16
        %v2415 = vrot.slane %v2413, 5
        %v2416 = vor.u32 %v2412, %v2415
        %v2417 = vrot.slane %v2416, 4
        %v2419 = vshll.u32 %v2089, 16
        %v2421 = vrot.slane %v2419, 5
        %v2422 = vsel %vm289, %v2417, %v2421
        %v2423 = vshrl.u32 %v2089, 16
        %v2425 = vrot.slane %v2423, 4
        %v2426 = vor.u32 %v2425, %v2421
        %v2427 = vrot.slane %v2426, 4
        %v2429 = vshll.u32 %v2090, 16
        %v2431 = vrot.slane %v2429, 5
        %v2432 = vsel %vm289, %v2427, %v2431
        %v2434 = vshrl.u32 %v2091, 16
        %v2436 = vrot.slane %v2434, 4
        %v2437 = vshll.u32 %v2091, 16
        %v2439 = vrot.slane %v2437, 5
        %v2440 = vor.u32 %v2436, %v2439
        %v2441 = vrot.slane %v2440, 4
        %v2443 = vshll.u32 %v2092, 16
        %v2445 = vrot.slane %v2443, 5
        %v2446 = vsel %vm289, %v2441, %v2445
        %v2447 = vshrl.u32 %v2092, 16
        %v2449 = vrot.slane %v2447, 4
        %v2450 = vor.u32 %v2449, %v2445
        %v2451 = vrot.slane %v2450, 4
        %v2453 = vshll.u32 %v2093, 16
        %v2455 = vrot.slane %v2453, 5
        %v2456 = vsel %vm289, %v2451, %v2455
        %v2458 = vshrl.u32 %v2094, 16
        %v2460 = vrot.slane %v2458, 4
        %v2461 = vshll.u32 %v2094, 16
        %v2463 = vrot.slane %v2461, 5
        %v2464 = vor.u32 %v2460, %v2463
        %v2465 = vrot.slane %v2464, 4
        %v2467 = vshll.u32 %v2095, 16
        %v2469 = vrot.slane %v2467, 5
        %v2470 = vsel %vm289, %v2465, %v2469
        %v2471 = vshrl.u32 %v2095, 16
        %v2473 = vrot.slane %v2471, 4
        %v2474 = vor.u32 %v2473, %v2469
        %v2475 = vrot.slane %v2474, 4
        %v2477 = vshll.u32 %v2096, 16
        %v2479 = vrot.slane %v2477, 5
        %v2480 = vsel %vm289, %v2475, %v2479
        %s2481 = scalar_lea.vmem %s1, 8
        %v2482 = vld [vmem:[%s2481] sm:$0x3]
        %v2483 = vunpack.c.l.b16 %v2110
        %v2484 = vunpack.c.l.b16 %v2120
        %v2485 = vunpack.c.l.b16 %v2134
        %v2486 = vunpack.c.l.b16 %v2144
        %v2487 = vunpack.c.l.b16 %v2158
        %v2488 = vunpack.c.l.b16 %v2168
        %v2489 = vunpack.c.l.b16 %v2182
        %v2490 = vunpack.c.l.b16 %v2192
        %v2491 = vunpack.c.l.b16 %v2206
        %v2492 = vunpack.c.l.b16 %v2216
        %v2493 = vunpack.c.l.b16 %v2230
        %v2494 = vunpack.c.l.b16 %v2240
        %v2495 = vunpack.c.l.b16 %v2254
        %v2496 = vunpack.c.l.b16 %v2264
        %v2497 = vunpack.c.l.b16 %v2278
        %v2498 = vunpack.c.l.b16 %v2288
        %v2499 = vunpack.c.l.b16 %v2302
        %v2500 = vunpack.c.l.b16 %v2312
        %v2501 = vunpack.c.l.b16 %v2326
        %v2502 = vunpack.c.l.b16 %v2336
        %v2503 = vunpack.c.l.b16 %v2350
        %v2504 = vunpack.c.l.b16 %v2360
        %v2505 = vunpack.c.l.b16 %v2374
        %v2506 = vunpack.c.l.b16 %v2384
        %v2507 = vunpack.c.l.b16 %v2398
        %v2508 = vunpack.c.l.b16 %v2408
        %v2509 = vunpack.c.l.b16 %v2422
        %v2510 = vunpack.c.l.b16 %v2432
        %v2511 = vunpack.c.l.b16 %v2446
        %v2512 = vunpack.c.l.b16 %v2456
        %v2513 = vunpack.c.l.b16 %v2470
        %v2514 = vunpack.c.l.b16 %v2480
        %v2515 = vpack.c.b16 %v2484, %v2483
        %v2516 = vpack.c.b16 %v2486, %v2485
        %v2517 = vpack.c.b16 %v2488, %v2487
        %v2518 = vpack.c.b16 %v2490, %v2489
        %v2519 = vpack.c.b16 %v2492, %v2491
        %v2520 = vpack.c.b16 %v2494, %v2493
        %v2521 = vpack.c.b16 %v2496, %v2495
        %v2522 = vpack.c.b16 %v2498, %v2497
        %v2523 = vpack.c.b16 %v2500, %v2499
        %v2524 = vpack.c.b16 %v2502, %v2501
        %v2525 = vpack.c.b16 %v2504, %v2503
        %v2526 = vpack.c.b16 %v2506, %v2505
        %v2527 = vpack.c.b16 %v2508, %v2507
        %v2528 = vpack.c.b16 %v2510, %v2509
        %v2529 = vpack.c.b16 %v2512, %v2511
        %v2530 = vpack.c.b16 %v2514, %v2513
        %v2532 = vsel %vm724, %v2515, 0
        %v2535 = vsel %vm724, %v2516, 0
        %v2538 = vsel %vm724, %v2517, 0
        %v2541 = vsel %vm724, %v2518, 0
        %v2544 = vsel %vm724, %v2519, 0
        %v2547 = vsel %vm724, %v2520, 0
        %v2550 = vsel %vm724, %v2521, 0
        %v2553 = vsel %vm724, %v2522, 0
        %v2556 = vsel %vm724, %v2523, 0
        %v2559 = vsel %vm724, %v2524, 0
        %v2562 = vsel %vm724, %v2525, 0
        %v2565 = vsel %vm724, %v2526, 0
        %v2568 = vsel %vm724, %v2527, 0
        %v2571 = vsel %vm724, %v2528, 0
        %v2574 = vsel %vm724, %v2529, 0
        %v2577 = vsel %vm724, %v2530, 0
        %v2580 = vsel %vm773, %v2482, 0
        %2582 = vmatprep.subr.bf16.mxu0 0
        %2583 = vmatpush1.bf16.msra.mxu0 %v2580
        %2584 = vmatprep.subr.bf16.mxu0 0
        %2585 = vmatpush1.bf16.msra.mxu0 0
        %2586 = vmatprep.subr.bf16.mxu0 0
        %2587 = vmatpush1.bf16.msra.mxu0 0
        %2588 = vmatprep.subr.bf16.mxu0 0
        %2589 = vmatpush1.bf16.msra.mxu0 0
        %2590 = vmatprep.subr.bf16.mxu0 0
        %2591 = vmatpush1.bf16.msra.mxu0 0
        %2592 = vmatprep.subr.bf16.mxu0 0
        %2593 = vmatpush1.bf16.msra.mxu0 0
        %2594 = vmatprep.subr.bf16.mxu0 0
        %2595 = vmatpush1.bf16.msra.mxu0 0
        %2596 = vmatprep.subr.bf16.mxu0 0
        %2597 = vmatpush1.bf16.msra.mxu0 0
        %2598 = vmatprep.subr.bf16.mxu0 0
        %2599 = vmatpush1.bf16.msra.mxu0 0
        %2600 = vmatprep.subr.bf16.mxu0 0
        %2601 = vmatpush1.bf16.msra.mxu0 0
        %2602 = vmatprep.subr.bf16.mxu0 0
        %2603 = vmatpush1.bf16.msra.mxu0 0
        %2604 = vmatprep.subr.bf16.mxu0 0
        %2605 = vmatpush1.bf16.msra.mxu0 0
        %2606 = vmatprep.subr.bf16.mxu0 0
        %2607 = vmatpush1.bf16.msra.mxu0 0
        %2608 = vmatprep.subr.bf16.mxu0 0
        %2609 = vmatpush1.bf16.msra.mxu0 0
        %2610 = vmatprep.subr.bf16.mxu0 0
        %2611 = vmatpush1.bf16.msra.mxu0 0
        %2612 = vmatprep.subr.bf16.mxu0 0
        %2613 = vmatpush1.bf16.msra.mxu0 0
        %2614 = vmatprep.mubr.bf16.mxu0 0
        %2615 = vmatmul.mubr.bf16.gmra.mrb[0].mxu0 %v2532
        %v2616 = vpop.f32.mrb[0].mxu0
        %v2617 = vadd.f32 0.0, %v2616
        %v2618 = vpop.f32.mrb[0].mxu0
        %v2619 = vpop.f32.mrb[0].mxu0
        %v2620 = vadd.f32 0.0, %v2619
        %v2621 = vpop.f32.mrb[0].mxu0
        %2622 = vmatprep.mubr.bf16.mxu0 0
        %2623 = vmatmul.mubr.bf16.gmra.mrb[0].mxu0 %v2535
        %v2624 = vpop.f32.mrb[0].mxu0
        %v2625 = vadd.f32 0.0, %v2624
        %v2626 = vpop.f32.mrb[0].mxu0
        %v2627 = vpop.f32.mrb[0].mxu0
        %v2628 = vadd.f32 0.0, %v2627
        %v2629 = vpop.f32.mrb[0].mxu0
        %2630 = vmatprep.mubr.bf16.mxu0 0
        %2631 = vmatmul.mubr.bf16.gmra.mrb[0].mxu0 %v2538
        %v2632 = vpop.f32.mrb[0].mxu0
        %v2633 = vadd.f32 0.0, %v2632
        %v2634 = vpop.f32.mrb[0].mxu0
        %v2635 = vpop.f32.mrb[0].mxu0
        %v2636 = vadd.f32 0.0, %v2635
        %v2637 = vpop.f32.mrb[0].mxu0
        %2638 = vmatprep.mubr.bf16.mxu0 0
        %2639 = vmatmul.mubr.bf16.gmra.mrb[0].mxu0 %v2541
        %v2640 = vpop.f32.mrb[0].mxu0
        %v2641 = vadd.f32 0.0, %v2640
        %v2642 = vpop.f32.mrb[0].mxu0
        %v2643 = vpop.f32.mrb[0].mxu0
        %v2644 = vadd.f32 0.0, %v2643
        %v2645 = vpop.f32.mrb[0].mxu0
        %2646 = vmatprep.mubr.bf16.mxu0 0
        %2647 = vmatmul.mubr.bf16.gmra.mrb[0].mxu0 %v2544
        %v2648 = vpop.f32.mrb[0].mxu0
        %v2649 = vadd.f32 0.0, %v2648
        %v2650 = vpop.f32.mrb[0].mxu0
        %v2651 = vpop.f32.mrb[0].mxu0
        %v2652 = vadd.f32 0.0, %v2651
        %v2653 = vpop.f32.mrb[0].mxu0
        %2654 = vmatprep.mubr.bf16.mxu0 0
        %2655 = vmatmul.mubr.bf16.gmra.mrb[0].mxu0 %v2547
        %v2656 = vpop.f32.mrb[0].mxu0
        %v2657 = vadd.f32 0.0, %v2656
        %v2658 = vpop.f32.mrb[0].mxu0
        %v2659 = vpop.f32.mrb[0].mxu0
        %v2660 = vadd.f32 0.0, %v2659
        %v2661 = vpop.f32.mrb[0].mxu0
        %2662 = vmatprep.mubr.bf16.mxu0 0
        %2663 = vmatmul.mubr.bf16.gmra.mrb[0].mxu0 %v2550
        %v2664 = vpop.f32.mrb[0].mxu0
        %v2665 = vadd.f32 0.0, %v2664
        %v2666 = vpop.f32.mrb[0].mxu0
        %v2667 = vpop.f32.mrb[0].mxu0
        %v2668 = vadd.f32 0.0, %v2667
        %v2669 = vpop.f32.mrb[0].mxu0
        %2670 = vmatprep.mubr.bf16.mxu0 0
        %2671 = vmatmul.mubr.bf16.gmra.mrb[0].mxu0 %v2553
        %v2672 = vpop.f32.mrb[0].mxu0
        %v2673 = vadd.f32 0.0, %v2672
        %v2674 = vpop.f32.mrb[0].mxu0
        %v2675 = vpop.f32.mrb[0].mxu0
        %v2676 = vadd.f32 0.0, %v2675
        %v2677 = vpop.f32.mrb[0].mxu0
        %2678 = vmatprep.mubr.bf16.mxu0 0
        %2679 = vmatmul.mubr.bf16.gmra.mrb[0].mxu0 %v2556
        %v2680 = vpop.f32.mrb[0].mxu0
        %v2681 = vadd.f32 0.0, %v2680
        %v2682 = vpop.f32.mrb[0].mxu0
        %v2683 = vpop.f32.mrb[0].mxu0
        %v2684 = vadd.f32 0.0, %v2683
        %v2685 = vpop.f32.mrb[0].mxu0
        %2686 = vmatprep.mubr.bf16.mxu0 0
        %2687 = vmatmul.mubr.bf16.gmra.mrb[0].mxu0 %v2559
        %v2688 = vpop.f32.mrb[0].mxu0
        %v2689 = vadd.f32 0.0, %v2688
        %v2690 = vpop.f32.mrb[0].mxu0
        %v2691 = vpop.f32.mrb[0].mxu0
        %v2692 = vadd.f32 0.0, %v2691
        %v2693 = vpop.f32.mrb[0].mxu0
        %2694 = vmatprep.mubr.bf16.mxu0 0
        %2695 = vmatmul.mubr.bf16.gmra.mrb[0].mxu0 %v2562
        %v2696 = vpop.f32.mrb[0].mxu0
        %v2697 = vadd.f32 0.0, %v2696
        %v2698 = vpop.f32.mrb[0].mxu0
        %v2699 = vpop.f32.mrb[0].mxu0
        %v2700 = vadd.f32 0.0, %v2699
        %v2701 = vpop.f32.mrb[0].mxu0
        %2702 = vmatprep.mubr.bf16.mxu0 0
        %2703 = vmatmul.mubr.bf16.gmra.mrb[0].mxu0 %v2565
        %v2704 = vpop.f32.mrb[0].mxu0
        %v2705 = vadd.f32 0.0, %v2704
        %v2706 = vpop.f32.mrb[0].mxu0
        %v2707 = vpop.f32.mrb[0].mxu0
        %v2708 = vadd.f32 0.0, %v2707
        %v2709 = vpop.f32.mrb[0].mxu0
        %2710 = vmatprep.mubr.bf16.mxu0 0
        %2711 = vmatmul.mubr.bf16.gmra.mrb[0].mxu0 %v2568
        %v2712 = vpop.f32.mrb[0].mxu0
        %v2713 = vadd.f32 0.0, %v2712
        %v2714 = vpop.f32.mrb[0].mxu0
        %v2715 = vpop.f32.mrb[0].mxu0
        %v2716 = vadd.f32 0.0, %v2715
        %v2717 = vpop.f32.mrb[0].mxu0
        %2718 = vmatprep.mubr.bf16.mxu0 0
        %2719 = vmatmul.mubr.bf16.gmra.mrb[0].mxu0 %v2571
        %v2720 = vpop.f32.mrb[0].mxu0
        %v2721 = vadd.f32 0.0, %v2720
        %v2722 = vpop.f32.mrb[0].mxu0
        %v2723 = vpop.f32.mrb[0].mxu0
        %v2724 = vadd.f32 0.0, %v2723
        %v2725 = vpop.f32.mrb[0].mxu0
        %2726 = vmatprep.mubr.bf16.mxu0 0
        %2727 = vmatmul.mubr.bf16.gmra.mrb[0].mxu0 %v2574
        %v2728 = vpop.f32.mrb[0].mxu0
        %v2729 = vadd.f32 0.0, %v2728
        %v2730 = vpop.f32.mrb[0].mxu0
        %v2731 = vpop.f32.mrb[0].mxu0
        %v2732 = vadd.f32 0.0, %v2731
        %v2733 = vpop.f32.mrb[0].mxu0
        %2734 = vmatprep.mubr.bf16.mxu0 0
        %2735 = vmatmul.mubr.bf16.gmra.mrb[0].mxu0 %v2577
        %v2736 = vpop.f32.mrb[0].mxu0
        %v2737 = vadd.f32 0.0, %v2736
        %v2738 = vpop.f32.mrb[0].mxu0
        %v2739 = vpop.f32.mrb[0].mxu0
        %v2740 = vadd.f32 0.0, %v2739
        %v2741 = vpop.f32.mrb[0].mxu0
        %2742 = vdwg.mxu0
        %v2743 = vadd.f32 %v2017, %v2617
        %v2744 = vadd.f32 %v2018, %v2620
        %v2745 = vadd.f32 %v2019, %v2625
        %v2746 = vadd.f32 %v2020, %v2628
        %v2747 = vadd.f32 %v2021, %v2633
        %v2748 = vadd.f32 %v2022, %v2636
        %v2749 = vadd.f32 %v2023, %v2641
        %v2750 = vadd.f32 %v2024, %v2644
        %v2751 = vadd.f32 %v2025, %v2649
        %v2752 = vadd.f32 %v2026, %v2652
        %v2753 = vadd.f32 %v2027, %v2657
        %v2754 = vadd.f32 %v2028, %v2660
        %v2755 = vadd.f32 %v2029, %v2665
        %v2756 = vadd.f32 %v2030, %v2668
        %v2757 = vadd.f32 %v2031, %v2673
        %v2758 = vadd.f32 %v2032, %v2676
        %v2759 = vadd.f32 %v2033, %v2681
        %v2760 = vadd.f32 %v2034, %v2684
        %v2761 = vadd.f32 %v2035, %v2689
        %v2762 = vadd.f32 %v2036, %v2692
        %v2763 = vadd.f32 %v2037, %v2697
        %v2764 = vadd.f32 %v2038, %v2700
        %v2765 = vadd.f32 %v2039, %v2705
        %v2766 = vadd.f32 %v2040, %v2708
        %v2767 = vadd.f32 %v2041, %v2713
        %v2768 = vadd.f32 %v2042, %v2716
        %v2769 = vadd.f32 %v2043, %v2721
        %v2770 = vadd.f32 %v2044, %v2724
        %v2771 = vadd.f32 %v2045, %v2729
        %v2772 = vadd.f32 %v2046, %v2732
        %v2773 = vadd.f32 %v2047, %v2737
        %v2774 = vadd.f32 %v2048, %v2740
        %v2775 = vld [vmem:[%s1690] sm:$0xe]
        %v2776 = vld [vmem:[%s1690 + $0xc] sm:$0xe]
        %v2777 = vld [vmem:[%s1690 + $0x18] sm:$0xe]
        %v2778 = vld [vmem:[%s1690 + $0x24] sm:$0xe]
        %v2779 = vld [vmem:[%s1690 + $0x30] sm:$0xe]
        %v2780 = vld [vmem:[%s1690 + $0x3c] sm:$0xe]
        %v2781 = vld [vmem:[%s1690 + $0x48] sm:$0xe]
        %v2782 = vld [vmem:[%s1690 + $0x54] sm:$0xe]
        %v2783 = vld [vmem:[%s1690 + $0x60] sm:$0xe]
        %v2784 = vld [vmem:[%s1690 + $0x6c] sm:$0xe]
        %v2785 = vld [vmem:[%s1690 + $0x78] sm:$0xe]
        %v2786 = vld [vmem:[%s1690 + $0x84] sm:$0xe]
        %v2787 = vld [vmem:[%s1690 + $0x90] sm:$0xe]
        %v2788 = vld [vmem:[%s1690 + $0x9c] sm:$0xe]
        %v2789 = vld [vmem:[%s1690 + $0xa8] sm:$0xe]
        %v2790 = vld [vmem:[%s1690 + $0xb4] sm:$0xe]
        %v2839 = vrot.slane %v2775, 5
        %v2840 = vrot.slane %v2839, 4
        %v2841 = vrot.slane %v2050, 5
        %v2842 = vsel %vm1280, %v2840, %v2841
        %v2843 = vrot.slane %v2841, 4
        %v2844 = vrot.slane %v2051, 5
        %v2845 = vsel %vm1280, %v2843, %v2844
        %v2846 = vrot.slane %v2776, 5
        %v2847 = vrot.slane %v2846, 4
        %v2848 = vrot.slane %v2053, 5
        %v2849 = vsel %vm1280, %v2847, %v2848
        %v2850 = vrot.slane %v2848, 4
        %v2851 = vrot.slane %v2054, 5
        %v2852 = vsel %vm1280, %v2850, %v2851
        %v2853 = vrot.slane %v2777, 5
        %v2854 = vrot.slane %v2853, 4
        %v2855 = vrot.slane %v2056, 5
        %v2856 = vsel %vm1280, %v2854, %v2855
        %v2857 = vrot.slane %v2855, 4
        %v2858 = vrot.slane %v2057, 5
        %v2859 = vsel %vm1280, %v2857, %v2858
        %v2860 = vrot.slane %v2778, 5
        %v2861 = vrot.slane %v2860, 4
        %v2862 = vrot.slane %v2059, 5
        %v2863 = vsel %vm1280, %v2861, %v2862
        %v2864 = vrot.slane %v2862, 4
        %v2865 = vrot.slane %v2060, 5
        %v2866 = vsel %vm1280, %v2864, %v2865
        %v2867 = vrot.slane %v2779, 5
        %v2868 = vrot.slane %v2867, 4
        %v2869 = vrot.slane %v2062, 5
        %v2870 = vsel %vm1280, %v2868, %v2869
        %v2871 = vrot.slane %v2869, 4
        %v2872 = vrot.slane %v2063, 5
        %v2873 = vsel %vm1280, %v2871, %v2872
        %v2874 = vrot.slane %v2780, 5
        %v2875 = vrot.slane %v2874, 4
        %v2876 = vrot.slane %v2065, 5
        %v2877 = vsel %vm1280, %v2875, %v2876
        %v2878 = vrot.slane %v2876, 4
        %v2879 = vrot.slane %v2066, 5
        %v2880 = vsel %vm1280, %v2878, %v2879
        %v2881 = vrot.slane %v2781, 5
        %v2882 = vrot.slane %v2881, 4
        %v2883 = vrot.slane %v2068, 5
        %v2884 = vsel %vm1280, %v2882, %v2883
        %v2885 = vrot.slane %v2883, 4
        %v2886 = vrot.slane %v2069, 5
        %v2887 = vsel %vm1280, %v2885, %v2886
        %v2888 = vrot.slane %v2782, 5
        %v2889 = vrot.slane %v2888, 4
        %v2890 = vrot.slane %v2071, 5
        %v2891 = vsel %vm1280, %v2889, %v2890
        %v2892 = vrot.slane %v2890, 4
        %v2893 = vrot.slane %v2072, 5
        %v2894 = vsel %vm1280, %v2892, %v2893
        %v2895 = vrot.slane %v2783, 5
        %v2896 = vrot.slane %v2895, 4
        %v2897 = vrot.slane %v2074, 5
        %v2898 = vsel %vm1280, %v2896, %v2897
        %v2899 = vrot.slane %v2897, 4
        %v2900 = vrot.slane %v2075, 5
        %v2901 = vsel %vm1280, %v2899, %v2900
        %v2902 = vrot.slane %v2784, 5
        %v2903 = vrot.slane %v2902, 4
        %v2904 = vrot.slane %v2077, 5
        %v2905 = vsel %vm1280, %v2903, %v2904
        %v2906 = vrot.slane %v2904, 4
        %v2907 = vrot.slane %v2078, 5
        %v2908 = vsel %vm1280, %v2906, %v2907
        %v2909 = vrot.slane %v2785, 5
        %v2910 = vrot.slane %v2909, 4
        %v2911 = vrot.slane %v2080, 5
        %v2912 = vsel %vm1280, %v2910, %v2911
        %v2913 = vrot.slane %v2911, 4
        %v2914 = vrot.slane %v2081, 5
        %v2915 = vsel %vm1280, %v2913, %v2914
        %v2916 = vrot.slane %v2786, 5
        %v2917 = vrot.slane %v2916, 4
        %v2918 = vrot.slane %v2083, 5
        %v2919 = vsel %vm1280, %v2917, %v2918
        %v2920 = vrot.slane %v2918, 4
        %v2921 = vrot.slane %v2084, 5
        %v2922 = vsel %vm1280, %v2920, %v2921
        %v2923 = vrot.slane %v2787, 5
        %v2924 = vrot.slane %v2923, 4
        %v2925 = vrot.slane %v2086, 5
        %v2926 = vsel %vm1280, %v2924, %v2925
        %v2927 = vrot.slane %v2925, 4
        %v2928 = vrot.slane %v2087, 5
        %v2929 = vsel %vm1280, %v2927, %v2928
        %v2930 = vrot.slane %v2788, 5
        %v2931 = vrot.slane %v2930, 4
        %v2932 = vrot.slane %v2089, 5
        %v2933 = vsel %vm1280, %v2931, %v2932
        %v2934 = vrot.slane %v2932, 4
        %v2935 = vrot.slane %v2090, 5
        %v2936 = vsel %vm1280, %v2934, %v2935
        %v2937 = vrot.slane %v2789, 5
        %v2938 = vrot.slane %v2937, 4
        %v2939 = vrot.slane %v2092, 5
        %v2940 = vsel %vm1280, %v2938, %v2939
        %v2941 = vrot.slane %v2939, 4
        %v2942 = vrot.slane %v2093, 5
        %v2943 = vsel %vm1280, %v2941, %v2942
        %v2944 = vrot.slane %v2790, 5
        %v2945 = vrot.slane %v2944, 4
        %v2946 = vrot.slane %v2095, 5
        %v2947 = vsel %vm1280, %v2945, %v2946
        %v2948 = vrot.slane %v2946, 4
        %v2949 = vrot.slane %v2096, 5
        %v2950 = vsel %vm1280, %v2948, %v2949
        %s2951 = scalar_lea.vmem %s1, 10
        %v2952 = vld [vmem:[%s2951] sm:$0x3]
        %v2953 = vunpack.c.l.b16 %v2842
        %v2954 = vunpack.c.l.b16 %v2845
        %v2955 = vunpack.c.l.b16 %v2849
        %v2956 = vunpack.c.l.b16 %v2852
        %v2957 = vunpack.c.l.b16 %v2856
        %v2958 = vunpack.c.l.b16 %v2859
        %v2959 = vunpack.c.l.b16 %v2863
        %v2960 = vunpack.c.l.b16 %v2866
        %v2961 = vunpack.c.l.b16 %v2870
        %v2962 = vunpack.c.l.b16 %v2873
        %v2963 = vunpack.c.l.b16 %v2877
        %v2964 = vunpack.c.l.b16 %v2880
        %v2965 = vunpack.c.l.b16 %v2884
        %v2966 = vunpack.c.l.b16 %v2887
        %v2967 = vunpack.c.l.b16 %v2891
        %v2968 = vunpack.c.l.b16 %v2894
        %v2969 = vunpack.c.l.b16 %v2898
        %v2970 = vunpack.c.l.b16 %v2901
        %v2971 = vunpack.c.l.b16 %v2905
        %v2972 = vunpack.c.l.b16 %v2908
        %v2973 = vunpack.c.l.b16 %v2912
        %v2974 = vunpack.c.l.b16 %v2915
        %v2975 = vunpack.c.l.b16 %v2919
        %v2976 = vunpack.c.l.b16 %v2922
        %v2977 = vunpack.c.l.b16 %v2926
        %v2978 = vunpack.c.l.b16 %v2929
        %v2979 = vunpack.c.l.b16 %v2933
        %v2980 = vunpack.c.l.b16 %v2936
        %v2981 = vunpack.c.l.b16 %v2940
        %v2982 = vunpack.c.l.b16 %v2943
        %v2983 = vunpack.c.l.b16 %v2947
        %v2984 = vunpack.c.l.b16 %v2950
        %v2985 = vpack.c.b16 %v2954, %v2953
        %v2986 = vpack.c.b16 %v2956, %v2955
        %v2987 = vpack.c.b16 %v2958, %v2957
        %v2988 = vpack.c.b16 %v2960, %v2959
        %v2989 = vpack.c.b16 %v2962, %v2961
        %v2990 = vpack.c.b16 %v2964, %v2963
        %v2991 = vpack.c.b16 %v2966, %v2965
        %v2992 = vpack.c.b16 %v2968, %v2967
        %v2993 = vpack.c.b16 %v2970, %v2969
        %v2994 = vpack.c.b16 %v2972, %v2971
        %v2995 = vpack.c.b16 %v2974, %v2973
        %v2996 = vpack.c.b16 %v2976, %v2975
        %v2997 = vpack.c.b16 %v2978, %v2977
        %v2998 = vpack.c.b16 %v2980, %v2979
        %v2999 = vpack.c.b16 %v2982, %v2981
        %v3000 = vpack.c.b16 %v2984, %v2983
        %v3002 = vsel %vm724, %v2985, 0
        %v3005 = vsel %vm724, %v2986, 0
        %v3008 = vsel %vm724, %v2987, 0
        %v3011 = vsel %vm724, %v2988, 0
        %v3014 = vsel %vm724, %v2989, 0
        %v3017 = vsel %vm724, %v2990, 0
        %v3020 = vsel %vm724, %v2991, 0
        %v3023 = vsel %vm724, %v2992, 0
        %v3026 = vsel %vm724, %v2993, 0
        %v3029 = vsel %vm724, %v2994, 0
        %v3032 = vsel %vm724, %v2995, 0
        %v3035 = vsel %vm724, %v2996, 0
        %v3038 = vsel %vm724, %v2997, 0
        %v3041 = vsel %vm724, %v2998, 0
        %v3044 = vsel %vm724, %v2999, 0
        %v3047 = vsel %vm724, %v3000, 0
        %v3050 = vsel %vm773, %v2952, 0
        %3052 = vmatprep.subr.bf16.mxu0 0
        %3053 = vmatpush1.bf16.msra.mxu0 %v3050
        %3054 = vmatprep.subr.bf16.mxu0 0
        %3055 = vmatpush1.bf16.msra.mxu0 0
        %3056 = vmatprep.subr.bf16.mxu0 0
        %3057 = vmatpush1.bf16.msra.mxu0 0
        %3058 = vmatprep.subr.bf16.mxu0 0
        %3059 = vmatpush1.bf16.msra.mxu0 0
        %3060 = vmatprep.subr.bf16.mxu0 0
        %3061 = vmatpush1.bf16.msra.mxu0 0
        %3062 = vmatprep.subr.bf16.mxu0 0
        %3063 = vmatpush1.bf16.msra.mxu0 0
        %3064 = vmatprep.subr.bf16.mxu0 0
        %3065 = vmatpush1.bf16.msra.mxu0 0
        %3066 = vmatprep.subr.bf16.mxu0 0
        %3067 = vmatpush1.bf16.msra.mxu0 0
        %3068 = vmatprep.subr.bf16.mxu0 0
        %3069 = vmatpush1.bf16.msra.mxu0 0
        %3070 = vmatprep.subr.bf16.mxu0 0
        %3071 = vmatpush1.bf16.msra.mxu0 0
        %3072 = vmatprep.subr.bf16.mxu0 0
        %3073 = vmatpush1.bf16.msra.mxu0 0
        %3074 = vmatprep.subr.bf16.mxu0 0
        %3075 = vmatpush1.bf16.msra.mxu0 0
        %3076 = vmatprep.subr.bf16.mxu0 0
        %3077 = vmatpush1.bf16.msra.mxu0 0
        %3078 = vmatprep.subr.bf16.mxu0 0
        %3079 = vmatpush1.bf16.msra.mxu0 0
        %3080 = vmatprep.subr.bf16.mxu0 0
        %3081 = vmatpush1.bf16.msra.mxu0 0
        %3082 = vmatprep.subr.bf16.mxu0 0
        %3083 = vmatpush1.bf16.msra.mxu0 0
        %3084 = vmatprep.mubr.bf16.mxu0 0
        %3085 = vmatmul.mubr.bf16.gmra.mrb[0].mxu0 %v3002
        %v3086 = vpop.f32.mrb[0].mxu0
        %v3087 = vadd.f32 0.0, %v3086
        %v3088 = vpop.f32.mrb[0].mxu0
        %v3089 = vpop.f32.mrb[0].mxu0
        %v3090 = vadd.f32 0.0, %v3089
        %v3091 = vpop.f32.mrb[0].mxu0
        %3092 = vmatprep.mubr.bf16.mxu0 0
        %3093 = vmatmul.mubr.bf16.gmra.mrb[0].mxu0 %v3005
        %v3094 = vpop.f32.mrb[0].mxu0
        %v3095 = vadd.f32 0.0, %v3094
        %v3096 = vpop.f32.mrb[0].mxu0
        %v3097 = vpop.f32.mrb[0].mxu0
        %v3098 = vadd.f32 0.0, %v3097
        %v3099 = vpop.f32.mrb[0].mxu0
        %3100 = vmatprep.mubr.bf16.mxu0 0
        %3101 = vmatmul.mubr.bf16.gmra.mrb[0].mxu0 %v3008
        %v3102 = vpop.f32.mrb[0].mxu0
        %v3103 = vadd.f32 0.0, %v3102
        %v3104 = vpop.f32.mrb[0].mxu0
        %v3105 = vpop.f32.mrb[0].mxu0
        %v3106 = vadd.f32 0.0, %v3105
        %v3107 = vpop.f32.mrb[0].mxu0
        %3108 = vmatprep.mubr.bf16.mxu0 0
        %3109 = vmatmul.mubr.bf16.gmra.mrb[0].mxu0 %v3011
        %v3110 = vpop.f32.mrb[0].mxu0
        %v3111 = vadd.f32 0.0, %v3110
        %v3112 = vpop.f32.mrb[0].mxu0
        %v3113 = vpop.f32.mrb[0].mxu0
        %v3114 = vadd.f32 0.0, %v3113
        %v3115 = vpop.f32.mrb[0].mxu0
        %3116 = vmatprep.mubr.bf16.mxu0 0
        %3117 = vmatmul.mubr.bf16.gmra.mrb[0].mxu0 %v3014
        %v3118 = vpop.f32.mrb[0].mxu0
        %v3119 = vadd.f32 0.0, %v3118
        %v3120 = vpop.f32.mrb[0].mxu0
        %v3121 = vpop.f32.mrb[0].mxu0
        %v3122 = vadd.f32 0.0, %v3121
        %v3123 = vpop.f32.mrb[0].mxu0
        %3124 = vmatprep.mubr.bf16.mxu0 0
        %3125 = vmatmul.mubr.bf16.gmra.mrb[0].mxu0 %v3017
        %v3126 = vpop.f32.mrb[0].mxu0
        %v3127 = vadd.f32 0.0, %v3126
        %v3128 = vpop.f32.mrb[0].mxu0
        %v3129 = vpop.f32.mrb[0].mxu0
        %v3130 = vadd.f32 0.0, %v3129
        %v3131 = vpop.f32.mrb[0].mxu0
        %3132 = vmatprep.mubr.bf16.mxu0 0
        %3133 = vmatmul.mubr.bf16.gmra.mrb[0].mxu0 %v3020
        %v3134 = vpop.f32.mrb[0].mxu0
        %v3135 = vadd.f32 0.0, %v3134
        %v3136 = vpop.f32.mrb[0].mxu0
        %v3137 = vpop.f32.mrb[0].mxu0
        %v3138 = vadd.f32 0.0, %v3137
        %v3139 = vpop.f32.mrb[0].mxu0
        %3140 = vmatprep.mubr.bf16.mxu0 0
        %3141 = vmatmul.mubr.bf16.gmra.mrb[0].mxu0 %v3023
        %v3142 = vpop.f32.mrb[0].mxu0
        %v3143 = vadd.f32 0.0, %v3142
        %v3144 = vpop.f32.mrb[0].mxu0
        %v3145 = vpop.f32.mrb[0].mxu0
        %v3146 = vadd.f32 0.0, %v3145
        %v3147 = vpop.f32.mrb[0].mxu0
        %3148 = vmatprep.mubr.bf16.mxu0 0
        %3149 = vmatmul.mubr.bf16.gmra.mrb[0].mxu0 %v3026
        %v3150 = vpop.f32.mrb[0].mxu0
        %v3151 = vadd.f32 0.0, %v3150
        %v3152 = vpop.f32.mrb[0].mxu0
        %v3153 = vpop.f32.mrb[0].mxu0
        %v3154 = vadd.f32 0.0, %v3153
        %v3155 = vpop.f32.mrb[0].mxu0
        %3156 = vmatprep.mubr.bf16.mxu0 0
        %3157 = vmatmul.mubr.bf16.gmra.mrb[0].mxu0 %v3029
        %v3158 = vpop.f32.mrb[0].mxu0
        %v3159 = vadd.f32 0.0, %v3158
        %v3160 = vpop.f32.mrb[0].mxu0
        %v3161 = vpop.f32.mrb[0].mxu0
        %v3162 = vadd.f32 0.0, %v3161
        %v3163 = vpop.f32.mrb[0].mxu0
        %3164 = vmatprep.mubr.bf16.mxu0 0
        %3165 = vmatmul.mubr.bf16.gmra.mrb[0].mxu0 %v3032
        %v3166 = vpop.f32.mrb[0].mxu0
        %v3167 = vadd.f32 0.0, %v3166
        %v3168 = vpop.f32.mrb[0].mxu0
        %v3169 = vpop.f32.mrb[0].mxu0
        %v3170 = vadd.f32 0.0, %v3169
        %v3171 = vpop.f32.mrb[0].mxu0
        %3172 = vmatprep.mubr.bf16.mxu0 0
        %3173 = vmatmul.mubr.bf16.gmra.mrb[0].mxu0 %v3035
        %v3174 = vpop.f32.mrb[0].mxu0
        %v3175 = vadd.f32 0.0, %v3174
        %v3176 = vpop.f32.mrb[0].mxu0
        %v3177 = vpop.f32.mrb[0].mxu0
        %v3178 = vadd.f32 0.0, %v3177
        %v3179 = vpop.f32.mrb[0].mxu0
        %3180 = vmatprep.mubr.bf16.mxu0 0
        %3181 = vmatmul.mubr.bf16.gmra.mrb[0].mxu0 %v3038
        %v3182 = vpop.f32.mrb[0].mxu0
        %v3183 = vadd.f32 0.0, %v3182
        %v3184 = vpop.f32.mrb[0].mxu0
        %v3185 = vpop.f32.mrb[0].mxu0
        %v3186 = vadd.f32 0.0, %v3185
        %v3187 = vpop.f32.mrb[0].mxu0
        %3188 = vmatprep.mubr.bf16.mxu0 0
        %3189 = vmatmul.mubr.bf16.gmra.mrb[0].mxu0 %v3041
        %v3190 = vpop.f32.mrb[0].mxu0
        %v3191 = vadd.f32 0.0, %v3190
        %v3192 = vpop.f32.mrb[0].mxu0
        %v3193 = vpop.f32.mrb[0].mxu0
        %v3194 = vadd.f32 0.0, %v3193
        %v3195 = vpop.f32.mrb[0].mxu0
        %3196 = vmatprep.mubr.bf16.mxu0 0
        %3197 = vmatmul.mubr.bf16.gmra.mrb[0].mxu0 %v3044
        %v3198 = vpop.f32.mrb[0].mxu0
        %v3199 = vadd.f32 0.0, %v3198
        %v3200 = vpop.f32.mrb[0].mxu0
        %v3201 = vpop.f32.mrb[0].mxu0
        %v3202 = vadd.f32 0.0, %v3201
        %v3203 = vpop.f32.mrb[0].mxu0
        %3204 = vmatprep.mubr.bf16.mxu0 0
        %3205 = vmatmul.mubr.bf16.gmra.mrb[0].mxu0 %v3047
        %v3206 = vpop.f32.mrb[0].mxu0
        %v3207 = vadd.f32 0.0, %v3206
        %v3208 = vpop.f32.mrb[0].mxu0
        %v3209 = vpop.f32.mrb[0].mxu0
        %v3210 = vadd.f32 0.0, %v3209
        %v3211 = vpop.f32.mrb[0].mxu0
        %3212 = vdwg.mxu0
        %v3213 = vadd.f32 %v2743, %v3087
        %v3214 = vadd.f32 %v2744, %v3090
        %v3215 = vadd.f32 %v2745, %v3095
        %v3216 = vadd.f32 %v2746, %v3098
        %v3217 = vadd.f32 %v2747, %v3103
        %v3218 = vadd.f32 %v2748, %v3106
        %v3219 = vadd.f32 %v2749, %v3111
        %v3220 = vadd.f32 %v2750, %v3114
        %v3221 = vadd.f32 %v2751, %v3119
        %v3222 = vadd.f32 %v2752, %v3122
        %v3223 = vadd.f32 %v2753, %v3127
        %v3224 = vadd.f32 %v2754, %v3130
        %v3225 = vadd.f32 %v2755, %v3135
        %v3226 = vadd.f32 %v2756, %v3138
        %v3227 = vadd.f32 %v2757, %v3143
        %v3228 = vadd.f32 %v2758, %v3146
        %v3229 = vadd.f32 %v2759, %v3151
        %v3230 = vadd.f32 %v2760, %v3154
        %v3231 = vadd.f32 %v2761, %v3159
        %v3232 = vadd.f32 %v2762, %v3162
        %v3233 = vadd.f32 %v2763, %v3167
        %v3234 = vadd.f32 %v2764, %v3170
        %v3235 = vadd.f32 %v2765, %v3175
        %v3236 = vadd.f32 %v2766, %v3178
        %v3237 = vadd.f32 %v2767, %v3183
        %v3238 = vadd.f32 %v2768, %v3186
        %v3239 = vadd.f32 %v2769, %v3191
        %v3240 = vadd.f32 %v2770, %v3194
        %v3241 = vadd.f32 %v2771, %v3199
        %v3242 = vadd.f32 %v2772, %v3202
        %v3243 = vadd.f32 %v2773, %v3207
        %v3244 = vadd.f32 %v2774, %v3210
        %s3245 = sadd.s32 %s234, 2
        %s3246 = smul.u32 %s3245, 3
        %s3247 = smul.addr %s3246, 4
        %s3248 = scalar_lea.vmem %s231, %s3247
        %v3249 = vld [vmem:[%s3248] sm:$0xf]
        %v3250 = vld [vmem:[%s3248 + $0x4] sm:$0xf]
        %v3251 = vld [vmem:[%s3248 + $0xc] sm:$0xf]
        %v3252 = vld [vmem:[%s3248 + $0x10] sm:$0xf]
        %v3253 = vld [vmem:[%s3248 + $0x18] sm:$0xf]
        %v3254 = vld [vmem:[%s3248 + $0x1c] sm:$0xf]
        %v3255 = vld [vmem:[%s3248 + $0x24] sm:$0xf]
        %v3256 = vld [vmem:[%s3248 + $0x28] sm:$0xf]
        %v3257 = vld [vmem:[%s3248 + $0x30] sm:$0xf]
        %v3258 = vld [vmem:[%s3248 + $0x34] sm:$0xf]
        %v3259 = vld [vmem:[%s3248 + $0x3c] sm:$0xf]
        %v3260 = vld [vmem:[%s3248 + $0x40] sm:$0xf]
        %v3261 = vld [vmem:[%s3248 + $0x48] sm:$0xf]
        %v3262 = vld [vmem:[%s3248 + $0x4c] sm:$0xf]
        %v3263 = vld [vmem:[%s3248 + $0x54] sm:$0xf]
        %v3264 = vld [vmem:[%s3248 + $0x58] sm:$0xf]
        %v3265 = vld [vmem:[%s3248 + $0x60] sm:$0xf]
        %v3266 = vld [vmem:[%s3248 + $0x64] sm:$0xf]
        %v3267 = vld [vmem:[%s3248 + $0x6c] sm:$0xf]
        %v3268 = vld [vmem:[%s3248 + $0x70] sm:$0xf]
        %v3269 = vld [vmem:[%s3248 + $0x78] sm:$0xf]
        %v3270 = vld [vmem:[%s3248 + $0x7c] sm:$0xf]
        %v3271 = vld [vmem:[%s3248 + $0x84] sm:$0xf]
        %v3272 = vld [vmem:[%s3248 + $0x88] sm:$0xf]
        %v3273 = vld [vmem:[%s3248 + $0x90] sm:$0xf]
        %v3274 = vld [vmem:[%s3248 + $0x94] sm:$0xf]
        %v3275 = vld [vmem:[%s3248 + $0x9c] sm:$0xf]
        %v3276 = vld [vmem:[%s3248 + $0xa0] sm:$0xf]
        %v3277 = vld [vmem:[%s3248 + $0xa8] sm:$0xf]
        %v3278 = vld [vmem:[%s3248 + $0xac] sm:$0xf]
        %v3279 = vld [vmem:[%s3248 + $0xb4] sm:$0xf]
        %v3280 = vld [vmem:[%s3248 + $0xb8] sm:$0xf]
        %s3281 = scalar_lea.vmem %s1, 12
        %v3282 = vld [vmem:[%s3281] sm:$0x3]
        %v3315 = vunpack.c.l.b16 %v3249
        %v3316 = vunpack.c.l.b16 %v3250
        %v3317 = vunpack.c.l.b16 %v3251
        %v3318 = vunpack.c.l.b16 %v3252
        %v3319 = vunpack.c.l.b16 %v3253
        %v3320 = vunpack.c.l.b16 %v3254
        %v3321 = vunpack.c.l.b16 %v3255
        %v3322 = vunpack.c.l.b16 %v3256
        %v3323 = vunpack.c.l.b16 %v3257
        %v3324 = vunpack.c.l.b16 %v3258
        %v3325 = vunpack.c.l.b16 %v3259
        %v3326 = vunpack.c.l.b16 %v3260
        %v3327 = vunpack.c.l.b16 %v3261
        %v3328 = vunpack.c.l.b16 %v3262
        %v3329 = vunpack.c.l.b16 %v3263
        %v3330 = vunpack.c.l.b16 %v3264
        %v3331 = vunpack.c.l.b16 %v3265
        %v3332 = vunpack.c.l.b16 %v3266
        %v3333 = vunpack.c.l.b16 %v3267
        %v3334 = vunpack.c.l.b16 %v3268
        %v3335 = vunpack.c.l.b16 %v3269
        %v3336 = vunpack.c.l.b16 %v3270
        %v3337 = vunpack.c.l.b16 %v3271
        %v3338 = vunpack.c.l.b16 %v3272
        %v3339 = vunpack.c.l.b16 %v3273
        %v3340 = vunpack.c.l.b16 %v3274
        %v3341 = vunpack.c.l.b16 %v3275
        %v3342 = vunpack.c.l.b16 %v3276
        %v3343 = vunpack.c.l.b16 %v3277
        %v3344 = vunpack.c.l.b16 %v3278
        %v3345 = vunpack.c.l.b16 %v3279
        %v3346 = vunpack.c.l.b16 %v3280
        %v3347 = vpack.c.b16 %v3316, %v3315
        %v3348 = vpack.c.b16 %v3318, %v3317
        %v3349 = vpack.c.b16 %v3320, %v3319
        %v3350 = vpack.c.b16 %v3322, %v3321
        %v3351 = vpack.c.b16 %v3324, %v3323
        %v3352 = vpack.c.b16 %v3326, %v3325
        %v3353 = vpack.c.b16 %v3328, %v3327
        %v3354 = vpack.c.b16 %v3330, %v3329
        %v3355 = vpack.c.b16 %v3332, %v3331
        %v3356 = vpack.c.b16 %v3334, %v3333
        %v3357 = vpack.c.b16 %v3336, %v3335
        %v3358 = vpack.c.b16 %v3338, %v3337
        %v3359 = vpack.c.b16 %v3340, %v3339
        %v3360 = vpack.c.b16 %v3342, %v3341
        %v3361 = vpack.c.b16 %v3344, %v3343
        %v3362 = vpack.c.b16 %v3346, %v3345
        %v3364 = vsel %vm724, %v3347, 0
        %v3367 = vsel %vm724, %v3348, 0
        %v3370 = vsel %vm724, %v3349, 0
        %v3373 = vsel %vm724, %v3350, 0
        %v3376 = vsel %vm724, %v3351, 0
        %v3379 = vsel %vm724, %v3352, 0
        %v3382 = vsel %vm724, %v3353, 0
        %v3385 = vsel %vm724, %v3354, 0
        %v3388 = vsel %vm724, %v3355, 0
        %v3391 = vsel %vm724, %v3356, 0
        %v3394 = vsel %vm724, %v3357, 0
        %v3397 = vsel %vm724, %v3358, 0
        %v3400 = vsel %vm724, %v3359, 0
        %v3403 = vsel %vm724, %v3360, 0
        %v3406 = vsel %vm724, %v3361, 0
        %v3409 = vsel %vm724, %v3362, 0
        %v3412 = vsel %vm773, %v3282, 0
        %3414 = vmatprep.subr.bf16.mxu0 0
        %3415 = vmatpush1.bf16.msra.mxu0 %v3412
        %3416 = vmatprep.subr.bf16.mxu0 0
        %3417 = vmatpush1.bf16.msra.mxu0 0
        %3418 = vmatprep.subr.bf16.mxu0 0
        %3419 = vmatpush1.bf16.msra.mxu0 0
        %3420 = vmatprep.subr.bf16.mxu0 0
        %3421 = vmatpush1.bf16.msra.mxu0 0
        %3422 = vmatprep.subr.bf16.mxu0 0
        %3423 = vmatpush1.bf16.msra.mxu0 0
        %3424 = vmatprep.subr.bf16.mxu0 0
        %3425 = vmatpush1.bf16.msra.mxu0 0
        %3426 = vmatprep.subr.bf16.mxu0 0
        %3427 = vmatpush1.bf16.msra.mxu0 0
        %3428 = vmatprep.subr.bf16.mxu0 0
        %3429 = vmatpush1.bf16.msra.mxu0 0
        %3430 = vmatprep.subr.bf16.mxu0 0
        %3431 = vmatpush1.bf16.msra.mxu0 0
        %3432 = vmatprep.subr.bf16.mxu0 0
        %3433 = vmatpush1.bf16.msra.mxu0 0
        %3434 = vmatprep.subr.bf16.mxu0 0
        %3435 = vmatpush1.bf16.msra.mxu0 0
        %3436 = vmatprep.subr.bf16.mxu0 0
        %3437 = vmatpush1.bf16.msra.mxu0 0
        %3438 = vmatprep.subr.bf16.mxu0 0
        %3439 = vmatpush1.bf16.msra.mxu0 0
        %3440 = vmatprep.subr.bf16.mxu0 0
        %3441 = vmatpush1.bf16.msra.mxu0 0
        %3442 = vmatprep.subr.bf16.mxu0 0
        %3443 = vmatpush1.bf16.msra.mxu0 0
        %3444 = vmatprep.subr.bf16.mxu0 0
        %3445 = vmatpush1.bf16.msra.mxu0 0
        %3446 = vmatprep.mubr.bf16.mxu0 0
        %3447 = vmatmul.mubr.bf16.gmra.mrb[0].mxu0 %v3364
        %v3448 = vpop.f32.mrb[0].mxu0
        %v3449 = vadd.f32 0.0, %v3448
        %v3450 = vpop.f32.mrb[0].mxu0
        %v3451 = vpop.f32.mrb[0].mxu0
        %v3452 = vadd.f32 0.0, %v3451
        %v3453 = vpop.f32.mrb[0].mxu0
        %3454 = vmatprep.mubr.bf16.mxu0 0
        %3455 = vmatmul.mubr.bf16.gmra.mrb[0].mxu0 %v3367
        %v3456 = vpop.f32.mrb[0].mxu0
        %v3457 = vadd.f32 0.0, %v3456
        %v3458 = vpop.f32.mrb[0].mxu0
        %v3459 = vpop.f32.mrb[0].mxu0
        %v3460 = vadd.f32 0.0, %v3459
        %v3461 = vpop.f32.mrb[0].mxu0
        %3462 = vmatprep.mubr.bf16.mxu0 0
        %3463 = vmatmul.mubr.bf16.gmra.mrb[0].mxu0 %v3370
        %v3464 = vpop.f32.mrb[0].mxu0
        %v3465 = vadd.f32 0.0, %v3464
        %v3466 = vpop.f32.mrb[0].mxu0
        %v3467 = vpop.f32.mrb[0].mxu0
        %v3468 = vadd.f32 0.0, %v3467
        %v3469 = vpop.f32.mrb[0].mxu0
        %3470 = vmatprep.mubr.bf16.mxu0 0
        %3471 = vmatmul.mubr.bf16.gmra.mrb[0].mxu0 %v3373
        %v3472 = vpop.f32.mrb[0].mxu0
        %v3473 = vadd.f32 0.0, %v3472
        %v3474 = vpop.f32.mrb[0].mxu0
        %v3475 = vpop.f32.mrb[0].mxu0
        %v3476 = vadd.f32 0.0, %v3475
        %v3477 = vpop.f32.mrb[0].mxu0
        %3478 = vmatprep.mubr.bf16.mxu0 0
        %3479 = vmatmul.mubr.bf16.gmra.mrb[0].mxu0 %v3376
        %v3480 = vpop.f32.mrb[0].mxu0
        %v3481 = vadd.f32 0.0, %v3480
        %v3482 = vpop.f32.mrb[0].mxu0
        %v3483 = vpop.f32.mrb[0].mxu0
        %v3484 = vadd.f32 0.0, %v3483
        %v3485 = vpop.f32.mrb[0].mxu0
        %3486 = vmatprep.mubr.bf16.mxu0 0
        %3487 = vmatmul.mubr.bf16.gmra.mrb[0].mxu0 %v3379
        %v3488 = vpop.f32.mrb[0].mxu0
        %v3489 = vadd.f32 0.0, %v3488
        %v3490 = vpop.f32.mrb[0].mxu0
        %v3491 = vpop.f32.mrb[0].mxu0
        %v3492 = vadd.f32 0.0, %v3491
        %v3493 = vpop.f32.mrb[0].mxu0
        %3494 = vmatprep.mubr.bf16.mxu0 0
        %3495 = vmatmul.mubr.bf16.gmra.mrb[0].mxu0 %v3382
        %v3496 = vpop.f32.mrb[0].mxu0
        %v3497 = vadd.f32 0.0, %v3496
        %v3498 = vpop.f32.mrb[0].mxu0
        %v3499 = vpop.f32.mrb[0].mxu0
        %v3500 = vadd.f32 0.0, %v3499
        %v3501 = vpop.f32.mrb[0].mxu0
        %3502 = vmatprep.mubr.bf16.mxu0 0
        %3503 = vmatmul.mubr.bf16.gmra.mrb[0].mxu0 %v3385
        %v3504 = vpop.f32.mrb[0].mxu0
        %v3505 = vadd.f32 0.0, %v3504
        %v3506 = vpop.f32.mrb[0].mxu0
        %v3507 = vpop.f32.mrb[0].mxu0
        %v3508 = vadd.f32 0.0, %v3507
        %v3509 = vpop.f32.mrb[0].mxu0
        %3510 = vmatprep.mubr.bf16.mxu0 0
        %3511 = vmatmul.mubr.bf16.gmra.mrb[0].mxu0 %v3388
        %v3512 = vpop.f32.mrb[0].mxu0
        %v3513 = vadd.f32 0.0, %v3512
        %v3514 = vpop.f32.mrb[0].mxu0
        %v3515 = vpop.f32.mrb[0].mxu0
        %v3516 = vadd.f32 0.0, %v3515
        %v3517 = vpop.f32.mrb[0].mxu0
        %3518 = vmatprep.mubr.bf16.mxu0 0
        %3519 = vmatmul.mubr.bf16.gmra.mrb[0].mxu0 %v3391
        %v3520 = vpop.f32.mrb[0].mxu0
        %v3521 = vadd.f32 0.0, %v3520
        %v3522 = vpop.f32.mrb[0].mxu0
        %v3523 = vpop.f32.mrb[0].mxu0
        %v3524 = vadd.f32 0.0, %v3523
        %v3525 = vpop.f32.mrb[0].mxu0
        %3526 = vmatprep.mubr.bf16.mxu0 0
        %3527 = vmatmul.mubr.bf16.gmra.mrb[0].mxu0 %v3394
        %v3528 = vpop.f32.mrb[0].mxu0
        %v3529 = vadd.f32 0.0, %v3528
        %v3530 = vpop.f32.mrb[0].mxu0
        %v3531 = vpop.f32.mrb[0].mxu0
        %v3532 = vadd.f32 0.0, %v3531
        %v3533 = vpop.f32.mrb[0].mxu0
        %3534 = vmatprep.mubr.bf16.mxu0 0
        %3535 = vmatmul.mubr.bf16.gmra.mrb[0].mxu0 %v3397
        %v3536 = vpop.f32.mrb[0].mxu0
        %v3537 = vadd.f32 0.0, %v3536
        %v3538 = vpop.f32.mrb[0].mxu0
        %v3539 = vpop.f32.mrb[0].mxu0
        %v3540 = vadd.f32 0.0, %v3539
        %v3541 = vpop.f32.mrb[0].mxu0
        %3542 = vmatprep.mubr.bf16.mxu0 0
        %3543 = vmatmul.mubr.bf16.gmra.mrb[0].mxu0 %v3400
        %v3544 = vpop.f32.mrb[0].mxu0
        %v3545 = vadd.f32 0.0, %v3544
        %v3546 = vpop.f32.mrb[0].mxu0
        %v3547 = vpop.f32.mrb[0].mxu0
        %v3548 = vadd.f32 0.0, %v3547
        %v3549 = vpop.f32.mrb[0].mxu0
        %3550 = vmatprep.mubr.bf16.mxu0 0
        %3551 = vmatmul.mubr.bf16.gmra.mrb[0].mxu0 %v3403
        %v3552 = vpop.f32.mrb[0].mxu0
        %v3553 = vadd.f32 0.0, %v3552
        %v3554 = vpop.f32.mrb[0].mxu0
        %v3555 = vpop.f32.mrb[0].mxu0
        %v3556 = vadd.f32 0.0, %v3555
        %v3557 = vpop.f32.mrb[0].mxu0
        %3558 = vmatprep.mubr.bf16.mxu0 0
        %3559 = vmatmul.mubr.bf16.gmra.mrb[0].mxu0 %v3406
        %v3560 = vpop.f32.mrb[0].mxu0
        %v3561 = vadd.f32 0.0, %v3560
        %v3562 = vpop.f32.mrb[0].mxu0
        %v3563 = vpop.f32.mrb[0].mxu0
        %v3564 = vadd.f32 0.0, %v3563
        %v3565 = vpop.f32.mrb[0].mxu0
        %3566 = vmatprep.mubr.bf16.mxu0 0
        %3567 = vmatmul.mubr.bf16.gmra.mrb[0].mxu0 %v3409
        %v3568 = vpop.f32.mrb[0].mxu0
        %v3569 = vadd.f32 0.0, %v3568
        %v3570 = vpop.f32.mrb[0].mxu0
        %v3571 = vpop.f32.mrb[0].mxu0
        %v3572 = vadd.f32 0.0, %v3571
        %v3573 = vpop.f32.mrb[0].mxu0
        %3574 = vdwg.mxu0
        %v3575 = vadd.f32 %v3213, %v3449
        %v3576 = vadd.f32 %v3214, %v3452
        %v3577 = vadd.f32 %v3215, %v3457
        %v3578 = vadd.f32 %v3216, %v3460
        %v3579 = vadd.f32 %v3217, %v3465
        %v3580 = vadd.f32 %v3218, %v3468
        %v3581 = vadd.f32 %v3219, %v3473
        %v3582 = vadd.f32 %v3220, %v3476
        %v3583 = vadd.f32 %v3221, %v3481
        %v3584 = vadd.f32 %v3222, %v3484
        %v3585 = vadd.f32 %v3223, %v3489
        %v3586 = vadd.f32 %v3224, %v3492
        %v3587 = vadd.f32 %v3225, %v3497
        %v3588 = vadd.f32 %v3226, %v3500
        %v3589 = vadd.f32 %v3227, %v3505
        %v3590 = vadd.f32 %v3228, %v3508
        %v3591 = vadd.f32 %v3229, %v3513
        %v3592 = vadd.f32 %v3230, %v3516
        %v3593 = vadd.f32 %v3231, %v3521
        %v3594 = vadd.f32 %v3232, %v3524
        %v3595 = vadd.f32 %v3233, %v3529
        %v3596 = vadd.f32 %v3234, %v3532
        %v3597 = vadd.f32 %v3235, %v3537
        %v3598 = vadd.f32 %v3236, %v3540
        %v3599 = vadd.f32 %v3237, %v3545
        %v3600 = vadd.f32 %v3238, %v3548
        %v3601 = vadd.f32 %v3239, %v3553
        %v3602 = vadd.f32 %v3240, %v3556
        %v3603 = vadd.f32 %v3241, %v3561
        %v3604 = vadd.f32 %v3242, %v3564
        %v3605 = vadd.f32 %v3243, %v3569
        %v3606 = vadd.f32 %v3244, %v3572
        %v3607 = vld [vmem:[%s3248] sm:$0xf]
        %v3608 = vld [vmem:[%s3248 + $0x4] sm:$0xf]
        %v3609 = vld [vmem:[%s3248 + $0x8] sm:$0x1]
        %v3610 = vld [vmem:[%s3248 + $0xc] sm:$0xf]
        %v3611 = vld [vmem:[%s3248 + $0x10] sm:$0xf]
        %v3612 = vld [vmem:[%s3248 + $0x14] sm:$0x1]
        %v3613 = vld [vmem:[%s3248 + $0x18] sm:$0xf]
        %v3614 = vld [vmem:[%s3248 + $0x1c] sm:$0xf]
        %v3615 = vld [vmem:[%s3248 + $0x20] sm:$0x1]
        %v3616 = vld [vmem:[%s3248 + $0x24] sm:$0xf]
        %v3617 = vld [vmem:[%s3248 + $0x28] sm:$0xf]
        %v3618 = vld [vmem:[%s3248 + $0x2c] sm:$0x1]
        %v3619 = vld [vmem:[%s3248 + $0x30] sm:$0xf]
        %v3620 = vld [vmem:[%s3248 + $0x34] sm:$0xf]
        %v3621 = vld [vmem:[%s3248 + $0x38] sm:$0x1]
        %v3622 = vld [vmem:[%s3248 + $0x3c] sm:$0xf]
        %v3623 = vld [vmem:[%s3248 + $0x40] sm:$0xf]
        %v3624 = vld [vmem:[%s3248 + $0x44] sm:$0x1]
        %v3625 = vld [vmem:[%s3248 + $0x48] sm:$0xf]
        %v3626 = vld [vmem:[%s3248 + $0x4c] sm:$0xf]
        %v3627 = vld [vmem:[%s3248 + $0x50] sm:$0x1]
        %v3628 = vld [vmem:[%s3248 + $0x54] sm:$0xf]
        %v3629 = vld [vmem:[%s3248 + $0x58] sm:$0xf]
        %v3630 = vld [vmem:[%s3248 + $0x5c] sm:$0x1]
        %v3631 = vld [vmem:[%s3248 + $0x60] sm:$0xf]
        %v3632 = vld [vmem:[%s3248 + $0x64] sm:$0xf]
        %v3633 = vld [vmem:[%s3248 + $0x68] sm:$0x1]
        %v3634 = vld [vmem:[%s3248 + $0x6c] sm:$0xf]
        %v3635 = vld [vmem:[%s3248 + $0x70] sm:$0xf]
        %v3636 = vld [vmem:[%s3248 + $0x74] sm:$0x1]
        %v3637 = vld [vmem:[%s3248 + $0x78] sm:$0xf]
        %v3638 = vld [vmem:[%s3248 + $0x7c] sm:$0xf]
        %v3639 = vld [vmem:[%s3248 + $0x80] sm:$0x1]
        %v3640 = vld [vmem:[%s3248 + $0x84] sm:$0xf]
        %v3641 = vld [vmem:[%s3248 + $0x88] sm:$0xf]
        %v3642 = vld [vmem:[%s3248 + $0x8c] sm:$0x1]
        %v3643 = vld [vmem:[%s3248 + $0x90] sm:$0xf]
        %v3644 = vld [vmem:[%s3248 + $0x94] sm:$0xf]
        %v3645 = vld [vmem:[%s3248 + $0x98] sm:$0x1]
        %v3646 = vld [vmem:[%s3248 + $0x9c] sm:$0xf]
        %v3647 = vld [vmem:[%s3248 + $0xa0] sm:$0xf]
        %v3648 = vld [vmem:[%s3248 + $0xa4] sm:$0x1]
        %v3649 = vld [vmem:[%s3248 + $0xa8] sm:$0xf]
        %v3650 = vld [vmem:[%s3248 + $0xac] sm:$0xf]
        %v3651 = vld [vmem:[%s3248 + $0xb0] sm:$0x1]
        %v3652 = vld [vmem:[%s3248 + $0xb4] sm:$0xf]
        %v3653 = vld [vmem:[%s3248 + $0xb8] sm:$0xf]
        %v3654 = vld [vmem:[%s3248 + $0xbc] sm:$0x1]
        %v3656 = vshrl.u32 %v3607, 16
        %v3658 = vrot.slane %v3656, 4
        %v3659 = vshll.u32 %v3607, 16
        %v3661 = vrot.slane %v3659, 5
        %v3662 = vor.u32 %v3658, %v3661
        %v3663 = vrot.slane %v3662, 4
        %v3665 = vshll.u32 %v3608, 16
        %v3667 = vrot.slane %v3665, 5
        %v3668 = vsel %vm289, %v3663, %v3667
        %v3669 = vshrl.u32 %v3608, 16
        %v3671 = vrot.slane %v3669, 4
        %v3672 = vor.u32 %v3671, %v3667
        %v3673 = vrot.slane %v3672, 4
        %v3675 = vshll.u32 %v3609, 16
        %v3677 = vrot.slane %v3675, 5
        %v3678 = vsel %vm289, %v3673, %v3677
        %v3680 = vshrl.u32 %v3610, 16
        %v3682 = vrot.slane %v3680, 4
        %v3683 = vshll.u32 %v3610, 16
        %v3685 = vrot.slane %v3683, 5
        %v3686 = vor.u32 %v3682, %v3685
        %v3687 = vrot.slane %v3686, 4
        %v3689 = vshll.u32 %v3611, 16
        %v3691 = vrot.slane %v3689, 5
        %v3692 = vsel %vm289, %v3687, %v3691
        %v3693 = vshrl.u32 %v3611, 16
        %v3695 = vrot.slane %v3693, 4
        %v3696 = vor.u32 %v3695, %v3691
        %v3697 = vrot.slane %v3696, 4
        %v3699 = vshll.u32 %v3612, 16
        %v3701 = vrot.slane %v3699, 5
        %v3702 = vsel %vm289, %v3697, %v3701
        %v3704 = vshrl.u32 %v3613, 16
        %v3706 = vrot.slane %v3704, 4
        %v3707 = vshll.u32 %v3613, 16
        %v3709 = vrot.slane %v3707, 5
        %v3710 = vor.u32 %v3706, %v3709
        %v3711 = vrot.slane %v3710, 4
        %v3713 = vshll.u32 %v3614, 16
        %v3715 = vrot.slane %v3713, 5
        %v3716 = vsel %vm289, %v3711, %v3715
        %v3717 = vshrl.u32 %v3614, 16
        %v3719 = vrot.slane %v3717, 4
        %v3720 = vor.u32 %v3719, %v3715
        %v3721 = vrot.slane %v3720, 4
        %v3723 = vshll.u32 %v3615, 16
        %v3725 = vrot.slane %v3723, 5
        %v3726 = vsel %vm289, %v3721, %v3725
        %v3728 = vshrl.u32 %v3616, 16
        %v3730 = vrot.slane %v3728, 4
        %v3731 = vshll.u32 %v3616, 16
        %v3733 = vrot.slane %v3731, 5
        %v3734 = vor.u32 %v3730, %v3733
        %v3735 = vrot.slane %v3734, 4
        %v3737 = vshll.u32 %v3617, 16
        %v3739 = vrot.slane %v3737, 5
        %v3740 = vsel %vm289, %v3735, %v3739
        %v3741 = vshrl.u32 %v3617, 16
        %v3743 = vrot.slane %v3741, 4
        %v3744 = vor.u32 %v3743, %v3739
        %v3745 = vrot.slane %v3744, 4
        %v3747 = vshll.u32 %v3618, 16
        %v3749 = vrot.slane %v3747, 5
        %v3750 = vsel %vm289, %v3745, %v3749
        %v3752 = vshrl.u32 %v3619, 16
        %v3754 = vrot.slane %v3752, 4
        %v3755 = vshll.u32 %v3619, 16
        %v3757 = vrot.slane %v3755, 5
        %v3758 = vor.u32 %v3754, %v3757
        %v3759 = vrot.slane %v3758, 4
        %v3761 = vshll.u32 %v3620, 16
        %v3763 = vrot.slane %v3761, 5
        %v3764 = vsel %vm289, %v3759, %v3763
        %v3765 = vshrl.u32 %v3620, 16
        %v3767 = vrot.slane %v3765, 4
        %v3768 = vor.u32 %v3767, %v3763
        %v3769 = vrot.slane %v3768, 4
        %v3771 = vshll.u32 %v3621, 16
        %v3773 = vrot.slane %v3771, 5
        %v3774 = vsel %vm289, %v3769, %v3773
        %v3776 = vshrl.u32 %v3622, 16
        %v3778 = vrot.slane %v3776, 4
        %v3779 = vshll.u32 %v3622, 16
        %v3781 = vrot.slane %v3779, 5
        %v3782 = vor.u32 %v3778, %v3781
        %v3783 = vrot.slane %v3782, 4
        %v3785 = vshll.u32 %v3623, 16
        %v3787 = vrot.slane %v3785, 5
        %v3788 = vsel %vm289, %v3783, %v3787
        %v3789 = vshrl.u32 %v3623, 16
        %v3791 = vrot.slane %v3789, 4
        %v3792 = vor.u32 %v3791, %v3787
        %v3793 = vrot.slane %v3792, 4
        %v3795 = vshll.u32 %v3624, 16
        %v3797 = vrot.slane %v3795, 5
        %v3798 = vsel %vm289, %v3793, %v3797
        %v3800 = vshrl.u32 %v3625, 16
        %v3802 = vrot.slane %v3800, 4
        %v3803 = vshll.u32 %v3625, 16
        %v3805 = vrot.slane %v3803, 5
        %v3806 = vor.u32 %v3802, %v3805
        %v3807 = vrot.slane %v3806, 4
        %v3809 = vshll.u32 %v3626, 16
        %v3811 = vrot.slane %v3809, 5
        %v3812 = vsel %vm289, %v3807, %v3811
        %v3813 = vshrl.u32 %v3626, 16
        %v3815 = vrot.slane %v3813, 4
        %v3816 = vor.u32 %v3815, %v3811
        %v3817 = vrot.slane %v3816, 4
        %v3819 = vshll.u32 %v3627, 16
        %v3821 = vrot.slane %v3819, 5
        %v3822 = vsel %vm289, %v3817, %v3821
        %v3824 = vshrl.u32 %v3628, 16
        %v3826 = vrot.slane %v3824, 4
        %v3827 = vshll.u32 %v3628, 16
        %v3829 = vrot.slane %v3827, 5
        %v3830 = vor.u32 %v3826, %v3829
        %v3831 = vrot.slane %v3830, 4
        %v3833 = vshll.u32 %v3629, 16
        %v3835 = vrot.slane %v3833, 5
        %v3836 = vsel %vm289, %v3831, %v3835
        %v3837 = vshrl.u32 %v3629, 16
        %v3839 = vrot.slane %v3837, 4
        %v3840 = vor.u32 %v3839, %v3835
        %v3841 = vrot.slane %v3840, 4
        %v3843 = vshll.u32 %v3630, 16
        %v3845 = vrot.slane %v3843, 5
        %v3846 = vsel %vm289, %v3841, %v3845
        %v3848 = vshrl.u32 %v3631, 16
        %v3850 = vrot.slane %v3848, 4
        %v3851 = vshll.u32 %v3631, 16
        %v3853 = vrot.slane %v3851, 5
        %v3854 = vor.u32 %v3850, %v3853
        %v3855 = vrot.slane %v3854, 4
        %v3857 = vshll.u32 %v3632, 16
        %v3859 = vrot.slane %v3857, 5
        %v3860 = vsel %vm289, %v3855, %v3859
        %v3861 = vshrl.u32 %v3632, 16
        %v3863 = vrot.slane %v3861, 4
        %v3864 = vor.u32 %v3863, %v3859
        %v3865 = vrot.slane %v3864, 4
        %v3867 = vshll.u32 %v3633, 16
        %v3869 = vrot.slane %v3867, 5
        %v3870 = vsel %vm289, %v3865, %v3869
        %v3872 = vshrl.u32 %v3634, 16
        %v3874 = vrot.slane %v3872, 4
        %v3875 = vshll.u32 %v3634, 16
        %v3877 = vrot.slane %v3875, 5
        %v3878 = vor.u32 %v3874, %v3877
        %v3879 = vrot.slane %v3878, 4
        %v3881 = vshll.u32 %v3635, 16
        %v3883 = vrot.slane %v3881, 5
        %v3884 = vsel %vm289, %v3879, %v3883
        %v3885 = vshrl.u32 %v3635, 16
        %v3887 = vrot.slane %v3885, 4
        %v3888 = vor.u32 %v3887, %v3883
        %v3889 = vrot.slane %v3888, 4
        %v3891 = vshll.u32 %v3636, 16
        %v3893 = vrot.slane %v3891, 5
        %v3894 = vsel %vm289, %v3889, %v3893
        %v3896 = vshrl.u32 %v3637, 16
        %v3898 = vrot.slane %v3896, 4
        %v3899 = vshll.u32 %v3637, 16
        %v3901 = vrot.slane %v3899, 5
        %v3902 = vor.u32 %v3898, %v3901
        %v3903 = vrot.slane %v3902, 4
        %v3905 = vshll.u32 %v3638, 16
        %v3907 = vrot.slane %v3905, 5
        %v3908 = vsel %vm289, %v3903, %v3907
        %v3909 = vshrl.u32 %v3638, 16
        %v3911 = vrot.slane %v3909, 4
        %v3912 = vor.u32 %v3911, %v3907
        %v3913 = vrot.slane %v3912, 4
        %v3915 = vshll.u32 %v3639, 16
        %v3917 = vrot.slane %v3915, 5
        %v3918 = vsel %vm289, %v3913, %v3917
        %v3920 = vshrl.u32 %v3640, 16
        %v3922 = vrot.slane %v3920, 4
        %v3923 = vshll.u32 %v3640, 16
        %v3925 = vrot.slane %v3923, 5
        %v3926 = vor.u32 %v3922, %v3925
        %v3927 = vrot.slane %v3926, 4
        %v3929 = vshll.u32 %v3641, 16
        %v3931 = vrot.slane %v3929, 5
        %v3932 = vsel %vm289, %v3927, %v3931
        %v3933 = vshrl.u32 %v3641, 16
        %v3935 = vrot.slane %v3933, 4
        %v3936 = vor.u32 %v3935, %v3931
        %v3937 = vrot.slane %v3936, 4
        %v3939 = vshll.u32 %v3642, 16
        %v3941 = vrot.slane %v3939, 5
        %v3942 = vsel %vm289, %v3937, %v3941
        %v3944 = vshrl.u32 %v3643, 16
        %v3946 = vrot.slane %v3944, 4
        %v3947 = vshll.u32 %v3643, 16
        %v3949 = vrot.slane %v3947, 5
        %v3950 = vor.u32 %v3946, %v3949
        %v3951 = vrot.slane %v3950, 4
        %v3953 = vshll.u32 %v3644, 16
        %v3955 = vrot.slane %v3953, 5
        %v3956 = vsel %vm289, %v3951, %v3955
        %v3957 = vshrl.u32 %v3644, 16
        %v3959 = vrot.slane %v3957, 4
        %v3960 = vor.u32 %v3959, %v3955
        %v3961 = vrot.slane %v3960, 4
        %v3963 = vshll.u32 %v3645, 16
        %v3965 = vrot.slane %v3963, 5
        %v3966 = vsel %vm289, %v3961, %v3965
        %v3968 = vshrl.u32 %v3646, 16
        %v3970 = vrot.slane %v3968, 4
        %v3971 = vshll.u32 %v3646, 16
        %v3973 = vrot.slane %v3971, 5
        %v3974 = vor.u32 %v3970, %v3973
        %v3975 = vrot.slane %v3974, 4
        %v3977 = vshll.u32 %v3647, 16
        %v3979 = vrot.slane %v3977, 5
        %v3980 = vsel %vm289, %v3975, %v3979
        %v3981 = vshrl.u32 %v3647, 16
        %v3983 = vrot.slane %v3981, 4
        %v3984 = vor.u32 %v3983, %v3979
        %v3985 = vrot.slane %v3984, 4
        %v3987 = vshll.u32 %v3648, 16
        %v3989 = vrot.slane %v3987, 5
        %v3990 = vsel %vm289, %v3985, %v3989
        %v3992 = vshrl.u32 %v3649, 16
        %v3994 = vrot.slane %v3992, 4
        %v3995 = vshll.u32 %v3649, 16
        %v3997 = vrot.slane %v3995, 5
        %v3998 = vor.u32 %v3994, %v3997
        %v3999 = vrot.slane %v3998, 4
        %v4001 = vshll.u32 %v3650, 16
        %v4003 = vrot.slane %v4001, 5
        %v4004 = vsel %vm289, %v3999, %v4003
        %v4005 = vshrl.u32 %v3650, 16
        %v4007 = vrot.slane %v4005, 4
        %v4008 = vor.u32 %v4007, %v4003
        %v4009 = vrot.slane %v4008, 4
        %v4011 = vshll.u32 %v3651, 16
        %v4013 = vrot.slane %v4011, 5
        %v4014 = vsel %vm289, %v4009, %v4013
        %v4016 = vshrl.u32 %v3652, 16
        %v4018 = vrot.slane %v4016, 4
        %v4019 = vshll.u32 %v3652, 16
        %v4021 = vrot.slane %v4019, 5
        %v4022 = vor.u32 %v4018, %v4021
        %v4023 = vrot.slane %v4022, 4
        %v4025 = vshll.u32 %v3653, 16
        %v4027 = vrot.slane %v4025, 5
        %v4028 = vsel %vm289, %v4023, %v4027
        %v4029 = vshrl.u32 %v3653, 16
        %v4031 = vrot.slane %v4029, 4
        %v4032 = vor.u32 %v4031, %v4027
        %v4033 = vrot.slane %v4032, 4
        %v4035 = vshll.u32 %v3654, 16
        %v4037 = vrot.slane %v4035, 5
        %v4038 = vsel %vm289, %v4033, %v4037
        %s4039 = scalar_lea.vmem %s1, 14
        %v4040 = vld [vmem:[%s4039] sm:$0x3]
        %v4041 = vunpack.c.l.b16 %v3668
        %v4042 = vunpack.c.l.b16 %v3678
        %v4043 = vunpack.c.l.b16 %v3692
        %v4044 = vunpack.c.l.b16 %v3702
        %v4045 = vunpack.c.l.b16 %v3716
        %v4046 = vunpack.c.l.b16 %v3726
        %v4047 = vunpack.c.l.b16 %v3740
        %v4048 = vunpack.c.l.b16 %v3750
        %v4049 = vunpack.c.l.b16 %v3764
        %v4050 = vunpack.c.l.b16 %v3774
        %v4051 = vunpack.c.l.b16 %v3788
        %v4052 = vunpack.c.l.b16 %v3798
        %v4053 = vunpack.c.l.b16 %v3812
        %v4054 = vunpack.c.l.b16 %v3822
        %v4055 = vunpack.c.l.b16 %v3836
        %v4056 = vunpack.c.l.b16 %v3846
        %v4057 = vunpack.c.l.b16 %v3860
        %v4058 = vunpack.c.l.b16 %v3870
        %v4059 = vunpack.c.l.b16 %v3884
        %v4060 = vunpack.c.l.b16 %v3894
        %v4061 = vunpack.c.l.b16 %v3908
        %v4062 = vunpack.c.l.b16 %v3918
        %v4063 = vunpack.c.l.b16 %v3932
        %v4064 = vunpack.c.l.b16 %v3942
        %v4065 = vunpack.c.l.b16 %v3956
        %v4066 = vunpack.c.l.b16 %v3966
        %v4067 = vunpack.c.l.b16 %v3980
        %v4068 = vunpack.c.l.b16 %v3990
        %v4069 = vunpack.c.l.b16 %v4004
        %v4070 = vunpack.c.l.b16 %v4014
        %v4071 = vunpack.c.l.b16 %v4028
        %v4072 = vunpack.c.l.b16 %v4038
        %v4073 = vpack.c.b16 %v4042, %v4041
        %v4074 = vpack.c.b16 %v4044, %v4043
        %v4075 = vpack.c.b16 %v4046, %v4045
        %v4076 = vpack.c.b16 %v4048, %v4047
        %v4077 = vpack.c.b16 %v4050, %v4049
        %v4078 = vpack.c.b16 %v4052, %v4051
        %v4079 = vpack.c.b16 %v4054, %v4053
        %v4080 = vpack.c.b16 %v4056, %v4055
        %v4081 = vpack.c.b16 %v4058, %v4057
        %v4082 = vpack.c.b16 %v4060, %v4059
        %v4083 = vpack.c.b16 %v4062, %v4061
        %v4084 = vpack.c.b16 %v4064, %v4063
        %v4085 = vpack.c.b16 %v4066, %v4065
        %v4086 = vpack.c.b16 %v4068, %v4067
        %v4087 = vpack.c.b16 %v4070, %v4069
        %v4088 = vpack.c.b16 %v4072, %v4071
        %v4090 = vsel %vm724, %v4073, 0
        %v4093 = vsel %vm724, %v4074, 0
        %v4096 = vsel %vm724, %v4075, 0
        %v4099 = vsel %vm724, %v4076, 0
        %v4102 = vsel %vm724, %v4077, 0
        %v4105 = vsel %vm724, %v4078, 0
        %v4108 = vsel %vm724, %v4079, 0
        %v4111 = vsel %vm724, %v4080, 0
        %v4114 = vsel %vm724, %v4081, 0
        %v4117 = vsel %vm724, %v4082, 0
        %v4120 = vsel %vm724, %v4083, 0
        %v4123 = vsel %vm724, %v4084, 0
        %v4126 = vsel %vm724, %v4085, 0
        %v4129 = vsel %vm724, %v4086, 0
        %v4132 = vsel %vm724, %v4087, 0
        %v4135 = vsel %vm724, %v4088, 0
        %v4138 = vsel %vm773, %v4040, 0
        %4140 = vmatprep.subr.bf16.mxu0 0
        %4141 = vmatpush1.bf16.msra.mxu0 %v4138
        %4142 = vmatprep.subr.bf16.mxu0 0
        %4143 = vmatpush1.bf16.msra.mxu0 0
        %4144 = vmatprep.subr.bf16.mxu0 0
        %4145 = vmatpush1.bf16.msra.mxu0 0
        %4146 = vmatprep.subr.bf16.mxu0 0
        %4147 = vmatpush1.bf16.msra.mxu0 0
        %4148 = vmatprep.subr.bf16.mxu0 0
        %4149 = vmatpush1.bf16.msra.mxu0 0
        %4150 = vmatprep.subr.bf16.mxu0 0
        %4151 = vmatpush1.bf16.msra.mxu0 0
        %4152 = vmatprep.subr.bf16.mxu0 0
        %4153 = vmatpush1.bf16.msra.mxu0 0
        %4154 = vmatprep.subr.bf16.mxu0 0
        %4155 = vmatpush1.bf16.msra.mxu0 0
        %4156 = vmatprep.subr.bf16.mxu0 0
        %4157 = vmatpush1.bf16.msra.mxu0 0
        %4158 = vmatprep.subr.bf16.mxu0 0
        %4159 = vmatpush1.bf16.msra.mxu0 0
        %4160 = vmatprep.subr.bf16.mxu0 0
        %4161 = vmatpush1.bf16.msra.mxu0 0
        %4162 = vmatprep.subr.bf16.mxu0 0
        %4163 = vmatpush1.bf16.msra.mxu0 0
        %4164 = vmatprep.subr.bf16.mxu0 0
        %4165 = vmatpush1.bf16.msra.mxu0 0
        %4166 = vmatprep.subr.bf16.mxu0 0
        %4167 = vmatpush1.bf16.msra.mxu0 0
        %4168 = vmatprep.subr.bf16.mxu0 0
        %4169 = vmatpush1.bf16.msra.mxu0 0
        %4170 = vmatprep.subr.bf16.mxu0 0
        %4171 = vmatpush1.bf16.msra.mxu0 0
        %4172 = vmatprep.mubr.bf16.mxu0 0
        %4173 = vmatmul.mubr.bf16.gmra.mrb[0].mxu0 %v4090
        %v4174 = vpop.f32.mrb[0].mxu0
        %v4175 = vadd.f32 0.0, %v4174
        %v4176 = vpop.f32.mrb[0].mxu0
        %v4177 = vpop.f32.mrb[0].mxu0
        %v4178 = vadd.f32 0.0, %v4177
        %v4179 = vpop.f32.mrb[0].mxu0
        %4180 = vmatprep.mubr.bf16.mxu0 0
        %4181 = vmatmul.mubr.bf16.gmra.mrb[0].mxu0 %v4093
        %v4182 = vpop.f32.mrb[0].mxu0
        %v4183 = vadd.f32 0.0, %v4182
        %v4184 = vpop.f32.mrb[0].mxu0
        %v4185 = vpop.f32.mrb[0].mxu0
        %v4186 = vadd.f32 0.0, %v4185
        %v4187 = vpop.f32.mrb[0].mxu0
        %4188 = vmatprep.mubr.bf16.mxu0 0
        %4189 = vmatmul.mubr.bf16.gmra.mrb[0].mxu0 %v4096
        %v4190 = vpop.f32.mrb[0].mxu0
        %v4191 = vadd.f32 0.0, %v4190
        %v4192 = vpop.f32.mrb[0].mxu0
        %v4193 = vpop.f32.mrb[0].mxu0
        %v4194 = vadd.f32 0.0, %v4193
        %v4195 = vpop.f32.mrb[0].mxu0
        %4196 = vmatprep.mubr.bf16.mxu0 0
        %4197 = vmatmul.mubr.bf16.gmra.mrb[0].mxu0 %v4099
        %v4198 = vpop.f32.mrb[0].mxu0
        %v4199 = vadd.f32 0.0, %v4198
        %v4200 = vpop.f32.mrb[0].mxu0
        %v4201 = vpop.f32.mrb[0].mxu0
        %v4202 = vadd.f32 0.0, %v4201
        %v4203 = vpop.f32.mrb[0].mxu0
        %4204 = vmatprep.mubr.bf16.mxu0 0
        %4205 = vmatmul.mubr.bf16.gmra.mrb[0].mxu0 %v4102
        %v4206 = vpop.f32.mrb[0].mxu0
        %v4207 = vadd.f32 0.0, %v4206
        %v4208 = vpop.f32.mrb[0].mxu0
        %v4209 = vpop.f32.mrb[0].mxu0
        %v4210 = vadd.f32 0.0, %v4209
        %v4211 = vpop.f32.mrb[0].mxu0
        %4212 = vmatprep.mubr.bf16.mxu0 0
        %4213 = vmatmul.mubr.bf16.gmra.mrb[0].mxu0 %v4105
        %v4214 = vpop.f32.mrb[0].mxu0
        %v4215 = vadd.f32 0.0, %v4214
        %v4216 = vpop.f32.mrb[0].mxu0
        %v4217 = vpop.f32.mrb[0].mxu0
        %v4218 = vadd.f32 0.0, %v4217
        %v4219 = vpop.f32.mrb[0].mxu0
        %4220 = vmatprep.mubr.bf16.mxu0 0
        %4221 = vmatmul.mubr.bf16.gmra.mrb[0].mxu0 %v4108
        %v4222 = vpop.f32.mrb[0].mxu0
        %v4223 = vadd.f32 0.0, %v4222
        %v4224 = vpop.f32.mrb[0].mxu0
        %v4225 = vpop.f32.mrb[0].mxu0
        %v4226 = vadd.f32 0.0, %v4225
        %v4227 = vpop.f32.mrb[0].mxu0
        %4228 = vmatprep.mubr.bf16.mxu0 0
        %4229 = vmatmul.mubr.bf16.gmra.mrb[0].mxu0 %v4111
        %v4230 = vpop.f32.mrb[0].mxu0
        %v4231 = vadd.f32 0.0, %v4230
        %v4232 = vpop.f32.mrb[0].mxu0
        %v4233 = vpop.f32.mrb[0].mxu0
        %v4234 = vadd.f32 0.0, %v4233
        %v4235 = vpop.f32.mrb[0].mxu0
        %4236 = vmatprep.mubr.bf16.mxu0 0
        %4237 = vmatmul.mubr.bf16.gmra.mrb[0].mxu0 %v4114
        %v4238 = vpop.f32.mrb[0].mxu0
        %v4239 = vadd.f32 0.0, %v4238
        %v4240 = vpop.f32.mrb[0].mxu0
        %v4241 = vpop.f32.mrb[0].mxu0
        %v4242 = vadd.f32 0.0, %v4241
        %v4243 = vpop.f32.mrb[0].mxu0
        %4244 = vmatprep.mubr.bf16.mxu0 0
        %4245 = vmatmul.mubr.bf16.gmra.mrb[0].mxu0 %v4117
        %v4246 = vpop.f32.mrb[0].mxu0
        %v4247 = vadd.f32 0.0, %v4246
        %v4248 = vpop.f32.mrb[0].mxu0
        %v4249 = vpop.f32.mrb[0].mxu0
        %v4250 = vadd.f32 0.0, %v4249
        %v4251 = vpop.f32.mrb[0].mxu0
        %4252 = vmatprep.mubr.bf16.mxu0 0
        %4253 = vmatmul.mubr.bf16.gmra.mrb[0].mxu0 %v4120
        %v4254 = vpop.f32.mrb[0].mxu0
        %v4255 = vadd.f32 0.0, %v4254
        %v4256 = vpop.f32.mrb[0].mxu0
        %v4257 = vpop.f32.mrb[0].mxu0
        %v4258 = vadd.f32 0.0, %v4257
        %v4259 = vpop.f32.mrb[0].mxu0
        %4260 = vmatprep.mubr.bf16.mxu0 0
        %4261 = vmatmul.mubr.bf16.gmra.mrb[0].mxu0 %v4123
        %v4262 = vpop.f32.mrb[0].mxu0
        %v4263 = vadd.f32 0.0, %v4262
        %v4264 = vpop.f32.mrb[0].mxu0
        %v4265 = vpop.f32.mrb[0].mxu0
        %v4266 = vadd.f32 0.0, %v4265
        %v4267 = vpop.f32.mrb[0].mxu0
        %4268 = vmatprep.mubr.bf16.mxu0 0
        %4269 = vmatmul.mubr.bf16.gmra.mrb[0].mxu0 %v4126
        %v4270 = vpop.f32.mrb[0].mxu0
        %v4271 = vadd.f32 0.0, %v4270
        %v4272 = vpop.f32.mrb[0].mxu0
        %v4273 = vpop.f32.mrb[0].mxu0
        %v4274 = vadd.f32 0.0, %v4273
        %v4275 = vpop.f32.mrb[0].mxu0
        %4276 = vmatprep.mubr.bf16.mxu0 0
        %4277 = vmatmul.mubr.bf16.gmra.mrb[0].mxu0 %v4129
        %v4278 = vpop.f32.mrb[0].mxu0
        %v4279 = vadd.f32 0.0, %v4278
        %v4280 = vpop.f32.mrb[0].mxu0
        %v4281 = vpop.f32.mrb[0].mxu0
        %v4282 = vadd.f32 0.0, %v4281
        %v4283 = vpop.f32.mrb[0].mxu0
        %4284 = vmatprep.mubr.bf16.mxu0 0
        %4285 = vmatmul.mubr.bf16.gmra.mrb[0].mxu0 %v4132
        %v4286 = vpop.f32.mrb[0].mxu0
        %v4287 = vadd.f32 0.0, %v4286
        %v4288 = vpop.f32.mrb[0].mxu0
        %v4289 = vpop.f32.mrb[0].mxu0
        %v4290 = vadd.f32 0.0, %v4289
        %v4291 = vpop.f32.mrb[0].mxu0
        %4292 = vmatprep.mubr.bf16.mxu0 0
        %4293 = vmatmul.mubr.bf16.gmra.mrb[0].mxu0 %v4135
        %v4294 = vpop.f32.mrb[0].mxu0
        %v4295 = vadd.f32 0.0, %v4294
        %v4296 = vpop.f32.mrb[0].mxu0
        %v4297 = vpop.f32.mrb[0].mxu0
        %v4298 = vadd.f32 0.0, %v4297
        %v4299 = vpop.f32.mrb[0].mxu0
        %4300 = vdwg.mxu0
        %v4301 = vadd.f32 %v3575, %v4175
        %v4302 = vadd.f32 %v3576, %v4178
        %v4303 = vadd.f32 %v3577, %v4183
        %v4304 = vadd.f32 %v3578, %v4186
        %v4305 = vadd.f32 %v3579, %v4191
        %v4306 = vadd.f32 %v3580, %v4194
        %v4307 = vadd.f32 %v3581, %v4199
        %v4308 = vadd.f32 %v3582, %v4202
        %v4309 = vadd.f32 %v3583, %v4207
        %v4310 = vadd.f32 %v3584, %v4210
        %v4311 = vadd.f32 %v3585, %v4215
        %v4312 = vadd.f32 %v3586, %v4218
        %v4313 = vadd.f32 %v3587, %v4223
        %v4314 = vadd.f32 %v3588, %v4226
        %v4315 = vadd.f32 %v3589, %v4231
        %v4316 = vadd.f32 %v3590, %v4234
        %v4317 = vadd.f32 %v3591, %v4239
        %v4318 = vadd.f32 %v3592, %v4242
        %v4319 = vadd.f32 %v3593, %v4247
        %v4320 = vadd.f32 %v3594, %v4250
        %v4321 = vadd.f32 %v3595, %v4255
        %v4322 = vadd.f32 %v3596, %v4258
        %v4323 = vadd.f32 %v3597, %v4263
        %v4324 = vadd.f32 %v3598, %v4266
        %v4325 = vadd.f32 %v3599, %v4271
        %v4326 = vadd.f32 %v3600, %v4274
        %v4327 = vadd.f32 %v3601, %v4279
        %v4328 = vadd.f32 %v3602, %v4282
        %v4329 = vadd.f32 %v3603, %v4287
        %v4330 = vadd.f32 %v3604, %v4290
        %v4331 = vadd.f32 %v3605, %v4295
        %v4332 = vadd.f32 %v3606, %v4298
        %v4333 = vld [vmem:[%s3248] sm:$0xe]
        %v4334 = vld [vmem:[%s3248 + $0xc] sm:$0xe]
        %v4335 = vld [vmem:[%s3248 + $0x18] sm:$0xe]
        %v4336 = vld [vmem:[%s3248 + $0x24] sm:$0xe]
        %v4337 = vld [vmem:[%s3248 + $0x30] sm:$0xe]
        %v4338 = vld [vmem:[%s3248 + $0x3c] sm:$0xe]
        %v4339 = vld [vmem:[%s3248 + $0x48] sm:$0xe]
        %v4340 = vld [vmem:[%s3248 + $0x54] sm:$0xe]
        %v4341 = vld [vmem:[%s3248 + $0x60] sm:$0xe]
        %v4342 = vld [vmem:[%s3248 + $0x6c] sm:$0xe]
        %v4343 = vld [vmem:[%s3248 + $0x78] sm:$0xe]
        %v4344 = vld [vmem:[%s3248 + $0x84] sm:$0xe]
        %v4345 = vld [vmem:[%s3248 + $0x90] sm:$0xe]
        %v4346 = vld [vmem:[%s3248 + $0x9c] sm:$0xe]
        %v4347 = vld [vmem:[%s3248 + $0xa8] sm:$0xe]
        %v4348 = vld [vmem:[%s3248 + $0xb4] sm:$0xe]
        %v4397 = vrot.slane %v4333, 5
        %v4398 = vrot.slane %v4397, 4
        %v4399 = vrot.slane %v3608, 5
        %v4400 = vsel %vm1280, %v4398, %v4399
        %v4401 = vrot.slane %v4399, 4
        %v4402 = vrot.slane %v3609, 5
        %v4403 = vsel %vm1280, %v4401, %v4402
        %v4404 = vrot.slane %v4334, 5
        %v4405 = vrot.slane %v4404, 4
        %v4406 = vrot.slane %v3611, 5
        %v4407 = vsel %vm1280, %v4405, %v4406
        %v4408 = vrot.slane %v4406, 4
        %v4409 = vrot.slane %v3612, 5
        %v4410 = vsel %vm1280, %v4408, %v4409
        %v4411 = vrot.slane %v4335, 5
        %v4412 = vrot.slane %v4411, 4
        %v4413 = vrot.slane %v3614, 5
        %v4414 = vsel %vm1280, %v4412, %v4413
        %v4415 = vrot.slane %v4413, 4
        %v4416 = vrot.slane %v3615, 5
        %v4417 = vsel %vm1280, %v4415, %v4416
        %v4418 = vrot.slane %v4336, 5
        %v4419 = vrot.slane %v4418, 4
        %v4420 = vrot.slane %v3617, 5
        %v4421 = vsel %vm1280, %v4419, %v4420
        %v4422 = vrot.slane %v4420, 4
        %v4423 = vrot.slane %v3618, 5
        %v4424 = vsel %vm1280, %v4422, %v4423
        %v4425 = vrot.slane %v4337, 5
        %v4426 = vrot.slane %v4425, 4
        %v4427 = vrot.slane %v3620, 5
        %v4428 = vsel %vm1280, %v4426, %v4427
        %v4429 = vrot.slane %v4427, 4
        %v4430 = vrot.slane %v3621, 5
        %v4431 = vsel %vm1280, %v4429, %v4430
        %v4432 = vrot.slane %v4338, 5
        %v4433 = vrot.slane %v4432, 4
        %v4434 = vrot.slane %v3623, 5
        %v4435 = vsel %vm1280, %v4433, %v4434
        %v4436 = vrot.slane %v4434, 4
        %v4437 = vrot.slane %v3624, 5
        %v4438 = vsel %vm1280, %v4436, %v4437
        %v4439 = vrot.slane %v4339, 5
        %v4440 = vrot.slane %v4439, 4
        %v4441 = vrot.slane %v3626, 5
        %v4442 = vsel %vm1280, %v4440, %v4441
        %v4443 = vrot.slane %v4441, 4
        %v4444 = vrot.slane %v3627, 5
        %v4445 = vsel %vm1280, %v4443, %v4444
        %v4446 = vrot.slane %v4340, 5
        %v4447 = vrot.slane %v4446, 4
        %v4448 = vrot.slane %v3629, 5
        %v4449 = vsel %vm1280, %v4447, %v4448
        %v4450 = vrot.slane %v4448, 4
        %v4451 = vrot.slane %v3630, 5
        %v4452 = vsel %vm1280, %v4450, %v4451
        %v4453 = vrot.slane %v4341, 5
        %v4454 = vrot.slane %v4453, 4
        %v4455 = vrot.slane %v3632, 5
        %v4456 = vsel %vm1280, %v4454, %v4455
        %v4457 = vrot.slane %v4455, 4
        %v4458 = vrot.slane %v3633, 5
        %v4459 = vsel %vm1280, %v4457, %v4458
        %v4460 = vrot.slane %v4342, 5
        %v4461 = vrot.slane %v4460, 4
        %v4462 = vrot.slane %v3635, 5
        %v4463 = vsel %vm1280, %v4461, %v4462
        %v4464 = vrot.slane %v4462, 4
        %v4465 = vrot.slane %v3636, 5
        %v4466 = vsel %vm1280, %v4464, %v4465
        %v4467 = vrot.slane %v4343, 5
        %v4468 = vrot.slane %v4467, 4
        %v4469 = vrot.slane %v3638, 5
        %v4470 = vsel %vm1280, %v4468, %v4469
        %v4471 = vrot.slane %v4469, 4
        %v4472 = vrot.slane %v3639, 5
        %v4473 = vsel %vm1280, %v4471, %v4472
        %v4474 = vrot.slane %v4344, 5
        %v4475 = vrot.slane %v4474, 4
        %v4476 = vrot.slane %v3641, 5
        %v4477 = vsel %vm1280, %v4475, %v4476
        %v4478 = vrot.slane %v4476, 4
        %v4479 = vrot.slane %v3642, 5
        %v4480 = vsel %vm1280, %v4478, %v4479
        %v4481 = vrot.slane %v4345, 5
        %v4482 = vrot.slane %v4481, 4
        %v4483 = vrot.slane %v3644, 5
        %v4484 = vsel %vm1280, %v4482, %v4483
        %v4485 = vrot.slane %v4483, 4
        %v4486 = vrot.slane %v3645, 5
        %v4487 = vsel %vm1280, %v4485, %v4486
        %v4488 = vrot.slane %v4346, 5
        %v4489 = vrot.slane %v4488, 4
        %v4490 = vrot.slane %v3647, 5
        %v4491 = vsel %vm1280, %v4489, %v4490
        %v4492 = vrot.slane %v4490, 4
        %v4493 = vrot.slane %v3648, 5
        %v4494 = vsel %vm1280, %v4492, %v4493
        %v4495 = vrot.slane %v4347, 5
        %v4496 = vrot.slane %v4495, 4
        %v4497 = vrot.slane %v3650, 5
        %v4498 = vsel %vm1280, %v4496, %v4497
        %v4499 = vrot.slane %v4497, 4
        %v4500 = vrot.slane %v3651, 5
        %v4501 = vsel %vm1280, %v4499, %v4500
        %v4502 = vrot.slane %v4348, 5
        %v4503 = vrot.slane %v4502, 4
        %v4504 = vrot.slane %v3653, 5
        %v4505 = vsel %vm1280, %v4503, %v4504
        %v4506 = vrot.slane %v4504, 4
        %v4507 = vrot.slane %v3654, 5
        %v4508 = vsel %vm1280, %v4506, %v4507
        %s4509 = scalar_lea.vmem %s1, 16
        %v4510 = vld [vmem:[%s4509] sm:$0x3]
        %v4511 = vunpack.c.l.b16 %v4400
        %v4512 = vunpack.c.l.b16 %v4403
        %v4513 = vunpack.c.l.b16 %v4407
        %v4514 = vunpack.c.l.b16 %v4410
        %v4515 = vunpack.c.l.b16 %v4414
        %v4516 = vunpack.c.l.b16 %v4417
        %v4517 = vunpack.c.l.b16 %v4421
        %v4518 = vunpack.c.l.b16 %v4424
        %v4519 = vunpack.c.l.b16 %v4428
        %v4520 = vunpack.c.l.b16 %v4431
        %v4521 = vunpack.c.l.b16 %v4435
        %v4522 = vunpack.c.l.b16 %v4438
        %v4523 = vunpack.c.l.b16 %v4442
        %v4524 = vunpack.c.l.b16 %v4445
        %v4525 = vunpack.c.l.b16 %v4449
        %v4526 = vunpack.c.l.b16 %v4452
        %v4527 = vunpack.c.l.b16 %v4456
        %v4528 = vunpack.c.l.b16 %v4459
        %v4529 = vunpack.c.l.b16 %v4463
        %v4530 = vunpack.c.l.b16 %v4466
        %v4531 = vunpack.c.l.b16 %v4470
        %v4532 = vunpack.c.l.b16 %v4473
        %v4533 = vunpack.c.l.b16 %v4477
        %v4534 = vunpack.c.l.b16 %v4480
        %v4535 = vunpack.c.l.b16 %v4484
        %v4536 = vunpack.c.l.b16 %v4487
        %v4537 = vunpack.c.l.b16 %v4491
        %v4538 = vunpack.c.l.b16 %v4494
        %v4539 = vunpack.c.l.b16 %v4498
        %v4540 = vunpack.c.l.b16 %v4501
        %v4541 = vunpack.c.l.b16 %v4505
        %v4542 = vunpack.c.l.b16 %v4508
        %v4543 = vpack.c.b16 %v4512, %v4511
        %v4544 = vpack.c.b16 %v4514, %v4513
        %v4545 = vpack.c.b16 %v4516, %v4515
        %v4546 = vpack.c.b16 %v4518, %v4517
        %v4547 = vpack.c.b16 %v4520, %v4519
        %v4548 = vpack.c.b16 %v4522, %v4521
        %v4549 = vpack.c.b16 %v4524, %v4523
        %v4550 = vpack.c.b16 %v4526, %v4525
        %v4551 = vpack.c.b16 %v4528, %v4527
        %v4552 = vpack.c.b16 %v4530, %v4529
        %v4553 = vpack.c.b16 %v4532, %v4531
        %v4554 = vpack.c.b16 %v4534, %v4533
        %v4555 = vpack.c.b16 %v4536, %v4535
        %v4556 = vpack.c.b16 %v4538, %v4537
        %v4557 = vpack.c.b16 %v4540, %v4539
        %v4558 = vpack.c.b16 %v4542, %v4541
        %v4560 = vsel %vm724, %v4543, 0
        %v4563 = vsel %vm724, %v4544, 0
        %v4566 = vsel %vm724, %v4545, 0
        %v4569 = vsel %vm724, %v4546, 0
        %v4572 = vsel %vm724, %v4547, 0
        %v4575 = vsel %vm724, %v4548, 0
        %v4578 = vsel %vm724, %v4549, 0
        %v4581 = vsel %vm724, %v4550, 0
        %v4584 = vsel %vm724, %v4551, 0
        %v4587 = vsel %vm724, %v4552, 0
        %v4590 = vsel %vm724, %v4553, 0
        %v4593 = vsel %vm724, %v4554, 0
        %v4596 = vsel %vm724, %v4555, 0
        %v4599 = vsel %vm724, %v4556, 0
        %v4602 = vsel %vm724, %v4557, 0
        %v4605 = vsel %vm724, %v4558, 0
        %v4608 = vsel %vm773, %v4510, 0
        %4610 = vmatprep.subr.bf16.mxu0 0
        %4611 = vmatpush1.bf16.msra.mxu0 %v4608
        %4612 = vmatprep.subr.bf16.mxu0 0
        %4613 = vmatpush1.bf16.msra.mxu0 0
        %4614 = vmatprep.subr.bf16.mxu0 0
        %4615 = vmatpush1.bf16.msra.mxu0 0
        %4616 = vmatprep.subr.bf16.mxu0 0
        %4617 = vmatpush1.bf16.msra.mxu0 0
        %4618 = vmatprep.subr.bf16.mxu0 0
        %4619 = vmatpush1.bf16.msra.mxu0 0
        %4620 = vmatprep.subr.bf16.mxu0 0
        %4621 = vmatpush1.bf16.msra.mxu0 0
        %4622 = vmatprep.subr.bf16.mxu0 0
        %4623 = vmatpush1.bf16.msra.mxu0 0
        %4624 = vmatprep.subr.bf16.mxu0 0
        %4625 = vmatpush1.bf16.msra.mxu0 0
        %4626 = vmatprep.subr.bf16.mxu0 0
        %4627 = vmatpush1.bf16.msra.mxu0 0
        %4628 = vmatprep.subr.bf16.mxu0 0
        %4629 = vmatpush1.bf16.msra.mxu0 0
        %4630 = vmatprep.subr.bf16.mxu0 0
        %4631 = vmatpush1.bf16.msra.mxu0 0
        %4632 = vmatprep.subr.bf16.mxu0 0
        %4633 = vmatpush1.bf16.msra.mxu0 0
        %4634 = vmatprep.subr.bf16.mxu0 0
        %4635 = vmatpush1.bf16.msra.mxu0 0
        %4636 = vmatprep.subr.bf16.mxu0 0
        %4637 = vmatpush1.bf16.msra.mxu0 0
        %4638 = vmatprep.subr.bf16.mxu0 0
        %4639 = vmatpush1.bf16.msra.mxu0 0
        %4640 = vmatprep.subr.bf16.mxu0 0
        %4641 = vmatpush1.bf16.msra.mxu0 0
        %4642 = vmatprep.mubr.bf16.mxu0 0
        %4643 = vmatmul.mubr.bf16.gmra.mrb[0].mxu0 %v4560
        %v4644 = vpop.f32.mrb[0].mxu0
        %v4645 = vadd.f32 0.0, %v4644
        %v4646 = vpop.f32.mrb[0].mxu0
        %v4647 = vpop.f32.mrb[0].mxu0
        %v4648 = vadd.f32 0.0, %v4647
        %v4649 = vpop.f32.mrb[0].mxu0
        %4650 = vmatprep.mubr.bf16.mxu0 0
        %4651 = vmatmul.mubr.bf16.gmra.mrb[0].mxu0 %v4563
        %v4652 = vpop.f32.mrb[0].mxu0
        %v4653 = vadd.f32 0.0, %v4652
        %v4654 = vpop.f32.mrb[0].mxu0
        %v4655 = vpop.f32.mrb[0].mxu0
        %v4656 = vadd.f32 0.0, %v4655
        %v4657 = vpop.f32.mrb[0].mxu0
        %4658 = vmatprep.mubr.bf16.mxu0 0
        %4659 = vmatmul.mubr.bf16.gmra.mrb[0].mxu0 %v4566
        %v4660 = vpop.f32.mrb[0].mxu0
        %v4661 = vadd.f32 0.0, %v4660
        %v4662 = vpop.f32.mrb[0].mxu0
        %v4663 = vpop.f32.mrb[0].mxu0
        %v4664 = vadd.f32 0.0, %v4663
        %v4665 = vpop.f32.mrb[0].mxu0
        %4666 = vmatprep.mubr.bf16.mxu0 0
        %4667 = vmatmul.mubr.bf16.gmra.mrb[0].mxu0 %v4569
        %v4668 = vpop.f32.mrb[0].mxu0
        %v4669 = vadd.f32 0.0, %v4668
        %v4670 = vpop.f32.mrb[0].mxu0
        %v4671 = vpop.f32.mrb[0].mxu0
        %v4672 = vadd.f32 0.0, %v4671
        %v4673 = vpop.f32.mrb[0].mxu0
        %4674 = vmatprep.mubr.bf16.mxu0 0
        %4675 = vmatmul.mubr.bf16.gmra.mrb[0].mxu0 %v4572
        %v4676 = vpop.f32.mrb[0].mxu0
        %v4677 = vadd.f32 0.0, %v4676
        %v4678 = vpop.f32.mrb[0].mxu0
        %v4679 = vpop.f32.mrb[0].mxu0
        %v4680 = vadd.f32 0.0, %v4679
        %v4681 = vpop.f32.mrb[0].mxu0
        %4682 = vmatprep.mubr.bf16.mxu0 0
        %4683 = vmatmul.mubr.bf16.gmra.mrb[0].mxu0 %v4575
        %v4684 = vpop.f32.mrb[0].mxu0
        %v4685 = vadd.f32 0.0, %v4684
        %v4686 = vpop.f32.mrb[0].mxu0
        %v4687 = vpop.f32.mrb[0].mxu0
        %v4688 = vadd.f32 0.0, %v4687
        %v4689 = vpop.f32.mrb[0].mxu0
        %4690 = vmatprep.mubr.bf16.mxu0 0
        %4691 = vmatmul.mubr.bf16.gmra.mrb[0].mxu0 %v4578
        %v4692 = vpop.f32.mrb[0].mxu0
        %v4693 = vadd.f32 0.0, %v4692
        %v4694 = vpop.f32.mrb[0].mxu0
        %v4695 = vpop.f32.mrb[0].mxu0
        %v4696 = vadd.f32 0.0, %v4695
        %v4697 = vpop.f32.mrb[0].mxu0
        %4698 = vmatprep.mubr.bf16.mxu0 0
        %4699 = vmatmul.mubr.bf16.gmra.mrb[0].mxu0 %v4581
        %v4700 = vpop.f32.mrb[0].mxu0
        %v4701 = vadd.f32 0.0, %v4700
        %v4702 = vpop.f32.mrb[0].mxu0
        %v4703 = vpop.f32.mrb[0].mxu0
        %v4704 = vadd.f32 0.0, %v4703
        %v4705 = vpop.f32.mrb[0].mxu0
        %4706 = vmatprep.mubr.bf16.mxu0 0
        %4707 = vmatmul.mubr.bf16.gmra.mrb[0].mxu0 %v4584
        %v4708 = vpop.f32.mrb[0].mxu0
        %v4709 = vadd.f32 0.0, %v4708
        %v4710 = vpop.f32.mrb[0].mxu0
        %v4711 = vpop.f32.mrb[0].mxu0
        %v4712 = vadd.f32 0.0, %v4711
        %v4713 = vpop.f32.mrb[0].mxu0
        %4714 = vmatprep.mubr.bf16.mxu0 0
        %4715 = vmatmul.mubr.bf16.gmra.mrb[0].mxu0 %v4587
        %v4716 = vpop.f32.mrb[0].mxu0
        %v4717 = vadd.f32 0.0, %v4716
        %v4718 = vpop.f32.mrb[0].mxu0
        %v4719 = vpop.f32.mrb[0].mxu0
        %v4720 = vadd.f32 0.0, %v4719
        %v4721 = vpop.f32.mrb[0].mxu0
        %4722 = vmatprep.mubr.bf16.mxu0 0
        %4723 = vmatmul.mubr.bf16.gmra.mrb[0].mxu0 %v4590
        %v4724 = vpop.f32.mrb[0].mxu0
        %v4725 = vadd.f32 0.0, %v4724
        %v4726 = vpop.f32.mrb[0].mxu0
        %v4727 = vpop.f32.mrb[0].mxu0
        %v4728 = vadd.f32 0.0, %v4727
        %v4729 = vpop.f32.mrb[0].mxu0
        %4730 = vmatprep.mubr.bf16.mxu0 0
        %4731 = vmatmul.mubr.bf16.gmra.mrb[0].mxu0 %v4593
        %v4732 = vpop.f32.mrb[0].mxu0
        %v4733 = vadd.f32 0.0, %v4732
        %v4734 = vpop.f32.mrb[0].mxu0
        %v4735 = vpop.f32.mrb[0].mxu0
        %v4736 = vadd.f32 0.0, %v4735
        %v4737 = vpop.f32.mrb[0].mxu0
        %4738 = vmatprep.mubr.bf16.mxu0 0
        %4739 = vmatmul.mubr.bf16.gmra.mrb[0].mxu0 %v4596
        %v4740 = vpop.f32.mrb[0].mxu0
        %v4741 = vadd.f32 0.0, %v4740
        %v4742 = vpop.f32.mrb[0].mxu0
        %v4743 = vpop.f32.mrb[0].mxu0
        %v4744 = vadd.f32 0.0, %v4743
        %v4745 = vpop.f32.mrb[0].mxu0
        %4746 = vmatprep.mubr.bf16.mxu0 0
        %4747 = vmatmul.mubr.bf16.gmra.mrb[0].mxu0 %v4599
        %v4748 = vpop.f32.mrb[0].mxu0
        %v4749 = vadd.f32 0.0, %v4748
        %v4750 = vpop.f32.mrb[0].mxu0
        %v4751 = vpop.f32.mrb[0].mxu0
        %v4752 = vadd.f32 0.0, %v4751
        %v4753 = vpop.f32.mrb[0].mxu0
        %4754 = vmatprep.mubr.bf16.mxu0 0
        %4755 = vmatmul.mubr.bf16.gmra.mrb[0].mxu0 %v4602
        %v4756 = vpop.f32.mrb[0].mxu0
        %v4757 = vadd.f32 0.0, %v4756
        %v4758 = vpop.f32.mrb[0].mxu0
        %v4759 = vpop.f32.mrb[0].mxu0
        %v4760 = vadd.f32 0.0, %v4759
        %v4761 = vpop.f32.mrb[0].mxu0
        %4762 = vmatprep.mubr.bf16.mxu0 0
        %4763 = vmatmul.mubr.bf16.gmra.mrb[0].mxu0 %v4605
        %v4764 = vpop.f32.mrb[0].mxu0
        %v4765 = vadd.f32 0.0, %v4764
        %v4766 = vpop.f32.mrb[0].mxu0
        %v4767 = vpop.f32.mrb[0].mxu0
        %v4768 = vadd.f32 0.0, %v4767
        %v4769 = vpop.f32.mrb[0].mxu0
        %4770 = vdwg.mxu0
        %v4771 = vadd.f32 %v4301, %v4645
        %v4772 = vadd.f32 %v4302, %v4648
        %v4773 = vadd.f32 %v4303, %v4653
        %v4774 = vadd.f32 %v4304, %v4656
        %v4775 = vadd.f32 %v4305, %v4661
        %v4776 = vadd.f32 %v4306, %v4664
        %v4777 = vadd.f32 %v4307, %v4669
        %v4778 = vadd.f32 %v4308, %v4672
        %v4779 = vadd.f32 %v4309, %v4677
        %v4780 = vadd.f32 %v4310, %v4680
        %v4781 = vadd.f32 %v4311, %v4685
        %v4782 = vadd.f32 %v4312, %v4688
        %v4783 = vadd.f32 %v4313, %v4693
        %v4784 = vadd.f32 %v4314, %v4696
        %v4785 = vadd.f32 %v4315, %v4701
        %v4786 = vadd.f32 %v4316, %v4704
        %v4787 = vadd.f32 %v4317, %v4709
        %v4788 = vadd.f32 %v4318, %v4712
        %v4789 = vadd.f32 %v4319, %v4717
        %v4790 = vadd.f32 %v4320, %v4720
        %v4791 = vadd.f32 %v4321, %v4725
        %v4792 = vadd.f32 %v4322, %v4728
        %v4793 = vadd.f32 %v4323, %v4733
        %v4794 = vadd.f32 %v4324, %v4736
        %v4795 = vadd.f32 %v4325, %v4741
        %v4796 = vadd.f32 %v4326, %v4744
        %v4797 = vadd.f32 %v4327, %v4749
        %v4798 = vadd.f32 %v4328, %v4752
        %v4799 = vadd.f32 %v4329, %v4757
        %v4800 = vadd.f32 %v4330, %v4760
        %v4801 = vadd.f32 %v4331, %v4765
        %v4802 = vadd.f32 %v4332, %v4768
        %v4803 = vpack.c.bf16 %v4772, %v4771
        %v4804 = vpack.c.bf16 %v4774, %v4773
        %v4805 = vpack.c.bf16 %v4776, %v4775
        %v4806 = vpack.c.bf16 %v4778, %v4777
        %v4807 = vpack.c.bf16 %v4780, %v4779
        %v4808 = vpack.c.bf16 %v4782, %v4781
        %v4809 = vpack.c.bf16 %v4784, %v4783
        %v4810 = vpack.c.bf16 %v4786, %v4785
        %v4811 = vpack.c.bf16 %v4788, %v4787
        %v4812 = vpack.c.bf16 %v4790, %v4789
        %v4813 = vpack.c.bf16 %v4792, %v4791
        %v4814 = vpack.c.bf16 %v4794, %v4793
        %v4815 = vpack.c.bf16 %v4796, %v4795
        %v4816 = vpack.c.bf16 %v4798, %v4797
        %v4817 = vpack.c.bf16 %v4800, %v4799
        %v4818 = vpack.c.bf16 %v4802, %v4801
        %v4835 = vunpack.c.l.b16 %v4803
        %v4836 = vunpack.c.h.b16 %v4803
        %v4837 = vunpack.c.l.b16 %v4804
        %v4838 = vunpack.c.h.b16 %v4804
        %v4839 = vunpack.c.l.b16 %v4805
        %v4840 = vunpack.c.h.b16 %v4805
        %v4841 = vunpack.c.l.b16 %v4806
        %v4842 = vunpack.c.h.b16 %v4806
        %v4843 = vunpack.c.l.b16 %v4807
        %v4844 = vunpack.c.h.b16 %v4807
        %v4845 = vunpack.c.l.b16 %v4808
        %v4846 = vunpack.c.h.b16 %v4808
        %v4847 = vunpack.c.l.b16 %v4809
        %v4848 = vunpack.c.h.b16 %v4809
        %v4849 = vunpack.c.l.b16 %v4810
        %v4850 = vunpack.c.h.b16 %v4810
        %v4851 = vunpack.c.l.b16 %v4811
        %v4852 = vunpack.c.h.b16 %v4811
        %v4853 = vunpack.c.l.b16 %v4812
        %v4854 = vunpack.c.h.b16 %v4812
        %v4855 = vunpack.c.l.b16 %v4813
        %v4856 = vunpack.c.h.b16 %v4813
        %v4857 = vunpack.c.l.b16 %v4814
        %v4858 = vunpack.c.h.b16 %v4814
        %v4859 = vunpack.c.l.b16 %v4815
        %v4860 = vunpack.c.h.b16 %v4815
        %v4861 = vunpack.c.l.b16 %v4816
        %v4862 = vunpack.c.h.b16 %v4816
        %v4863 = vunpack.c.l.b16 %v4817
        %v4864 = vunpack.c.h.b16 %v4817
        %v4865 = vunpack.c.l.b16 %v4818
        %v4866 = vunpack.c.h.b16 %v4818
        %v4867 = vpack.c.b16 %v4835, %v4835
        %v4868 = vpack.c.b16 %v4836, %v4836
        %v4869 = vpack.c.b16 %v4837, %v4837
        %v4870 = vpack.c.b16 %v4838, %v4838
        %v4871 = vpack.c.b16 %v4839, %v4839
        %v4872 = vpack.c.b16 %v4840, %v4840
        %v4873 = vpack.c.b16 %v4841, %v4841
        %v4874 = vpack.c.b16 %v4842, %v4842
        %v4875 = vpack.c.b16 %v4843, %v4843
        %v4876 = vpack.c.b16 %v4844, %v4844
        %v4877 = vpack.c.b16 %v4845, %v4845
        %v4878 = vpack.c.b16 %v4846, %v4846
        %v4879 = vpack.c.b16 %v4847, %v4847
        %v4880 = vpack.c.b16 %v4848, %v4848
        %v4881 = vpack.c.b16 %v4849, %v4849
        %v4882 = vpack.c.b16 %v4850, %v4850
        %v4883 = vpack.c.b16 %v4851, %v4851
        %v4884 = vpack.c.b16 %v4852, %v4852
        %v4885 = vpack.c.b16 %v4853, %v4853
        %v4886 = vpack.c.b16 %v4854, %v4854
        %v4887 = vpack.c.b16 %v4855, %v4855
        %v4888 = vpack.c.b16 %v4856, %v4856
        %v4889 = vpack.c.b16 %v4857, %v4857
        %v4890 = vpack.c.b16 %v4858, %v4858
        %v4891 = vpack.c.b16 %v4859, %v4859
        %v4892 = vpack.c.b16 %v4860, %v4860
        %v4893 = vpack.c.b16 %v4861, %v4861
        %v4894 = vpack.c.b16 %v4862, %v4862
        %v4895 = vpack.c.b16 %v4863, %v4863
        %v4896 = vpack.c.b16 %v4864, %v4864
        %v4897 = vpack.c.b16 %v4865, %v4865
        %v4898 = vpack.c.b16 %v4866, %v4866
        %4931 = vst [vmem:[%s212] sm:$0xf] %v4867
        %4932 = vst [vmem:[%s212 + $0x4] sm:$0xf] %v4868
        %4933 = vst [vmem:[%s212 + $0x8] sm:$0xf] %v4869
        %4934 = vst [vmem:[%s212 + $0xc] sm:$0xf] %v4870
        %4935 = vst [vmem:[%s212 + $0x10] sm:$0xf] %v4871
        %4936 = vst [vmem:[%s212 + $0x14] sm:$0xf] %v4872
        %4937 = vst [vmem:[%s212 + $0x18] sm:$0xf] %v4873
        %4938 = vst [vmem:[%s212 + $0x1c] sm:$0xf] %v4874
        %4939 = vst [vmem:[%s212 + $0x20] sm:$0xf] %v4875
        %4940 = vst [vmem:[%s212 + $0x24] sm:$0xf] %v4876
        %4941 = vst [vmem:[%s212 + $0x28] sm:$0xf] %v4877
        %4942 = vst [vmem:[%s212 + $0x2c] sm:$0xf] %v4878
        %4943 = vst [vmem:[%s212 + $0x30] sm:$0xf] %v4879
        %4944 = vst [vmem:[%s212 + $0x34] sm:$0xf] %v4880
        %4945 = vst [vmem:[%s212 + $0x38] sm:$0xf] %v4881
        %4946 = vst [vmem:[%s212 + $0x3c] sm:$0xf] %v4882
        %4947 = vst [vmem:[%s212 + $0x40] sm:$0xf] %v4883
        %4948 = vst [vmem:[%s212 + $0x44] sm:$0xf] %v4884
        %4949 = vst [vmem:[%s212 + $0x48] sm:$0xf] %v4885
        %4950 = vst [vmem:[%s212 + $0x4c] sm:$0xf] %v4886
        %4951 = vst [vmem:[%s212 + $0x50] sm:$0xf] %v4887
        %4952 = vst [vmem:[%s212 + $0x54] sm:$0xf] %v4888
        %4953 = vst [vmem:[%s212 + $0x58] sm:$0xf] %v4889
        %4954 = vst [vmem:[%s212 + $0x5c] sm:$0xf] %v4890
        %4955 = vst [vmem:[%s212 + $0x60] sm:$0xf] %v4891
        %4956 = vst [vmem:[%s212 + $0x64] sm:$0xf] %v4892
        %4957 = vst [vmem:[%s212 + $0x68] sm:$0xf] %v4893
        %4958 = vst [vmem:[%s212 + $0x6c] sm:$0xf] %v4894
        %4959 = vst [vmem:[%s212 + $0x70] sm:$0xf] %v4895
        %4960 = vst [vmem:[%s212 + $0x74] sm:$0xf] %v4896
        %4961 = vst [vmem:[%s212 + $0x78] sm:$0xf] %v4897
        %4962 = vst [vmem:[%s212 + $0x7c] sm:$0xf] %v4898
        %v4963 = vadd.f32 %v4771, %v4772
        %v4964 = vadd.f32 %v4963, %v4773
        %v4965 = vadd.f32 %v4964, %v4774
        %v4966 = vadd.f32 %v4965, %v4775
        %v4967 = vadd.f32 %v4966, %v4776
        %v4968 = vadd.f32 %v4967, %v4777
        %v4969 = vadd.f32 %v4968, %v4778
        %v4970 = vadd.f32 %v4969, %v4779
        %v4971 = vadd.f32 %v4970, %v4780
        %v4972 = vadd.f32 %v4971, %v4781
        %v4973 = vadd.f32 %v4972, %v4782
        %v4974 = vadd.f32 %v4973, %v4783
        %v4975 = vadd.f32 %v4974, %v4784
        %v4976 = vadd.f32 %v4975, %v4785
        %v4977 = vadd.f32 %v4976, %v4786
        %v4978 = vadd.f32 %v4977, %v4787
        %v4979 = vadd.f32 %v4978, %v4788
        %v4980 = vadd.f32 %v4979, %v4789
        %v4981 = vadd.f32 %v4980, %v4790
        %v4982 = vadd.f32 %v4981, %v4791
        %v4983 = vadd.f32 %v4982, %v4792
        %v4984 = vadd.f32 %v4983, %v4793
        %v4985 = vadd.f32 %v4984, %v4794
        %v4986 = vadd.f32 %v4985, %v4795
        %v4987 = vadd.f32 %v4986, %v4796
        %v4988 = vadd.f32 %v4987, %v4797
        %v4989 = vadd.f32 %v4988, %v4798
        %v4990 = vadd.f32 %v4989, %v4799
        %v4991 = vadd.f32 %v4990, %v4800
        %v4992 = vadd.f32 %v4991, %v4801
        %v4993 = vadd.f32 %v4992, %v4802
        %v4994 = vrot.slane %v4993, 4
        %v4995 = vadd.f32 %v4993, %v4994
        %v4996 = vrot.slane %v4995, 2
        %v4997 = vadd.f32 %v4995, %v4996
        %v4998 = vrot.slane %v4997, 1
        %v4999 = vadd.f32 %v4997, %v4998
        %v5000 = vmul.f32 %v4771, %v4771
        %v5001 = vmul.f32 %v4772, %v4772
        %v5002 = vmul.f32 %v4773, %v4773
        %v5003 = vmul.f32 %v4774, %v4774
        %v5004 = vmul.f32 %v4775, %v4775
        %v5005 = vmul.f32 %v4776, %v4776
        %v5006 = vmul.f32 %v4777, %v4777
        %v5007 = vmul.f32 %v4778, %v4778
        %v5008 = vmul.f32 %v4779, %v4779
        %v5009 = vmul.f32 %v4780, %v4780
        %v5010 = vmul.f32 %v4781, %v4781
        %v5011 = vmul.f32 %v4782, %v4782
        %v5012 = vmul.f32 %v4783, %v4783
        %v5013 = vmul.f32 %v4784, %v4784
        %v5014 = vmul.f32 %v4785, %v4785
        %v5015 = vmul.f32 %v4786, %v4786
        %v5016 = vmul.f32 %v4787, %v4787
        %v5017 = vmul.f32 %v4788, %v4788
        %v5018 = vmul.f32 %v4789, %v4789
        %v5019 = vmul.f32 %v4790, %v4790
        %v5020 = vmul.f32 %v4791, %v4791
        %v5021 = vmul.f32 %v4792, %v4792
        %v5022 = vmul.f32 %v4793, %v4793
        %v5023 = vmul.f32 %v4794, %v4794
        %v5024 = vmul.f32 %v4795, %v4795
        %v5025 = vmul.f32 %v4796, %v4796
        %v5026 = vmul.f32 %v4797, %v4797
        %v5027 = vmul.f32 %v4798, %v4798
        %v5028 = vmul.f32 %v4799, %v4799
        %v5029 = vmul.f32 %v4800, %v4800
        %v5030 = vmul.f32 %v4801, %v4801
        %v5031 = vmul.f32 %v4802, %v4802
        %v5032 = vadd.f32 %v5000, %v5001
        %v5033 = vadd.f32 %v5032, %v5002
        %v5034 = vadd.f32 %v5033, %v5003
        %v5035 = vadd.f32 %v5034, %v5004
        %v5036 = vadd.f32 %v5035, %v5005
        %v5037 = vadd.f32 %v5036, %v5006
        %v5038 = vadd.f32 %v5037, %v5007
        %v5039 = vadd.f32 %v5038, %v5008
        %v5040 = vadd.f32 %v5039, %v5009
        %v5041 = vadd.f32 %v5040, %v5010
        %v5042 = vadd.f32 %v5041, %v5011
        %v5043 = vadd.f32 %v5042, %v5012
        %v5044 = vadd.f32 %v5043, %v5013
        %v5045 = vadd.f32 %v5044, %v5014
        %v5046 = vadd.f32 %v5045, %v5015
        %v5047 = vadd.f32 %v5046, %v5016
        %v5048 = vadd.f32 %v5047, %v5017
        %v5049 = vadd.f32 %v5048, %v5018
        %v5050 = vadd.f32 %v5049, %v5019
        %v5051 = vadd.f32 %v5050, %v5020
        %v5052 = vadd.f32 %v5051, %v5021
        %v5053 = vadd.f32 %v5052, %v5022
        %v5054 = vadd.f32 %v5053, %v5023
        %v5055 = vadd.f32 %v5054, %v5024
        %v5056 = vadd.f32 %v5055, %v5025
        %v5057 = vadd.f32 %v5056, %v5026
        %v5058 = vadd.f32 %v5057, %v5027
        %v5059 = vadd.f32 %v5058, %v5028
        %v5060 = vadd.f32 %v5059, %v5029
        %v5061 = vadd.f32 %v5060, %v5030
        %v5062 = vadd.f32 %v5061, %v5031
        %v5063 = vrot.slane %v5062, 4
        %v5064 = vadd.f32 %v5062, %v5063
        %v5065 = vrot.slane %v5064, 2
        %v5066 = vadd.f32 %v5064, %v5065
        %v5067 = vrot.slane %v5066, 1
        %v5068 = vadd.f32 %v5066, %v5067
        %5069 = vst [vmem:[%s219] sm:$0xff] %v4999
        %5070 = vst [vmem:[%s226] sm:$0xff] %v5068
        %s5071 = sand.u32 %s91, 1
        %s5072 = scalar_lea.sflag [#allocation3], %s5071
        %s5073 = sand.u32 %s91, 1
        %s5074 = smul.addr %s5073, 128
        %s5075 = scalar_lea.vmem [#allocation2], %s5074
        %s5076 = sand.u32 %s22, 1
        %s5077 = scalar_lea.sflag [#allocation5], %s5076
        %s5078 = sand.u32 %s119, 1
        %s5079 = smul.addr %s5078, 8
        %s5080 = scalar_lea.vmem [#allocation4], %s5079
        %s5081 = sand.u32 %s22, 1
        %s5082 = scalar_lea.sflag [#allocation5], %s5081
        %s5083 = sand.u32 %s147, 1
        %s5084 = smul.addr %s5083, 8
        %s5085 = scalar_lea.vmem [#allocation6], %s5084
        // Predicated region
        $region29: #{tpu_custom_call.1} parent=27 // pred_check
          %p5086 = pneg %p101
        $region30: #{tpu_custom_call.1} parent=27 // pred_check_branch
          %5088 = sbr.rel (%p5086) target = $region32
        $region31: #{tpu_custom_call.1} parent=27 // pred_region
          %s5089 = smul.u32 32, %s27
          %s5091 = ssub.s32 2048, 2048
          %5092 = vsyncadd %s5072, %s5091
          %s5093 = smul.addr %s26, 32
          %s5094 = sadd.s32 %s5089, %s5093
          %s5095 = smul.addr %s5094, 64
          %s5096 = scalar_lea.hbm %s2, %s5095
          %s5097 = sshll.u32 %s5075, 4
          %s5098 = int_to_ptr.vmem [resolvable:$true] %s5097
          %5103 = dma.vmem_to_hbm [thread:$0]  %s5098, 2048, %s5096, %s5072, 64, 64, 4
        $region32: #{tpu_custom_call.1} parent=27 // pred_fallthru
          _
        // Predicated region
        $region33: #{tpu_custom_call.1} parent=27 // pred_check
          %p5104 = pneg %p129
        $region34: #{tpu_custom_call.1} parent=27 // pred_check_branch
          %5106 = sbr.rel (%p5104) target = $region36
        $region35: #{tpu_custom_call.1} parent=27 // pred_region
          %s5108 = ssub.s32 128, 128
          %5109 = vsyncadd %s5077, %s5108
          %s5110 = sadd.s32 %s27, %s26
          %s5111 = smul.addr %s5110, 128
          %s5112 = scalar_lea.hbm %s3, %s5111
          %s5114 = sshll.u32 %s5080, 4
          %s5115 = int_to_ptr.vmem [resolvable:$true] %s5114
          %5117 = dma.vmem_to_hbm [thread:$0]  %s5115, 128, %s5112, %s5077
        $region36: #{tpu_custom_call.1} parent=27 // pred_fallthru
          _
        // Predicated region
        $region37: #{tpu_custom_call.1} parent=27 // pred_check
          %p5118 = pneg %p157
        $region38: #{tpu_custom_call.1} parent=27 // pred_check_branch
          %5120 = sbr.rel (%p5118) target = $region40
        $region39: #{tpu_custom_call.1} parent=27 // pred_region
          %s5122 = ssub.s32 128, 128
          %5123 = vsyncadd %s5082, %s5122
          %s5124 = sadd.s32 %s27, %s26
          %s5125 = smul.addr %s5124, 128
          %s5126 = scalar_lea.hbm %s4, %s5125
          %s5128 = sshll.u32 %s5085, 4
          %s5129 = int_to_ptr.vmem [resolvable:$true] %s5128
          %5131 = dma.vmem_to_hbm [thread:$0]  %s5129, 128, %s5126, %s5082
        $region40: #{tpu_custom_call.1} parent=27 // pred_fallthru
          _
      $region28: #{tpu_custom_call.1} parent=5 // pred_fallthru
        _
      %p5132 = scmp.le.s32.totalorder 2, %s17
      // Predicated region
      $region41: #{tpu_custom_call.1} parent=5 // pred_check
        %p5133 = pneg %p5132
      $region42: #{tpu_custom_call.1} parent=5 // pred_check_branch
        %5135 = sbr.rel (%p5133) target = $region44
      $region43: #{tpu_custom_call.1} parent=5 // pred_region
        %s5136 = ssub.s32 %s17, 2
        // Predicated region
        $region45: #{tpu_custom_call.1} parent=43 // pred_check
          %p5137 = pneg %p107
        $region46: #{tpu_custom_call.1} parent=43 // pred_check_branch
          %5139 = sbr.rel (%p5137) target = $region48
        $region47: #{tpu_custom_call.1} parent=43 // pred_region
          %s5140 = sand.u32 %s92, 1
          %s5141 = scalar_lea.sflag [#allocation3], %s5140
          %s5142 = sand.u32 %s92, 1
          %s5143 = smul.addr %s5142, 128
          %s5144 = scalar_lea.vmem [#allocation2], %s5143
          %5145 = dma.done %s5141, 2048
        $region48: #{tpu_custom_call.1} parent=43 // pred_fallthru
          _
        // Predicated region
        $region49: #{tpu_custom_call.1} parent=43 // pred_check
          %p5146 = pneg %p135
        $region50: #{tpu_custom_call.1} parent=43 // pred_check_branch
          %5148 = sbr.rel (%p5146) target = $region52
        $region51: #{tpu_custom_call.1} parent=43 // pred_region
          %s5149 = sand.u32 %s23, 1
          %s5150 = scalar_lea.sflag [#allocation5], %s5149
          %s5151 = sand.u32 %s120, 1
          %s5152 = smul.addr %s5151, 8
          %s5153 = scalar_lea.vmem [#allocation4], %s5152
          %5154 = dma.done %s5150, 128
        $region52: #{tpu_custom_call.1} parent=43 // pred_fallthru
          _
        // Predicated region
        $region53: #{tpu_custom_call.1} parent=43 // pred_check
          %p5155 = pneg %p163
        $region54: #{tpu_custom_call.1} parent=43 // pred_check_branch
          %5157 = sbr.rel (%p5155) target = $region56
        $region55: #{tpu_custom_call.1} parent=43 // pred_region
          %s5158 = sand.u32 %s23, 1
          %s5159 = scalar_lea.sflag [#allocation5], %s5158
          %s5160 = sand.u32 %s148, 1
          %s5161 = smul.addr %s5160, 8
          %s5162 = scalar_lea.vmem [#allocation6], %s5161
          %5163 = dma.done %s5159, 128
        $region56: #{tpu_custom_call.1} parent=43 // pred_fallthru
          _
      $region44: #{tpu_custom_call.1} parent=5 // pred_fallthru
        _
    $region6: #{tpu_custom_call.1} parent=1 // loop_footer
      %s21 = sadd.s32 1, %s17
    $region7: #{tpu_custom_call.1} parent=1 // loop_footer_branch
      %16 = sbr.rel target = $region3
    $region8: #{tpu_custom_call.1} parent=1 // loop_exit
      _
    %5164 = vsyncpa [#allocation3], 1
    %s5165 = scalar_lea.sflag [#allocation3], 1
    %5166 = vsyncpa %s5165, 1
    %5167 = vsyncpa [#allocation5], 1
    %s5168 = scalar_lea.sflag [#allocation5], 1
    %5169 = vsyncpa %s5168, 1

</llo_original>
